<compile_context>
chip_gen: v5e
topology: v5e:2x2
jax: 0.10.0
libtpu: 0.0.40
codegen_flags: <defaults>
</compile_context>

<pallas_src>
import functools

import numpy as np
import jax
import jax.numpy as jnp
from jax.experimental import pallas as pl
from jax.experimental.pallas import tpu as pltpu

CNN_OUTPUT = 64
ACTION_DIM = 3
HIDDEN_WIDTH = 64

_LOG2 = float(np.log(2.0))
_HALF_LOG_2PI = 0.5 * float(np.log(2.0 * np.pi))


def _round_up(x, m):
    return (x + m - 1) // m * m


def _detect_conv1_split():
    # v7x has 2 TensorCores per chip (megacore): split conv1's M axis into two
    # even 'parallel' blocks.  v5e/v6e have a single TC, where extra grid steps
    # are pure per-step overhead -> one block, 'arbitrary'.
    try:
        kind = jax.devices()[0].device_kind.lower()
        return 2 if "v7" in kind else 1
    except Exception:
        return 1


_CONV1_SPLIT = _detect_conv1_split()


def _full_spec(shape):
    nd = len(shape)
    return pl.BlockSpec(shape, lambda i, _nd=nd: (0,) * _nd)


def _nbytes(*arrs):
    return int(sum(int(np.prod(a.shape)) * a.dtype.itemsize for a in arrs))


# ---------------------------------------------------------------------------
# Pallas kernels
# ---------------------------------------------------------------------------
def conv_relu_kernel(w_ref, b_ref, p_ref, o_ref):
    """o = relu(W @ P + b).  W:(Cout,Kp) bf16, P:(Kp,Mtile) bf16, b:(Cout,1) f32.

    Transposed-product orientation: Cout on sublanes, M on the 128-lane dim
    -> lane-dense stores and PyTorch-native weight flattening.  Output is bf16.
    """
    acc = jnp.dot(w_ref[...], p_ref[...], preferred_element_type=jnp.float32)
    o_ref[...] = jnp.maximum(acc + b_ref[...], 0.0).astype(o_ref.dtype)


def tail_kernel(w2_ref, b2_ref, p2g_ref, w3_ref, b3_ref, w4_ref, b4_ref,
                wl1_ref, bl1_ref, wm_ref, bm_ref, ws_ref, bs_ref,
                eps_ref, amax_ref, scale_ref, off_ref,
                out_ref, *, batch, deterministic):
    """Fused conv2 + conv3 + conv4 + actor head; everything stays in VMEM/vregs.

    p2g columns are ordered (j3 = conv3 kernel position, s = conv3 output
    position (3x3), b), so conv2 directly produces the gathered conv3 patch
    blocks and conv3 is 9 per-position dots over static lane slices.
    """
    m3 = 9 * batch                                      # conv3 output columns (s, b)

    # ---- conv2 on the conv3-gathered patch columns -------------------------
    o2 = jnp.maximum(
        jnp.dot(w2_ref[...], p2g_ref[...], preferred_element_type=jnp.float32)
        + b2_ref[...], 0.0)                             # (16, 9*m3) f32
    o2b = o2.astype(jnp.bfloat16)

    # ---- conv3 (3x3, stride 2): sum over the 9 kernel positions -------------
    acc3 = jnp.zeros((32, m3), jnp.float32)
    for j in range(9):                                  # static unroll
        acc3 = acc3 + jnp.dot(w3_ref[j], o2b[:, j * m3:(j + 1) * m3],
                              preferred_element_type=jnp.float32)
    o3 = jnp.maximum(acc3 + b3_ref[...], 0.0)           # (32, 9*B), cols (spatial, batch)
    o3b = o3.astype(jnp.bfloat16)

    # ---- conv4 (3x3 input -> 1x1 output): sum over the 9 kernel positions ---
    acc4 = jnp.zeros((CNN_OUTPUT, batch), jnp.float32)
    for j in range(9):                                  # static unroll
        acc4 = acc4 + jnp.dot(w4_ref[j], o3b[:, j * batch:(j + 1) * batch],
                              preferred_element_type=jnp.float32)
    xcnn = jnp.maximum(acc4 + b4_ref[...], 0.0)         # (64, B) f32 (transposed x_cnn)

    # ---- actor head: bf16 MXU operands, f32 accumulation / epilogue ---------
    xb = xcnn.astype(jnp.bfloat16)
    h = jnp.maximum(
        jnp.dot(wl1_ref[...], xb, preferred_element_type=jnp.float32) + bl1_ref[...],
        0.0)                                            # (H, B)
    hb = h.astype(jnp.bfloat16)
    mean = jnp.dot(wm_ref[...], hb, preferred_element_type=jnp.float32) + bm_ref[...]
    log_std = jnp.dot(ws_ref[...], hb, preferred_element_type=jnp.float32) + bs_ref[...]
    log_std = jnp.clip(log_std, -20.0, 2.0)
    std = jnp.exp(log_std)

    if deterministic:
        a = mean
        log_prob = -log_std - _HALF_LOG_2PI             # Gaussian density at z = 0
    else:
        eps = eps_ref[...]
        a = mean + std * eps                            # rsample
        # (a - mean)/std == eps exactly -> use eps directly, no vector divide.
        log_prob = -0.5 * eps * eps - log_std - _HALF_LOG_2PI

    # tanh-squash correction: 2*(log2 - a - softplus(-2a)); stable softplus form.
    t = -2.0 * a
    sp = jnp.maximum(t, 0.0) + jnp.log(1.0 + jnp.exp(-jnp.abs(t)))
    corr = 2.0 * (_LOG2 - a - sp)

    logpi = jnp.sum(log_prob - corr, axis=0, keepdims=True)          # (1, B)
    act = amax_ref[...] * jnp.tanh(a) * scale_ref[...] + off_ref[...]  # (3, B)

    # single merged output: rows [0:3]=action, [3:4]=log_pi, [4:68]=x_cnn
    out_ref[...] = jnp.concatenate([act, logpi, xcnn], axis=0)


# ---------------------------------------------------------------------------
# XLA glue: channel-major im2col (patch gather only; all matmuls run in Pallas)
# ---------------------------------------------------------------------------
def _im2col_T(x_cm, k, s):
    """x_cm: (C, B, H, W) -> (C*k*k, B*OH*OW); rows ordered (c, kh, kw),
    columns ordered (b, oh, ow)."""
    C, Bd, H, W = x_cm.shape
    OH = (H - k) // s + 1
    OW = (W - k) // s + 1
    slabs = []
    for kh in range(k):
        for kw in range(k):
            slabs.append(x_cm[:, :, kh: kh + s * (OH - 1) + 1: s,
                                    kw: kw + s * (OW - 1) + 1: s])   # (C, B, OH, OW)
    p = jnp.stack(slabs, axis=1)                       # (C, k*k, B, OH, OW)
    return p.reshape(C * k * k, -1), OH, OW


def _conv3_gather_index(batch, oh2, ow2):
    """Column indices into the conv2 patch matrix (cols ordered (b, h2, w2)) that
    reproduce conv3's 3x3/stride-2 im2col at the conv2 input.  Destination
    columns are ordered (j3 = kh*3+kw, s = oh3*3+ow3, b)."""
    oh3 = (oh2 - 3) // 2 + 1
    ow3 = (ow2 - 3) // 2 + 1
    idx = []
    for kh in range(3):
        for kw in range(3):
            for oh in range(oh3):
                for ow in range(ow3):
                    for b in range(batch):
                        idx.append(b * (oh2 * ow2) + (2 * oh + kh) * ow2 + (2 * ow + kw))
    return np.asarray(idx, np.int32), oh3 * ow3


# ---------------------------------------------------------------------------
# Pallas wrappers
# ---------------------------------------------------------------------------
def conv_relu_pallas(w, b, p, *, m_block, parallel):
    cout, k = w.shape
    kp, m = p.shape
    assert kp == k and m % m_block == 0 and m_block % 128 == 0
    cost = pl.CostEstimate(flops=2 * cout * k * m, transcendentals=0,
                           bytes_accessed=_nbytes(w, b, p) + cout * m * 2)
    return pl.pallas_call(
        conv_relu_kernel,
        grid=(m // m_block,),
        out_shape=jax.ShapeDtypeStruct((cout, m), jnp.bfloat16),
        in_specs=[pl.BlockSpec((cout, k), lambda i: (0, 0)),
                  pl.BlockSpec((cout, 1), lambda i: (0, 0)),
                  pl.BlockSpec((k, m_block), lambda i: (0, i))],
        out_specs=pl.BlockSpec((cout, m_block), lambda i: (0, i)),
        compiler_params=pltpu.CompilerParams(
            dimension_semantics=("parallel" if parallel else "arbitrary",)),
        cost_estimate=cost,
    )(w, b, p)


@functools.partial(jax.jit, static_argnames=("deterministic",))
def actor_forward(params, x, eps, deterministic=False):
    B = x.shape[0]

    # ---- conv1: channel-major bf16 im2col glue + Pallas matmul --------------
    x_cm = jnp.transpose(x.astype(jnp.bfloat16), (1, 0, 2, 3))    # (4, B, 96, 96) bf16
    p1, oh1, ow1 = _im2col_T(x_cm, k=8, s=4)                      # (256, B*529) bf16
    m1 = B * oh1 * ow1
    m1p = _round_up(m1, 128 * _CONV1_SPLIT)
    p1 = jnp.pad(p1, ((0, 0), (0, m1p - m1)))                     # M lane-dense, K already 256
    o1 = conv_relu_pallas(params["w1"], params["b1"], p1,
                          m_block=m1p // _CONV1_SPLIT,
                          parallel=_CONV1_SPLIT > 1)              # (8, m1p) bf16

    # ---- conv2 patch gather (tiny XLA glue), already reordered for conv3 ----
    a1 = o1[:, :m1].reshape(8, B, oh1, ow1)                       # bf16, channel-major
    p2, oh2, ow2 = _im2col_T(a1, k=5, s=3)                        # (200, B*49) bf16
    idx, n_sp3 = _conv3_gather_index(B, oh2, ow2)
    assert n_sp3 == 9, "conv stack must end at 1x1 spatial for CNN_OUTPUT=64"
    p2g = jnp.take(p2, jnp.asarray(idx), axis=1)                  # (200, 81*B) bf16
    p2g = jnp.pad(p2g, ((0, 256 - p2g.shape[0]), (0, 0)))         # K 200 -> 256
    # TODO(synk): the conv1->conv2 strided window gather above stays in XLA.

    # ---- conv2 + conv3 + conv4 + head: single fused Pallas kernel -----------
    m3 = n_sp3 * B
    flops = 2 * (16 * 256 * p2g.shape[1] + 9 * 32 * 16 * m3 + 9 * 64 * 32 * B
                 + HIDDEN_WIDTH * CNN_OUTPUT * B + 2 * ACTION_DIM * HIDDEN_WIDTH * B)
    kernel = functools.partial(tail_kernel, batch=B, deterministic=deterministic)
    args = (params["w2"], params["b2"], p2g, params["w3"], params["b3"],
            params["w4"], params["b4"],
            params["wl1"], params["bl1"], params["wm"], params["bm"],
            params["ws"], params["bs"], eps.T,
            params["max_action"], params["scale"], params["offset"])
    n_out = ACTION_DIM + 1 + CNN_OUTPUT
    out = pl.pallas_call(
        kernel,
        grid=(1,),
        out_shape=jax.ShapeDtypeStruct((n_out, B), jnp.float32),
        in_specs=[_full_spec(v.shape) for v in args],
        out_specs=_full_spec((n_out, B)),
        compiler_params=pltpu.CompilerParams(dimension_semantics=("arbitrary",)),
        cost_estimate=pl.CostEstimate(flops=flops, transcendentals=16 * B,
                                      bytes_accessed=_nbytes(*args) + n_out * B * 4),
    )(*args)

    a = out[:ACTION_DIM].T                        # (B, 3)
    log_pi = out[ACTION_DIM:ACTION_DIM + 1].T     # (B, 1)
    x_cnn = out[ACTION_DIM + 1:].T                # (B, 64)
    return a, log_pi, x_cnn


# ---------------------------------------------------------------------------
# Parameter init (mirrors the PyTorch __init__: xavier_uniform(relu gain) convs,
# 0.1 conv biases, default Linear init), stored in matmul-ready padded form.
# ---------------------------------------------------------------------------
def _xavier_uniform(key, shape, fan_in, fan_out, gain):
    bound = gain * np.sqrt(6.0 / (fan_in + fan_out))
    return jax.random.uniform(key, shape, jnp.float32, -bound, bound)


def init_actor_params(key, hidden_width=HIDDEN_WIDTH, action_dim=ACTION_DIM):
    keys = jax.random.split(key, 8)
    gain = float(np.sqrt(2.0))                          # calculate_gain('relu')

    def conv_w(k_, cout, cin, ksz):
        return _xavier_uniform(k_, (cout, cin, ksz, ksz),
                               cin * ksz * ksz, cout * ksz * ksz, gain)

    w1 = conv_w(keys[0], 8, 4, 8)
    w2 = conv_w(keys[1], 16, 8, 5)
    w3 = conv_w(keys[2], 32, 16, 3)
    w4 = conv_w(keys[3], 64, 32, 3)

    def lin(k_, in_f, out_f):
        kw_, kb_ = jax.random.split(k_)
        bound = 1.0 / np.sqrt(in_f)
        W = jax.random.uniform(kw_, (out_f, in_f), jnp.float32, -bound, bound)
        b = jax.random.uniform(kb_, (out_f, 1), jnp.float32, -bound, bound)
        return W.astype(jnp.bfloat16), b                # bf16 MXU operands, f32 bias

    wl1, bl1 = lin(keys[4], CNN_OUTPUT, hidden_width)
    wm, bm = lin(keys[5], hidden_width, action_dim)
    ws, bs = lin(keys[6], hidden_width, action_dim)

    def flat_pad(w, k_pad):                             # -> (Cout, Kpad) bf16
        cout = w.shape[0]
        wmat = w.reshape(cout, -1)                      # PyTorch (Cin, kh, kw) flattening
        wmat = jnp.pad(wmat, ((0, 0), (0, k_pad - wmat.shape[1])))
        return wmat.astype(jnp.bfloat16)

    def per_pos(w):                                     # (Cout,Cin,3,3) -> (9, Cout, Cin) bf16
        return (w.transpose(2, 3, 0, 1)
                 .reshape(9, w.shape[0], w.shape[1]).astype(jnp.bfloat16))

    return {
        "w1": flat_pad(w1, 256), "b1": jnp.full((8, 1), 0.1, jnp.float32),
        "w2": flat_pad(w2, 256), "b2": jnp.full((16, 1), 0.1, jnp.float32),
        # conv3/conv4 stored as (9, Cout, Cin): slice j = kernel position kh*3+kw
        "w3": per_pos(w3), "b3": jnp.full((32, 1), 0.1, jnp.float32),
        "w4": per_pos(w4), "b4": jnp.full((64, 1), 0.1, jnp.float32),
        "wl1": wl1, "bl1": bl1, "wm": wm, "bm": bm, "ws": ws, "bs": bs,
        "max_action": jnp.array([[1.0], [1.0], [1.0]], jnp.float32),
        "scale": jnp.array([[1.0], [0.5], [0.5]], jnp.float32),
        "offset": jnp.array([[0.0], [0.5], [0.5]], jnp.float32),
    }


# ---------------------------------------------------------------------------
if __name__ == "__main__":
    key = jax.random.PRNGKey(0)
    k_params, k_x, k_eps = jax.random.split(key, 3)

    params = init_actor_params(k_params)

    B = 2
    x = jax.random.normal(k_x, (B, 4, 96, 96), jnp.float32)       # NCHW CarRacing frames
    eps = jax.random.normal(k_eps, (B, ACTION_DIM), jnp.float32)  # rsample noise

    a, log_pi, x_cnn = actor_forward(params, x, eps, deterministic=False)
    jax.block_until_ready((a, log_pi, x_cnn))

    assert a.shape == (B, ACTION_DIM)
    assert log_pi.shape == (B, 1)
    assert x_cnn.shape == (B, CNN_OUTPUT)
    assert bool(jnp.all(jnp.isfinite(a))) and bool(jnp.all(jnp.isfinite(log_pi)))

    print("KERNEL_OK")
</pallas_src>

<mosaic_0001>
module attributes {stable_mosaic.version = 11 : i64} {
  func.func @conv_relu_kernel(%arg0: i32, %arg1: memref<8x256xbf16, #tpu.memory_space<vmem>>, %arg2: memref<8x1xf32, #tpu.memory_space<vmem>>, %arg3: memref<256x1152xbf16, #tpu.memory_space<vmem>>, %arg4: memref<8x1152xbf16, #tpu.memory_space<vmem>>) attributes {dimension_semantics = [#tpu.dimension_semantics<arbitrary>], iteration_bounds = array<i64: 1>, scalar_prefetch = 0 : i64, scratch_operands = 0 : i64, tpu.core_type = #tpu.core_type<tc>, window_params = [{pipeline_mode = #tpu.pipeline_mode<synchronous>, transform_indices = @transform_0, window_bounds = array<i64: 8, 256>}, {pipeline_mode = #tpu.pipeline_mode<synchronous>, transform_indices = @transform_1, window_bounds = array<i64: 8, 1>}, {transform_indices = @transform_2, window_bounds = array<i64: 256, 1152>}, {transform_indices = @transform_3, window_bounds = array<i64: 8, 1152>}]} {
    %c0 = arith.constant 0 : index
    %c0_0 = arith.constant 0 : index
    %0 = vector.load %arg1[%c0, %c0_0] : memref<8x256xbf16, #tpu.memory_space<vmem>>, vector<8x256xbf16>
    %c0_1 = arith.constant 0 : index
    %c0_2 = arith.constant 0 : index
    %1 = vector.load %arg3[%c0_1, %c0_2] : memref<256x1152xbf16, #tpu.memory_space<vmem>>, vector<256x1152xbf16>
    %cst = arith.constant dense<0.000000e+00> : vector<8x1152xf32>
    %2 = tpu.matmul %0, %1, %cst {dimension_numbers = #tpu.dot_dimension_numbers<[1], [0], [0], [1], [0, 0, 1, 1], [], []>} : vector<8x256xbf16>, vector<256x1152xbf16>, vector<8x1152xf32> -> vector<8x1152xf32>
    %c0_3 = arith.constant 0 : index
    %c0_4 = arith.constant 0 : index
    %3 = vector.load %arg2[%c0_3, %c0_4] : memref<8x1xf32, #tpu.memory_space<vmem>>, vector<8x1xf32>
    %4 = vector.broadcast %3 : vector<8x1xf32> to vector<8x1152xf32>
    %5 = arith.addf %2, %4 : vector<8x1152xf32>
    %cst_5 = arith.constant 0.000000e+00 : f32
    %6 = vector.broadcast %cst_5 : f32 to vector<8x1152xf32>
    %7 = arith.maximumf %5, %6 : vector<8x1152xf32>
    %8 = arith.truncf %7 : vector<8x1152xf32> to vector<8x1152xbf16>
    %c0_6 = arith.constant 0 : index
    %c0_7 = arith.constant 0 : index
    %9 = vector.load %arg4[%c0_6, %c0_7] : memref<8x1152xbf16, #tpu.memory_space<vmem>>, vector<8x1152xbf16>
    tpu.vector_store %arg4[%c0_6, %c0_7], %8 {strides = array<i32>} : memref<8x1152xbf16, #tpu.memory_space<vmem>>, vector<8x1152xbf16>,
    return
  }
  func.func @transform_0(%arg0: i32) -> (i32, i32) {
    %c0_i32 = arith.constant 0 : i32
    %c0_i32_0 = arith.constant 0 : i32
    %c0_i32_1 = arith.constant 0 : i32
    return %c0_i32, %c0_i32_0 : i32, i32
  }
  func.func @transform_1(%arg0: i32) -> (i32, i32) {
    %c0_i32 = arith.constant 0 : i32
    %c0_i32_0 = arith.constant 0 : i32
    %c0_i32_1 = arith.constant 0 : i32
    return %c0_i32, %c0_i32_0 : i32, i32
  }
  func.func @transform_2(%arg0: i32) -> (i32, i32) {
    %c0_i32 = arith.constant 0 : i32
    %c0_i32_0 = arith.constant 0 : i32
    return %c0_i32, %arg0 : i32, i32
  }
  func.func @transform_3(%arg0: i32) -> (i32, i32) {
    %c0_i32 = arith.constant 0 : i32
    %c0_i32_0 = arith.constant 0 : i32
    return %c0_i32, %arg0 : i32, i32
  }
}

module attributes {stable_mosaic.version = 11 : i64} {
  func.func @tail_kernel(%arg0: i32, %arg1: memref<16x256xbf16, #tpu.memory_space<vmem>>, %arg2: memref<16x1xf32, #tpu.memory_space<vmem>>, %arg3: memref<256x162xbf16, #tpu.memory_space<vmem>>, %arg4: memref<9x32x16xbf16, #tpu.memory_space<vmem>>, %arg5: memref<32x1xf32, #tpu.memory_space<vmem>>, %arg6: memref<9x64x32xbf16, #tpu.memory_space<vmem>>, %arg7: memref<64x1xf32, #tpu.memory_space<vmem>>, %arg8: memref<64x64xbf16, #tpu.memory_space<vmem>>, %arg9: memref<64x1xf32, #tpu.memory_space<vmem>>, %arg10: memref<3x64xbf16, #tpu.memory_space<vmem>>, %arg11: memref<3x1xf32, #tpu.memory_space<vmem>>, %arg12: memref<3x64xbf16, #tpu.memory_space<vmem>>, %arg13: memref<3x1xf32, #tpu.memory_space<vmem>>, %arg14: memref<3x2xf32, #tpu.memory_space<vmem>>, %arg15: memref<3x1xf32, #tpu.memory_space<vmem>>, %arg16: memref<3x1xf32, #tpu.memory_space<vmem>>, %arg17: memref<3x1xf32, #tpu.memory_space<vmem>>, %arg18: memref<68x2xf32, #tpu.memory_space<vmem>>) attributes {dimension_semantics = [#tpu.dimension_semantics<arbitrary>], iteration_bounds = array<i64: 1>, scalar_prefetch = 0 : i64, scratch_operands = 0 : i64, tpu.core_type = #tpu.core_type<tc>, window_params = [{pipeline_mode = #tpu.pipeline_mode<synchronous>, transform_indices = @transform_0, window_bounds = array<i64: 16, 256>}, {pipeline_mode = #tpu.pipeline_mode<synchronous>, transform_indices = @transform_1, window_bounds = array<i64: 16, 1>}, {pipeline_mode = #tpu.pipeline_mode<synchronous>, transform_indices = @transform_2, window_bounds = array<i64: 256, 162>}, {pipeline_mode = #tpu.pipeline_mode<synchronous>, transform_indices = @transform_3, window_bounds = array<i64: 9, 32, 16>}, {pipeline_mode = #tpu.pipeline_mode<synchronous>, transform_indices = @transform_4, window_bounds = array<i64: 32, 1>}, {pipeline_mode = #tpu.pipeline_mode<synchronous>, transform_indices = @transform_5, window_bounds = array<i64: 9, 64, 32>}, {pipeline_mode = #tpu.pipeline_mode<synchronous>, transform_indices = @transform_6, window_bounds = array<i64: 64, 1>}, {pipeline_mode = #tpu.pipeline_mode<synchronous>, transform_indices = @transform_7, window_bounds = array<i64: 64, 64>}, {pipeline_mode = #tpu.pipeline_mode<synchronous>, transform_indices = @transform_8, window_bounds = array<i64: 64, 1>}, {pipeline_mode = #tpu.pipeline_mode<synchronous>, transform_indices = @transform_9, window_bounds = array<i64: 3, 64>}, {pipeline_mode = #tpu.pipeline_mode<synchronous>, transform_indices = @transform_10, window_bounds = array<i64: 3, 1>}, {pipeline_mode = #tpu.pipeline_mode<synchronous>, transform_indices = @transform_11, window_bounds = array<i64: 3, 64>}, {pipeline_mode = #tpu.pipeline_mode<synchronous>, transform_indices = @transform_12, window_bounds = array<i64: 3, 1>}, {pipeline_mode = #tpu.pipeline_mode<synchronous>, transform_indices = @transform_13, window_bounds = array<i64: 3, 2>}, {pipeline_mode = #tpu.pipeline_mode<synchronous>, transform_indices = @transform_14, window_bounds = array<i64: 3, 1>}, {pipeline_mode = #tpu.pipeline_mode<synchronous>, transform_indices = @transform_15, window_bounds = array<i64: 3, 1>}, {pipeline_mode = #tpu.pipeline_mode<synchronous>, transform_indices = @transform_16, window_bounds = array<i64: 3, 1>}, {pipeline_mode = #tpu.pipeline_mode<synchronous>, transform_indices = @transform_17, window_bounds = array<i64: 68, 2>}]} {
    %c0 = arith.constant 0 : index
    %c0_0 = arith.constant 0 : index
    %0 = vector.load %arg1[%c0, %c0_0] : memref<16x256xbf16, #tpu.memory_space<vmem>>, vector<16x256xbf16>
    %c0_1 = arith.constant 0 : index
    %c0_2 = arith.constant 0 : index
    %1 = vector.load %arg3[%c0_1, %c0_2] : memref<256x162xbf16, #tpu.memory_space<vmem>>, vector<256x162xbf16>
    %cst = arith.constant dense<0.000000e+00> : vector<16x162xf32>
    %2 = tpu.matmul %0, %1, %cst {dimension_numbers = #tpu.dot_dimension_numbers<[1], [0], [0], [1], [0, 0, 1, 1], [], []>} : vector<16x256xbf16>, vector<256x162xbf16>, vector<16x162xf32> -> vector<16x162xf32>
    %c0_3 = arith.constant 0 : index
    %c0_4 = arith.constant 0 : index
    %3 = vector.load %arg2[%c0_3, %c0_4] : memref<16x1xf32, #tpu.memory_space<vmem>>, vector<16x1xf32>
    %4 = vector.broadcast %3 : vector<16x1xf32> to vector<16x162xf32>
    %5 = arith.addf %2, %4 : vector<16x162xf32>
    %cst_5 = arith.constant 0.000000e+00 : f32
    %6 = vector.broadcast %cst_5 : f32 to vector<16x162xf32>
    %7 = arith.maximumf %5, %6 : vector<16x162xf32>
    %8 = arith.truncf %7 : vector<16x162xf32> to vector<16x162xbf16>
    %cst_6 = arith.constant 0.000000e+00 : f32
    %9 = vector.broadcast %cst_6 : f32 to vector<32x18xf32>
    %c0_7 = arith.constant 0 : index
    %c0_8 = arith.constant 0 : index
    %c0_9 = arith.constant 0 : index
    %10 = vector.load %arg4[%c0_7, %c0_8, %c0_9] : memref<9x32x16xbf16, #tpu.memory_space<vmem>>, vector<1x32x16xbf16>
    %11 = vector.shape_cast %10 : vector<1x32x16xbf16> to vector<32x16xbf16>
    %12 = vector.extract_strided_slice %8 {offsets = [0, 0], sizes = [16, 18], strides = [1, 1]} : vector<16x162xbf16> to vector<16x18xbf16>
    %cst_10 = arith.constant dense<0.000000e+00> : vector<32x18xf32>
    %13 = tpu.matmul %11, %12, %cst_10 {dimension_numbers = #tpu.dot_dimension_numbers<[1], [0], [0], [1], [0, 0, 1, 1], [], []>} : vector<32x16xbf16>, vector<16x18xbf16>, vector<32x18xf32> -> vector<32x18xf32>
    %14 = arith.addf %9, %13 : vector<32x18xf32>
    %c1 = arith.constant 1 : index
    %c0_11 = arith.constant 0 : index
    %c0_12 = arith.constant 0 : index
    %15 = vector.load %arg4[%c1, %c0_11, %c0_12] : memref<9x32x16xbf16, #tpu.memory_space<vmem>>, vector<1x32x16xbf16>
    %16 = vector.shape_cast %15 : vector<1x32x16xbf16> to vector<32x16xbf16>
    %17 = vector.extract_strided_slice %8 {offsets = [0, 18], sizes = [16, 18], strides = [1, 1]} : vector<16x162xbf16> to vector<16x18xbf16>
    %cst_13 = arith.constant dense<0.000000e+00> : vector<32x18xf32>
    %18 = tpu.matmul %16, %17, %cst_13 {dimension_numbers = #tpu.dot_dimension_numbers<[1], [0], [0], [1], [0, 0, 1, 1], [], []>} : vector<32x16xbf16>, vector<16x18xbf16>, vector<32x18xf32> -> vector<32x18xf32>
    %19 = arith.addf %14, %18 : vector<32x18xf32>
    %c2 = arith.constant 2 : index
    %c0_14 = arith.constant 0 : index
    %c0_15 = arith.constant 0 : index
    %20 = vector.load %arg4[%c2, %c0_14, %c0_15] : memref<9x32x16xbf16, #tpu.memory_space<vmem>>, vector<1x32x16xbf16>
    %21 = vector.shape_cast %20 : vector<1x32x16xbf16> to vector<32x16xbf16>
    %22 = vector.extract_strided_slice %8 {offsets = [0, 36], sizes = [16, 18], strides = [1, 1]} : vector<16x162xbf16> to vector<16x18xbf16>
    %cst_16 = arith.constant dense<0.000000e+00> : vector<32x18xf32>
    %23 = tpu.matmul %21, %22, %cst_16 {dimension_numbers = #tpu.dot_dimension_numbers<[1], [0], [0], [1], [0, 0, 1, 1], [], []>} : vector<32x16xbf16>, vector<16x18xbf16>, vector<32x18xf32> -> vector<32x18xf32>
    %24 = arith.addf %19, %23 : vector<32x18xf32>
    %c3 = arith.constant 3 : index
    %c0_17 = arith.constant 0 : index
    %c0_18 = arith.constant 0 : index
    %25 = vector.load %arg4[%c3, %c0_17, %c0_18] : memref<9x32x16xbf16, #tpu.memory_space<vmem>>, vector<1x32x16xbf16>
    %26 = vector.shape_cast %25 : vector<1x32x16xbf16> to vector<32x16xbf16>
    %27 = vector.extract_strided_slice %8 {offsets = [0, 54], sizes = [16, 18], strides = [1, 1]} : vector<16x162xbf16> to vector<16x18xbf16>
    %cst_19 = arith.constant dense<0.000000e+00> : vector<32x18xf32>
    %28 = tpu.matmul %26, %27, %cst_19 {dimension_numbers = #tpu.dot_dimension_numbers<[1], [0], [0], [1], [0, 0, 1, 1], [], []>} : vector<32x16xbf16>, vector<16x18xbf16>, vector<32x18xf32> -> vector<32x18xf32>
    %29 = arith.addf %24, %28 : vector<32x18xf32>
    %c4 = arith.constant 4 : index
    %c0_20 = arith.constant 0 : index
    %c0_21 = arith.constant 0 : index
    %30 = vector.load %arg4[%c4, %c0_20, %c0_21] : memref<9x32x16xbf16, #tpu.memory_space<vmem>>, vector<1x32x16xbf16>
    %31 = vector.shape_cast %30 : vector<1x32x16xbf16> to vector<32x16xbf16>
    %32 = vector.extract_strided_slice %8 {offsets = [0, 72], sizes = [16, 18], strides = [1, 1]} : vector<16x162xbf16> to vector<16x18xbf16>
    %cst_22 = arith.constant dense<0.000000e+00> : vector<32x18xf32>
    %33 = tpu.matmul %31, %32, %cst_22 {dimension_numbers = #tpu.dot_dimension_numbers<[1], [0], [0], [1], [0, 0, 1, 1], [], []>} : vector<32x16xbf16>, vector<16x18xbf16>, vector<32x18xf32> -> vector<32x18xf32>
    %34 = arith.addf %29, %33 : vector<32x18xf32>
    %c5 = arith.constant 5 : index
    %c0_23 = arith.constant 0 : index
    %c0_24 = arith.constant 0 : index
    %35 = vector.load %arg4[%c5, %c0_23, %c0_24] : memref<9x32x16xbf16, #tpu.memory_space<vmem>>, vector<1x32x16xbf16>
    %36 = vector.shape_cast %35 : vector<1x32x16xbf16> to vector<32x16xbf16>
    %37 = vector.extract_strided_slice %8 {offsets = [0, 90], sizes = [16, 18], strides = [1, 1]} : vector<16x162xbf16> to vector<16x18xbf16>
    %cst_25 = arith.constant dense<0.000000e+00> : vector<32x18xf32>
    %38 = tpu.matmul %36, %37, %cst_25 {dimension_numbers = #tpu.dot_dimension_numbers<[1], [0], [0], [1], [0, 0, 1, 1], [], []>} : vector<32x16xbf16>, vector<16x18xbf16>, vector<32x18xf32> -> vector<32x18xf32>
    %39 = arith.addf %34, %38 : vector<32x18xf32>
    %c6 = arith.constant 6 : index
    %c0_26 = arith.constant 0 : index
    %c0_27 = arith.constant 0 : index
    %40 = vector.load %arg4[%c6, %c0_26, %c0_27] : memref<9x32x16xbf16, #tpu.memory_space<vmem>>, vector<1x32x16xbf16>
    %41 = vector.shape_cast %40 : vector<1x32x16xbf16> to vector<32x16xbf16>
    %42 = vector.extract_strided_slice %8 {offsets = [0, 108], sizes = [16, 18], strides = [1, 1]} : vector<16x162xbf16> to vector<16x18xbf16>
    %cst_28 = arith.constant dense<0.000000e+00> : vector<32x18xf32>
    %43 = tpu.matmul %41, %42, %cst_28 {dimension_numbers = #tpu.dot_dimension_numbers<[1], [0], [0], [1], [0, 0, 1, 1], [], []>} : vector<32x16xbf16>, vector<16x18xbf16>, vector<32x18xf32> -> vector<32x18xf32>
    %44 = arith.addf %39, %43 : vector<32x18xf32>
    %c7 = arith.constant 7 : index
    %c0_29 = arith.constant 0 : index
    %c0_30 = arith.constant 0 : index
    %45 = vector.load %arg4[%c7, %c0_29, %c0_30] : memref<9x32x16xbf16, #tpu.memory_space<vmem>>, vector<1x32x16xbf16>
    %46 = vector.shape_cast %45 : vector<1x32x16xbf16> to vector<32x16xbf16>
    %47 = vector.extract_strided_slice %8 {offsets = [0, 126], sizes = [16, 18], strides = [1, 1]} : vector<16x162xbf16> to vector<16x18xbf16>
    %cst_31 = arith.constant dense<0.000000e+00> : vector<32x18xf32>
    %48 = tpu.matmul %46, %47, %cst_31 {dimension_numbers = #tpu.dot_dimension_numbers<[1], [0], [0], [1], [0, 0, 1, 1], [], []>} : vector<32x16xbf16>, vector<16x18xbf16>, vector<32x18xf32> -> vector<32x18xf32>
    %49 = arith.addf %44, %48 : vector<32x18xf32>
    %c8 = arith.constant 8 : index
    %c0_32 = arith.constant 0 : index
    %c0_33 = arith.constant 0 : index
    %50 = vector.load %arg4[%c8, %c0_32, %c0_33] : memref<9x32x16xbf16, #tpu.memory_space<vmem>>, vector<1x32x16xbf16>
    %51 = vector.shape_cast %50 : vector<1x32x16xbf16> to vector<32x16xbf16>
    %52 = vector.extract_strided_slice %8 {offsets = [0, 144], sizes = [16, 18], strides = [1, 1]} : vector<16x162xbf16> to vector<16x18xbf16>
    %cst_34 = arith.constant dense<0.000000e+00> : vector<32x18xf32>
    %53 = tpu.matmul %51, %52, %cst_34 {dimension_numbers = #tpu.dot_dimension_numbers<[1], [0], [0], [1], [0, 0, 1, 1], [], []>} : vector<32x16xbf16>, vector<16x18xbf16>, vector<32x18xf32> -> vector<32x18xf32>
    %54 = arith.addf %49, %53 : vector<32x18xf32>
    %c0_35 = arith.constant 0 : index
    %c0_36 = arith.constant 0 : index
    %55 = vector.load %arg5[%c0_35, %c0_36] : memref<32x1xf32, #tpu.memory_space<vmem>>, vector<32x1xf32>
    %56 = vector.broadcast %55 : vector<32x1xf32> to vector<32x18xf32>
    %57 = arith.addf %54, %56 : vector<32x18xf32>
    %cst_37 = arith.constant 0.000000e+00 : f32
    %58 = vector.broadcast %cst_37 : f32 to vector<32x18xf32>
    %59 = arith.maximumf %57, %58 : vector<32x18xf32>
    %60 = arith.truncf %59 : vector<32x18xf32> to vector<32x18xbf16>
    %cst_38 = arith.constant 0.000000e+00 : f32
    %61 = vector.broadcast %cst_38 : f32 to vector<64x2xf32>
    %c0_39 = arith.constant 0 : index
    %c0_40 = arith.constant 0 : index
    %c0_41 = arith.constant 0 : index
    %62 = vector.load %arg6[%c0_39, %c0_40, %c0_41] : memref<9x64x32xbf16, #tpu.memory_space<vmem>>, vector<1x64x32xbf16>
    %63 = vector.shape_cast %62 : vector<1x64x32xbf16> to vector<64x32xbf16>
    %64 = vector.extract_strided_slice %60 {offsets = [0, 0], sizes = [32, 2], strides = [1, 1]} : vector<32x18xbf16> to vector<32x2xbf16>
    %cst_42 = arith.constant dense<0.000000e+00> : vector<64x2xf32>
    %65 = tpu.matmul %63, %64, %cst_42 {dimension_numbers = #tpu.dot_dimension_numbers<[1], [0], [0], [1], [0, 0, 1, 1], [], []>} : vector<64x32xbf16>, vector<32x2xbf16>, vector<64x2xf32> -> vector<64x2xf32>
    %66 = arith.addf %61, %65 : vector<64x2xf32>
    %c1_43 = arith.constant 1 : index
    %c0_44 = arith.constant 0 : index
    %c0_45 = arith.constant 0 : index
    %67 = vector.load %arg6[%c1_43, %c0_44, %c0_45] : memref<9x64x32xbf16, #tpu.memory_space<vmem>>, vector<1x64x32xbf16>
    %68 = vector.shape_cast %67 : vector<1x64x32xbf16> to vector<64x32xbf16>
    %69 = vector.extract_strided_slice %60 {offsets = [0, 2], sizes = [32, 2], strides = [1, 1]} : vector<32x18xbf16> to vector<32x2xbf16>
    %cst_46 = arith.constant dense<0.000000e+00> : vector<64x2xf32>
    %70 = tpu.matmul %68, %69, %cst_46 {dimension_numbers = #tpu.dot_dimension_numbers<[1], [0], [0], [1], [0, 0, 1, 1], [], []>} : vector<64x32xbf16>, vector<32x2xbf16>, vector<64x2xf32> -> vector<64x2xf32>
    %71 = arith.addf %66, %70 : vector<64x2xf32>
    %c2_47 = arith.constant 2 : index
    %c0_48 = arith.constant 0 : index
    %c0_49 = arith.constant 0 : index
    %72 = vector.load %arg6[%c2_47, %c0_48, %c0_49] : memref<9x64x32xbf16, #tpu.memory_space<vmem>>, vector<1x64x32xbf16>
    %73 = vector.shape_cast %72 : vector<1x64x32xbf16> to vector<64x32xbf16>
    %74 = vector.extract_strided_slice %60 {offsets = [0, 4], sizes = [32, 2], strides = [1, 1]} : vector<32x18xbf16> to vector<32x2xbf16>
    %cst_50 = arith.constant dense<0.000000e+00> : vector<64x2xf32>
    %75 = tpu.matmul %73, %74, %cst_50 {dimension_numbers = #tpu.dot_dimension_numbers<[1], [0], [0], [1], [0, 0, 1, 1], [], []>} : vector<64x32xbf16>, vector<32x2xbf16>, vector<64x2xf32> -> vector<64x2xf32>
    %76 = arith.addf %71, %75 : vector<64x2xf32>
    %c3_51 = arith.constant 3 : index
    %c0_52 = arith.constant 0 : index
    %c0_53 = arith.constant 0 : index
    %77 = vector.load %arg6[%c3_51, %c0_52, %c0_53] : memref<9x64x32xbf16, #tpu.memory_space<vmem>>, vector<1x64x32xbf16>
    %78 = vector.shape_cast %77 : vector<1x64x32xbf16> to vector<64x32xbf16>
    %79 = vector.extract_strided_slice %60 {offsets = [0, 6], sizes = [32, 2], strides = [1, 1]} : vector<32x18xbf16> to vector<32x2xbf16>
    %cst_54 = arith.constant dense<0.000000e+00> : vector<64x2xf32>
    %80 = tpu.matmul %78, %79, %cst_54 {dimension_numbers = #tpu.dot_dimension_numbers<[1], [0], [0], [1], [0, 0, 1, 1], [], []>} : vector<64x32xbf16>, vector<32x2xbf16>, vector<64x2xf32> -> vector<64x2xf32>
    %81 = arith.addf %76, %80 : vector<64x2xf32>
    %c4_55 = arith.constant 4 : index
    %c0_56 = arith.constant 0 : index
    %c0_57 = arith.constant 0 : index
    %82 = vector.load %arg6[%c4_55, %c0_56, %c0_57] : memref<9x64x32xbf16, #tpu.memory_space<vmem>>, vector<1x64x32xbf16>
    %83 = vector.shape_cast %82 : vector<1x64x32xbf16> to vector<64x32xbf16>
    %84 = vector.extract_strided_slice %60 {offsets = [0, 8], sizes = [32, 2], strides = [1, 1]} : vector<32x18xbf16> to vector<32x2xbf16>
    %cst_58 = arith.constant dense<0.000000e+00> : vector<64x2xf32>
    %85 = tpu.matmul %83, %84, %cst_58 {dimension_numbers = #tpu.dot_dimension_numbers<[1], [0], [0], [1], [0, 0, 1, 1], [], []>} : vector<64x32xbf16>, vector<32x2xbf16>, vector<64x2xf32> -> vector<64x2xf32>
    %86 = arith.addf %81, %85 : vector<64x2xf32>
    %c5_59 = arith.constant 5 : index
    %c0_60 = arith.constant 0 : index
    %c0_61 = arith.constant 0 : index
    %87 = vector.load %arg6[%c5_59, %c0_60, %c0_61] : memref<9x64x32xbf16, #tpu.memory_space<vmem>>, vector<1x64x32xbf16>
    %88 = vector.shape_cast %87 : vector<1x64x32xbf16> to vector<64x32xbf16>
    %89 = vector.extract_strided_slice %60 {offsets = [0, 10], sizes = [32, 2], strides = [1, 1]} : vector<32x18xbf16> to vector<32x2xbf16>
    %cst_62 = arith.constant dense<0.000000e+00> : vector<64x2xf32>
    %90 = tpu.matmul %88, %89, %cst_62 {dimension_numbers = #tpu.dot_dimension_numbers<[1], [0], [0], [1], [0, 0, 1, 1], [], []>} : vector<64x32xbf16>, vector<32x2xbf16>, vector<64x2xf32> -> vector<64x2xf32>
    %91 = arith.addf %86, %90 : vector<64x2xf32>
    %c6_63 = arith.constant 6 : index
    %c0_64 = arith.constant 0 : index
    %c0_65 = arith.constant 0 : index
    %92 = vector.load %arg6[%c6_63, %c0_64, %c0_65] : memref<9x64x32xbf16, #tpu.memory_space<vmem>>, vector<1x64x32xbf16>
    %93 = vector.shape_cast %92 : vector<1x64x32xbf16> to vector<64x32xbf16>
    %94 = vector.extract_strided_slice %60 {offsets = [0, 12], sizes = [32, 2], strides = [1, 1]} : vector<32x18xbf16> to vector<32x2xbf16>
    %cst_66 = arith.constant dense<0.000000e+00> : vector<64x2xf32>
    %95 = tpu.matmul %93, %94, %cst_66 {dimension_numbers = #tpu.dot_dimension_numbers<[1], [0], [0], [1], [0, 0, 1, 1], [], []>} : vector<64x32xbf16>, vector<32x2xbf16>, vector<64x2xf32> -> vector<64x2xf32>
    %96 = arith.addf %91, %95 : vector<64x2xf32>
    %c7_67 = arith.constant 7 : index
    %c0_68 = arith.constant 0 : index
    %c0_69 = arith.constant 0 : index
    %97 = vector.load %arg6[%c7_67, %c0_68, %c0_69] : memref<9x64x32xbf16, #tpu.memory_space<vmem>>, vector<1x64x32xbf16>
    %98 = vector.shape_cast %97 : vector<1x64x32xbf16> to vector<64x32xbf16>
    %99 = vector.extract_strided_slice %60 {offsets = [0, 14], sizes = [32, 2], strides = [1, 1]} : vector<32x18xbf16> to vector<32x2xbf16>
    %cst_70 = arith.constant dense<0.000000e+00> : vector<64x2xf32>
    %100 = tpu.matmul %98, %99, %cst_70 {dimension_numbers = #tpu.dot_dimension_numbers<[1], [0], [0], [1], [0, 0, 1, 1], [], []>} : vector<64x32xbf16>, vector<32x2xbf16>, vector<64x2xf32> -> vector<64x2xf32>
    %101 = arith.addf %96, %100 : vector<64x2xf32>
    %c8_71 = arith.constant 8 : index
    %c0_72 = arith.constant 0 : index
    %c0_73 = arith.constant 0 : index
    %102 = vector.load %arg6[%c8_71, %c0_72, %c0_73] : memref<9x64x32xbf16, #tpu.memory_space<vmem>>, vector<1x64x32xbf16>
    %103 = vector.shape_cast %102 : vector<1x64x32xbf16> to vector<64x32xbf16>
    %104 = vector.extract_strided_slice %60 {offsets = [0, 16], sizes = [32, 2], strides = [1, 1]} : vector<32x18xbf16> to vector<32x2xbf16>
    %cst_74 = arith.constant dense<0.000000e+00> : vector<64x2xf32>
    %105 = tpu.matmul %103, %104, %cst_74 {dimension_numbers = #tpu.dot_dimension_numbers<[1], [0], [0], [1], [0, 0, 1, 1], [], []>} : vector<64x32xbf16>, vector<32x2xbf16>, vector<64x2xf32> -> vector<64x2xf32>
    %106 = arith.addf %101, %105 : vector<64x2xf32>
    %c0_75 = arith.constant 0 : index
    %c0_76 = arith.constant 0 : index
    %107 = vector.load %arg7[%c0_75, %c0_76] : memref<64x1xf32, #tpu.memory_space<vmem>>, vector<64x1xf32>
    %108 = vector.broadcast %107 : vector<64x1xf32> to vector<64x2xf32>
    %109 = arith.addf %106, %108 : vector<64x2xf32>
    %cst_77 = arith.constant 0.000000e+00 : f32
    %110 = vector.broadcast %cst_77 : f32 to vector<64x2xf32>
    %111 = arith.maximumf %109, %110 : vector<64x2xf32>
    %112 = arith.truncf %111 : vector<64x2xf32> to vector<64x2xbf16>
    %c0_78 = arith.constant 0 : index
    %c0_79 = arith.constant 0 : index
    %113 = vector.load %arg8[%c0_78, %c0_79] : memref<64x64xbf16, #tpu.memory_space<vmem>>, vector<64x64xbf16>
    %cst_80 = arith.constant dense<0.000000e+00> : vector<64x2xf32>
    %114 = tpu.matmul %113, %112, %cst_80 {dimension_numbers = #tpu.dot_dimension_numbers<[1], [0], [0], [1], [0, 0, 1, 1], [], []>} : vector<64x64xbf16>, vector<64x2xbf16>, vector<64x2xf32> -> vector<64x2xf32>
    %c0_81 = arith.constant 0 : index
    %c0_82 = arith.constant 0 : index
    %115 = vector.load %arg9[%c0_81, %c0_82] : memref<64x1xf32, #tpu.memory_space<vmem>>, vector<64x1xf32>
    %116 = vector.broadcast %115 : vector<64x1xf32> to vector<64x2xf32>
    %117 = arith.addf %114, %116 : vector<64x2xf32>
    %cst_83 = arith.constant 0.000000e+00 : f32
    %118 = vector.broadcast %cst_83 : f32 to vector<64x2xf32>
    %119 = arith.maximumf %117, %118 : vector<64x2xf32>
    %120 = arith.truncf %119 : vector<64x2xf32> to vector<64x2xbf16>
    %c0_84 = arith.constant 0 : index
    %c0_85 = arith.constant 0 : index
    %121 = vector.load %arg10[%c0_84, %c0_85] : memref<3x64xbf16, #tpu.memory_space<vmem>>, vector<3x64xbf16>
    %cst_86 = arith.constant dense<0.000000e+00> : vector<3x2xf32>
    %122 = tpu.matmul %121, %120, %cst_86 {dimension_numbers = #tpu.dot_dimension_numbers<[1], [0], [0], [1], [0, 0, 1, 1], [], []>} : vector<3x64xbf16>, vector<64x2xbf16>, vector<3x2xf32> -> vector<3x2xf32>
    %c0_87 = arith.constant 0 : index
    %c0_88 = arith.constant 0 : index
    %123 = vector.load %arg11[%c0_87, %c0_88] : memref<3x1xf32, #tpu.memory_space<vmem>>, vector<3x1xf32>
    %124 = vector.broadcast %123 : vector<3x1xf32> to vector<3x2xf32>
    %125 = arith.addf %122, %124 : vector<3x2xf32>
    %c0_89 = arith.constant 0 : index
    %c0_90 = arith.constant 0 : index
    %126 = vector.load %arg12[%c0_89, %c0_90] : memref<3x64xbf16, #tpu.memory_space<vmem>>, vector<3x64xbf16>
    %cst_91 = arith.constant dense<0.000000e+00> : vector<3x2xf32>
    %127 = tpu.matmul %126, %120, %cst_91 {dimension_numbers = #tpu.dot_dimension_numbers<[1], [0], [0], [1], [0, 0, 1, 1], [], []>} : vector<3x64xbf16>, vector<64x2xbf16>, vector<3x2xf32> -> vector<3x2xf32>
    %c0_92 = arith.constant 0 : index
    %c0_93 = arith.constant 0 : index
    %128 = vector.load %arg13[%c0_92, %c0_93] : memref<3x1xf32, #tpu.memory_space<vmem>>, vector<3x1xf32>
    %129 = vector.broadcast %128 : vector<3x1xf32> to vector<3x2xf32>
    %130 = arith.addf %127, %129 : vector<3x2xf32>
    %cst_94 = arith.constant -2.000000e+01 : f32
    %cst_95 = arith.constant 2.000000e+00 : f32
    %131 = vector.broadcast %cst_94 : f32 to vector<3x2xf32>
    %132 = arith.maximumf %131, %130 : vector<3x2xf32>
    %133 = vector.broadcast %cst_95 : f32 to vector<3x2xf32>
    %134 = arith.minimumf %133, %132 : vector<3x2xf32>
    %135 = math.exp %134 : vector<3x2xf32>
    %c0_96 = arith.constant 0 : index
    %c0_97 = arith.constant 0 : index
    %136 = vector.load %arg14[%c0_96, %c0_97] : memref<3x2xf32, #tpu.memory_space<vmem>>, vector<3x2xf32>
    %137 = arith.mulf %135, %136 : vector<3x2xf32>
    %138 = arith.addf %125, %137 : vector<3x2xf32>
    %cst_98 = arith.constant -5.000000e-01 : f32
    %139 = vector.broadcast %cst_98 : f32 to vector<3x2xf32>
    %140 = arith.mulf %139, %136 : vector<3x2xf32>
    %141 = arith.mulf %140, %136 : vector<3x2xf32>
    %142 = arith.subf %141, %134 : vector<3x2xf32>
    %cst_99 = arith.constant 0.918938517 : f32
    %143 = vector.broadcast %cst_99 : f32 to vector<3x2xf32>
    %144 = arith.subf %142, %143 : vector<3x2xf32>
    %cst_100 = arith.constant -2.000000e+00 : f32
    %145 = vector.broadcast %cst_100 : f32 to vector<3x2xf32>
    %146 = arith.mulf %145, %138 : vector<3x2xf32>
    %cst_101 = arith.constant 0.000000e+00 : f32
    %147 = vector.broadcast %cst_101 : f32 to vector<3x2xf32>
    %148 = arith.maximumf %146, %147 : vector<3x2xf32>
    %149 = math.absf %146 : vector<3x2xf32>
    %cst_102 = arith.constant 0.000000e+00 : f32
    %150 = vector.broadcast %cst_102 : f32 to vector<3x2xf32>
    %151 = arith.subf %150, %149 : vector<3x2xf32>
    %152 = math.exp %151 : vector<3x2xf32>
    %cst_103 = arith.constant 1.000000e+00 : f32
    %153 = vector.broadcast %cst_103 : f32 to vector<3x2xf32>
    %154 = arith.addf %153, %152 : vector<3x2xf32>
    %155 = math.log %154 : vector<3x2xf32>
    %156 = arith.addf %148, %155 : vector<3x2xf32>
    %cst_104 = arith.constant 0.693147182 : f32
    %157 = vector.broadcast %cst_104 : f32 to vector<3x2xf32>
    %158 = arith.subf %157, %138 : vector<3x2xf32>
    %159 = arith.subf %158, %156 : vector<3x2xf32>
    %cst_105 = arith.constant 2.000000e+00 : f32
    %160 = vector.broadcast %cst_105 : f32 to vector<3x2xf32>
    %161 = arith.mulf %160, %159 : vector<3x2xf32>
    %162 = arith.subf %144, %161 : vector<3x2xf32>
    %cst_106 = arith.constant dense<0.000000e+00> : vector<2xf32>
    %163 = vector.multi_reduction <add>, %162, %cst_106 [0] : vector<3x2xf32> to vector<2xf32>
    %164 = vector.shape_cast %163 : vector<2xf32> to vector<1x2xf32>
    %c0_107 = arith.constant 0 : index
    %c0_108 = arith.constant 0 : index
    %165 = vector.load %arg15[%c0_107, %c0_108] : memref<3x1xf32, #tpu.memory_space<vmem>>, vector<3x1xf32>
    %166 = math.tanh %138 : vector<3x2xf32>
    %167 = vector.broadcast %165 : vector<3x1xf32> to vector<3x2xf32>
    %168 = arith.mulf %167, %166 : vector<3x2xf32>
    %c0_109 = arith.constant 0 : index
    %c0_110 = arith.constant 0 : index
    %169 = vector.load %arg16[%c0_109, %c0_110] : memref<3x1xf32, #tpu.memory_space<vmem>>, vector<3x1xf32>
    %170 = vector.broadcast %169 : vector<3x1xf32> to vector<3x2xf32>
    %171 = arith.mulf %168, %170 : vector<3x2xf32>
    %c0_111 = arith.constant 0 : index
    %c0_112 = arith.constant 0 : index
    %172 = vector.load %arg17[%c0_111, %c0_112] : memref<3x1xf32, #tpu.memory_space<vmem>>, vector<3x1xf32>
    %173 = vector.broadcast %172 : vector<3x1xf32> to vector<3x2xf32>
    %174 = arith.addf %171, %173 : vector<3x2xf32>
    %175 = tpu.concatenate %174, %164, %111 in 0 : vector<3x2xf32>, vector<1x2xf32>, vector<64x2xf32> -> vector<68x2xf32>
    %c0_113 = arith.constant 0 : index
    %c0_114 = arith.constant 0 : index
    %176 = vector.load %arg18[%c0_113, %c0_114] : memref<68x2xf32, #tpu.memory_space<vmem>>, vector<68x2xf32>
    tpu.vector_store %arg18[%c0_113, %c0_114], %175 {strides = array<i32>} : memref<68x2xf32, #tpu.memory_space<vmem>>, vector<68x2xf32>,
    return
  }
  func.func @transform_0(%arg0: i32) -> (i32, i32) {
    %c0_i32 = arith.constant 0 : i32
    %c0_i32_0 = arith.constant 0 : i32
    %c0_i32_1 = arith.constant 0 : i32
    return %c0_i32, %c0_i32_0 : i32, i32
  }
  func.func @transform_1(%arg0: i32) -> (i32, i32) {
    %c0_i32 = arith.constant 0 : i32
    %c0_i32_0 = arith.constant 0 : i32
    %c0_i32_1 = arith.constant 0 : i32
    return %c0_i32, %c0_i32_0 : i32, i32
  }
  func.func @transform_2(%arg0: i32) -> (i32, i32) {
    %c0_i32 = arith.constant 0 : i32
    %c0_i32_0 = arith.constant 0 : i32
    %c0_i32_1 = arith.constant 0 : i32
    return %c0_i32, %c0_i32_0 : i32, i32
  }
  func.func @transform_3(%arg0: i32) -> (i32, i32, i32) {
    %c0_i32 = arith.constant 0 : i32
    %c0_i32_0 = arith.constant 0 : i32
    %c0_i32_1 = arith.constant 0 : i32
    %c0_i32_2 = arith.constant 0 : i32
    return %c0_i32, %c0_i32_0, %c0_i32_1 : i32, i32, i32
  }
  func.func @transform_4(%arg0: i32) -> (i32, i32) {
    %c0_i32 = arith.constant 0 : i32
    %c0_i32_0 = arith.constant 0 : i32
    %c0_i32_1 = arith.constant 0 : i32
    return %c0_i32, %c0_i32_0 : i32, i32
  }
  func.func @transform_5(%arg0: i32) -> (i32, i32, i32) {
    %c0_i32 = arith.constant 0 : i32
    %c0_i32_0 = arith.constant 0 : i32
    %c0_i32_1 = arith.constant 0 : i32
    %c0_i32_2 = arith.constant 0 : i32
    return %c0_i32, %c0_i32_0, %c0_i32_1 : i32, i32, i32
  }
  func.func @transform_6(%arg0: i32) -> (i32, i32) {
    %c0_i32 = arith.constant 0 : i32
    %c0_i32_0 = arith.constant 0 : i32
    %c0_i32_1 = arith.constant 0 : i32
    return %c0_i32, %c0_i32_0 : i32, i32
  }
  func.func @transform_7(%arg0: i32) -> (i32, i32) {
    %c0_i32 = arith.constant 0 : i32
    %c0_i32_0 = arith.constant 0 : i32
    %c0_i32_1 = arith.constant 0 : i32
    return %c0_i32, %c0_i32_0 : i32, i32
  }
  func.func @transform_8(%arg0: i32) -> (i32, i32) {
    %c0_i32 = arith.constant 0 : i32
    %c0_i32_0 = arith.constant 0 : i32
    %c0_i32_1 = arith.constant 0 : i32
    return %c0_i32, %c0_i32_0 : i32, i32
  }
  func.func @transform_9(%arg0: i32) -> (i32, i32) {
    %c0_i32 = arith.constant 0 : i32
    %c0_i32_0 = arith.constant 0 : i32
    %c0_i32_1 = arith.constant 0 : i32
    return %c0_i32, %c0_i32_0 : i32, i32
  }
  func.func @transform_10(%arg0: i32) -> (i32, i32) {
    %c0_i32 = arith.constant 0 : i32
    %c0_i32_0 = arith.constant 0 : i32
    %c0_i32_1 = arith.constant 0 : i32
    return %c0_i32, %c0_i32_0 : i32, i32
  }
  func.func @transform_11(%arg0: i32) -> (i32, i32) {
    %c0_i32 = arith.constant 0 : i32
    %c0_i32_0 = arith.constant 0 : i32
    %c0_i32_1 = arith.constant 0 : i32
    return %c0_i32, %c0_i32_0 : i32, i32
  }
  func.func @transform_12(%arg0: i32) -> (i32, i32) {
    %c0_i32 = arith.constant 0 : i32
    %c0_i32_0 = arith.constant 0 : i32
    %c0_i32_1 = arith.constant 0 : i32
    return %c0_i32, %c0_i32_0 : i32, i32
  }
  func.func @transform_13(%arg0: i32) -> (i32, i32) {
    %c0_i32 = arith.constant 0 : i32
    %c0_i32_0 = arith.constant 0 : i32
    %c0_i32_1 = arith.constant 0 : i32
    return %c0_i32, %c0_i32_0 : i32, i32
  }
  func.func @transform_14(%arg0: i32) -> (i32, i32) {
    %c0_i32 = arith.constant 0 : i32
    %c0_i32_0 = arith.constant 0 : i32
    %c0_i32_1 = arith.constant 0 : i32
    return %c0_i32, %c0_i32_0 : i32, i32
  }
  func.func @transform_15(%arg0: i32) -> (i32, i32) {
    %c0_i32 = arith.constant 0 : i32
    %c0_i32_0 = arith.constant 0 : i32
    %c0_i32_1 = arith.constant 0 : i32
    return %c0_i32, %c0_i32_0 : i32, i32
  }
  func.func @transform_16(%arg0: i32) -> (i32, i32) {
    %c0_i32 = arith.constant 0 : i32
    %c0_i32_0 = arith.constant 0 : i32
    %c0_i32_1 = arith.constant 0 : i32
    return %c0_i32, %c0_i32_0 : i32, i32
  }
  func.func @transform_17(%arg0: i32) -> (i32, i32) {
    %c0_i32 = arith.constant 0 : i32
    %c0_i32_0 = arith.constant 0 : i32
    %c0_i32_1 = arith.constant 0 : i32
    return %c0_i32, %c0_i32_0 : i32, i32
  }
}

</mosaic_0001>

<llo_original>
// kernel: actor_forward.2
$region0: #{actor_forward.2}
  #allocation0 [shape = 'u32[]', space=smem, size = 0x4, offset = 0x4, fixed_abs, tag = 'smem constant byte address 0x4 - core index']
  #allocation1 [shape = 'u32[72,128]{1,0:T(1,128)}', space=vmem, size = 0x9000, scoped, tag = 'internal scratch']
  %s0 = inlined_call_operand.vmem [shape: bf16[8,256], index: 0, kind: input, shape index: {}]
  %s1 = inlined_call_operand.vmem [shape: f32[8,1], index: 1, kind: input, shape index: {}]
  %s2 = inlined_call_operand.vmem [shape: bf16[256,1152], index: 2, kind: input, shape index: {}]
  %s3 = inlined_call_operand.vmem [shape: bf16[8,1152], index: 3, kind: output, shape index: {}]
  %s4 = sld [smem:[#allocation0]]
  $region22: #{actor_forward.2} parent=0
    _
  %s6 = ssub.s32 1, %s4
  %s7 = scalar_select 0, %s6, %s4
  // Predicated region
  $region2: #{actor_forward.2} parent=0 // pred_check
    _
  $region3: #{actor_forward.2} parent=0 // pred_check_branch
    %9 = sbr.rel (0) target = $region5
  $region4: #{actor_forward.2} parent=0 // pred_region
    _
  $region5: #{actor_forward.2} parent=0 // pred_fallthru
    _
  // Predicated region
  $region6: #{actor_forward.2} parent=0 // pred_check
    _
  $region7: #{actor_forward.2} parent=0 // pred_check_branch
    %11 = sbr.rel (0) target = $region9
  $region8: #{actor_forward.2} parent=0 // pred_region
    _
  $region9: #{actor_forward.2} parent=0 // pred_fallthru
    _
  // Predicated region
  $region10: #{actor_forward.2} parent=0 // pred_check
    _
  $region11: #{actor_forward.2} parent=0 // pred_check_branch
    %13 = sbr.rel (0) target = $region13
  $region12: #{actor_forward.2} parent=0 // pred_region
    _
  $region13: #{actor_forward.2} parent=0 // pred_fallthru
    _
  %v14 = vld [vmem:[%s0] sm:$0xff]
  %v15 = vld [vmem:[%s2] sm:$0xff]
  %v16 = vld [vmem:[%s2 + $0x8] sm:$0xff]
  %v17 = vld [vmem:[%s2 + $0x10] sm:$0xff]
  %v18 = vld [vmem:[%s2 + $0x18] sm:$0xff]
  %v19 = vld [vmem:[%s2 + $0x20] sm:$0xf]
  %v20 = vld [vmem:[%s2 + $0x24] sm:$0xff]
  %v21 = vld [vmem:[%s2 + $0x2c] sm:$0xff]
  %v22 = vld [vmem:[%s2 + $0x34] sm:$0xff]
  %v23 = vld [vmem:[%s2 + $0x3c] sm:$0xff]
  %v24 = vld [vmem:[%s2 + $0x44] sm:$0xf]
  %v25 = vld [vmem:[%s2 + $0x48] sm:$0xff]
  %v26 = vld [vmem:[%s2 + $0x50] sm:$0xff]
  %v27 = vld [vmem:[%s2 + $0x58] sm:$0xff]
  %v28 = vld [vmem:[%s2 + $0x60] sm:$0xff]
  %v29 = vld [vmem:[%s2 + $0x68] sm:$0xf]
  %v30 = vld [vmem:[%s2 + $0x6c] sm:$0xff]
  %v31 = vld [vmem:[%s2 + $0x74] sm:$0xff]
  %v32 = vld [vmem:[%s2 + $0x7c] sm:$0xff]
  %v33 = vld [vmem:[%s2 + $0x84] sm:$0xff]
  %v34 = vld [vmem:[%s2 + $0x8c] sm:$0xf]
  %v35 = vld [vmem:[%s2 + $0x90] sm:$0xff]
  %v36 = vld [vmem:[%s2 + $0x98] sm:$0xff]
  %v37 = vld [vmem:[%s2 + $0xa0] sm:$0xff]
  %v38 = vld [vmem:[%s2 + $0xa8] sm:$0xff]
  %v39 = vld [vmem:[%s2 + $0xb0] sm:$0xf]
  %v40 = vld [vmem:[%s2 + $0xb4] sm:$0xff]
  %v41 = vld [vmem:[%s2 + $0xbc] sm:$0xff]
  %v42 = vld [vmem:[%s2 + $0xc4] sm:$0xff]
  %v43 = vld [vmem:[%s2 + $0xcc] sm:$0xff]
  %v44 = vld [vmem:[%s2 + $0xd4] sm:$0xf]
  %v45 = vld [vmem:[%s2 + $0xd8] sm:$0xff]
  %v46 = vld [vmem:[%s2 + $0xe0] sm:$0xff]
  %v47 = vld [vmem:[%s2 + $0xe8] sm:$0xff]
  %v48 = vld [vmem:[%s2 + $0xf0] sm:$0xff]
  %v49 = vld [vmem:[%s2 + $0xf8] sm:$0xf]
  %v50 = vld [vmem:[%s2 + $0xfc] sm:$0xff]
  %v51 = vld [vmem:[%s2 + $0x104] sm:$0xff]
  %v52 = vld [vmem:[%s2 + $0x10c] sm:$0xff]
  %v53 = vld [vmem:[%s2 + $0x114] sm:$0xff]
  %v54 = vld [vmem:[%s2 + $0x11c] sm:$0xf]
  %v55 = vld [vmem:[%s2 + $0x120] sm:$0xff]
  %v56 = vld [vmem:[%s2 + $0x128] sm:$0xff]
  %v57 = vld [vmem:[%s2 + $0x130] sm:$0xff]
  %v58 = vld [vmem:[%s2 + $0x138] sm:$0xff]
  %v59 = vld [vmem:[%s2 + $0x140] sm:$0xf]
  %v60 = vld [vmem:[%s2 + $0x144] sm:$0xff]
  %v61 = vld [vmem:[%s2 + $0x14c] sm:$0xff]
  %v62 = vld [vmem:[%s2 + $0x154] sm:$0xff]
  %v63 = vld [vmem:[%s2 + $0x15c] sm:$0xff]
  %v64 = vld [vmem:[%s2 + $0x164] sm:$0xf]
  %v65 = vld [vmem:[%s2 + $0x168] sm:$0xff]
  %v66 = vld [vmem:[%s2 + $0x170] sm:$0xff]
  %v67 = vld [vmem:[%s2 + $0x178] sm:$0xff]
  %v68 = vld [vmem:[%s2 + $0x180] sm:$0xff]
  %v69 = vld [vmem:[%s2 + $0x188] sm:$0xf]
  %v70 = vld [vmem:[%s2 + $0x18c] sm:$0xff]
  %v71 = vld [vmem:[%s2 + $0x194] sm:$0xff]
  %v72 = vld [vmem:[%s2 + $0x19c] sm:$0xff]
  %v73 = vld [vmem:[%s2 + $0x1a4] sm:$0xff]
  %v74 = vld [vmem:[%s2 + $0x1ac] sm:$0xf]
  %v75 = vld [vmem:[%s2 + $0x1b0] sm:$0xff]
  %v76 = vld [vmem:[%s2 + $0x1b8] sm:$0xff]
  %v77 = vld [vmem:[%s2 + $0x1c0] sm:$0xff]
  %v78 = vld [vmem:[%s2 + $0x1c8] sm:$0xff]
  %v79 = vld [vmem:[%s2 + $0x1d0] sm:$0xf]
  %v80 = vld [vmem:[%s2 + $0x1d4] sm:$0xff]
  %v81 = vld [vmem:[%s2 + $0x1dc] sm:$0xff]
  %v82 = vld [vmem:[%s2 + $0x1e4] sm:$0xff]
  %v83 = vld [vmem:[%s2 + $0x1ec] sm:$0xff]
  %v84 = vld [vmem:[%s2 + $0x1f4] sm:$0xf]
  %v85 = vld [vmem:[%s2 + $0x1f8] sm:$0xff]
  %v86 = vld [vmem:[%s2 + $0x200] sm:$0xff]
  %v87 = vld [vmem:[%s2 + $0x208] sm:$0xff]
  %v88 = vld [vmem:[%s2 + $0x210] sm:$0xff]
  %v89 = vld [vmem:[%s2 + $0x218] sm:$0xf]
  %v90 = vld [vmem:[%s2 + $0x21c] sm:$0xff]
  %v91 = vld [vmem:[%s2 + $0x224] sm:$0xff]
  %v92 = vld [vmem:[%s2 + $0x22c] sm:$0xff]
  %v93 = vld [vmem:[%s2 + $0x234] sm:$0xff]
  %v94 = vld [vmem:[%s2 + $0x23c] sm:$0xf]
  %v95 = vld [vmem:[%s2 + $0x240] sm:$0xff]
  %v96 = vld [vmem:[%s2 + $0x248] sm:$0xff]
  %v97 = vld [vmem:[%s2 + $0x250] sm:$0xff]
  %v98 = vld [vmem:[%s2 + $0x258] sm:$0xff]
  %v99 = vld [vmem:[%s2 + $0x260] sm:$0xf]
  %v100 = vld [vmem:[%s2 + $0x264] sm:$0xff]
  %v101 = vld [vmem:[%s2 + $0x26c] sm:$0xff]
  %v102 = vld [vmem:[%s2 + $0x274] sm:$0xff]
  %v103 = vld [vmem:[%s2 + $0x27c] sm:$0xff]
  %v104 = vld [vmem:[%s2 + $0x284] sm:$0xf]
  %v105 = vld [vmem:[%s2 + $0x288] sm:$0xff]
  %v106 = vld [vmem:[%s2 + $0x290] sm:$0xff]
  %v107 = vld [vmem:[%s2 + $0x298] sm:$0xff]
  %v108 = vld [vmem:[%s2 + $0x2a0] sm:$0xff]
  %v109 = vld [vmem:[%s2 + $0x2a8] sm:$0xf]
  %v110 = vld [vmem:[%s2 + $0x2ac] sm:$0xff]
  %v111 = vld [vmem:[%s2 + $0x2b4] sm:$0xff]
  %v112 = vld [vmem:[%s2 + $0x2bc] sm:$0xff]
  %v113 = vld [vmem:[%s2 + $0x2c4] sm:$0xff]
  %v114 = vld [vmem:[%s2 + $0x2cc] sm:$0xf]
  %v115 = vld [vmem:[%s2 + $0x2d0] sm:$0xff]
  %v116 = vld [vmem:[%s2 + $0x2d8] sm:$0xff]
  %v117 = vld [vmem:[%s2 + $0x2e0] sm:$0xff]
  %v118 = vld [vmem:[%s2 + $0x2e8] sm:$0xff]
  %v119 = vld [vmem:[%s2 + $0x2f0] sm:$0xf]
  %v120 = vld [vmem:[%s2 + $0x2f4] sm:$0xff]
  %v121 = vld [vmem:[%s2 + $0x2fc] sm:$0xff]
  %v122 = vld [vmem:[%s2 + $0x304] sm:$0xff]
  %v123 = vld [vmem:[%s2 + $0x30c] sm:$0xff]
  %v124 = vld [vmem:[%s2 + $0x314] sm:$0xf]
  %v125 = vld [vmem:[%s2 + $0x318] sm:$0xff]
  %v126 = vld [vmem:[%s2 + $0x320] sm:$0xff]
  %v127 = vld [vmem:[%s2 + $0x328] sm:$0xff]
  %v128 = vld [vmem:[%s2 + $0x330] sm:$0xff]
  %v129 = vld [vmem:[%s2 + $0x338] sm:$0xf]
  %v130 = vld [vmem:[%s2 + $0x33c] sm:$0xff]
  %v131 = vld [vmem:[%s2 + $0x344] sm:$0xff]
  %v132 = vld [vmem:[%s2 + $0x34c] sm:$0xff]
  %v133 = vld [vmem:[%s2 + $0x354] sm:$0xff]
  %v134 = vld [vmem:[%s2 + $0x35c] sm:$0xf]
  %v135 = vld [vmem:[%s2 + $0x360] sm:$0xff]
  %v136 = vld [vmem:[%s2 + $0x368] sm:$0xff]
  %v137 = vld [vmem:[%s2 + $0x370] sm:$0xff]
  %v138 = vld [vmem:[%s2 + $0x378] sm:$0xff]
  %v139 = vld [vmem:[%s2 + $0x380] sm:$0xf]
  %v140 = vld [vmem:[%s2 + $0x384] sm:$0xff]
  %v141 = vld [vmem:[%s2 + $0x38c] sm:$0xff]
  %v142 = vld [vmem:[%s2 + $0x394] sm:$0xff]
  %v143 = vld [vmem:[%s2 + $0x39c] sm:$0xff]
  %v144 = vld [vmem:[%s2 + $0x3a4] sm:$0xf]
  %v145 = vld [vmem:[%s2 + $0x3a8] sm:$0xff]
  %v146 = vld [vmem:[%s2 + $0x3b0] sm:$0xff]
  %v147 = vld [vmem:[%s2 + $0x3b8] sm:$0xff]
  %v148 = vld [vmem:[%s2 + $0x3c0] sm:$0xff]
  %v149 = vld [vmem:[%s2 + $0x3c8] sm:$0xf]
  %v150 = vld [vmem:[%s2 + $0x3cc] sm:$0xff]
  %v151 = vld [vmem:[%s2 + $0x3d4] sm:$0xff]
  %v152 = vld [vmem:[%s2 + $0x3dc] sm:$0xff]
  %v153 = vld [vmem:[%s2 + $0x3e4] sm:$0xff]
  %v154 = vld [vmem:[%s2 + $0x3ec] sm:$0xf]
  %v155 = vld [vmem:[%s2 + $0x3f0] sm:$0xff]
  %v156 = vld [vmem:[%s2 + $0x3f8] sm:$0xff]
  %v157 = vld [vmem:[%s2 + $0x400] sm:$0xff]
  %v158 = vld [vmem:[%s2 + $0x408] sm:$0xff]
  %v159 = vld [vmem:[%s2 + $0x410] sm:$0xf]
  %v160 = vld [vmem:[%s2 + $0x414] sm:$0xff]
  %v161 = vld [vmem:[%s2 + $0x41c] sm:$0xff]
  %v162 = vld [vmem:[%s2 + $0x424] sm:$0xff]
  %v163 = vld [vmem:[%s2 + $0x42c] sm:$0xff]
  %v164 = vld [vmem:[%s2 + $0x434] sm:$0xf]
  %v165 = vld [vmem:[%s2 + $0x438] sm:$0xff]
  %v166 = vld [vmem:[%s2 + $0x440] sm:$0xff]
  %v167 = vld [vmem:[%s2 + $0x448] sm:$0xff]
  %v168 = vld [vmem:[%s2 + $0x450] sm:$0xff]
  %v169 = vld [vmem:[%s2 + $0x458] sm:$0xf]
  %v170 = vld [vmem:[%s2 + $0x45c] sm:$0xff]
  %v171 = vld [vmem:[%s2 + $0x464] sm:$0xff]
  %v172 = vld [vmem:[%s2 + $0x46c] sm:$0xff]
  %v173 = vld [vmem:[%s2 + $0x474] sm:$0xff]
  %v174 = vld [vmem:[%s2 + $0x47c] sm:$0xf]
  %v175 = vld [vmem:[%s1] sm:$0xff]
  %177 = vset.pattern.permute.xlu0 0
  %178 = vperm.xlu0 %177, %v175
  %v179 = vpop.permute.xlu0 %178
  %v182 = vunpack.c.l.b16 %v14
  %v183 = vunpack.c.h.b16 %v14
  %v184 = vpack.c.b16 %v182, %v182
  %v185 = vpack.c.b16 %v183, %v183
  %v348 = vunpack.c.l.b16 %v15
  %v349 = vunpack.c.h.b16 %v15
  %v350 = vunpack.c.l.b16 %v16
  %v351 = vunpack.c.h.b16 %v16
  %v352 = vunpack.c.l.b16 %v17
  %v353 = vunpack.c.h.b16 %v17
  %v354 = vunpack.c.l.b16 %v18
  %v355 = vunpack.c.h.b16 %v18
  %v356 = vunpack.c.l.b16 %v19
  %v357 = vunpack.c.l.b16 %v20
  %v358 = vunpack.c.h.b16 %v20
  %v359 = vunpack.c.l.b16 %v21
  %v360 = vunpack.c.h.b16 %v21
  %v361 = vunpack.c.l.b16 %v22
  %v362 = vunpack.c.h.b16 %v22
  %v363 = vunpack.c.l.b16 %v23
  %v364 = vunpack.c.h.b16 %v23
  %v365 = vunpack.c.l.b16 %v24
  %v366 = vunpack.c.l.b16 %v25
  %v367 = vunpack.c.h.b16 %v25
  %v368 = vunpack.c.l.b16 %v26
  %v369 = vunpack.c.h.b16 %v26
  %v370 = vunpack.c.l.b16 %v27
  %v371 = vunpack.c.h.b16 %v27
  %v372 = vunpack.c.l.b16 %v28
  %v373 = vunpack.c.h.b16 %v28
  %v374 = vunpack.c.l.b16 %v29
  %v375 = vunpack.c.l.b16 %v30
  %v376 = vunpack.c.h.b16 %v30
  %v377 = vunpack.c.l.b16 %v31
  %v378 = vunpack.c.h.b16 %v31
  %v379 = vunpack.c.l.b16 %v32
  %v380 = vunpack.c.h.b16 %v32
  %v381 = vunpack.c.l.b16 %v33
  %v382 = vunpack.c.h.b16 %v33
  %v383 = vunpack.c.l.b16 %v34
  %v384 = vunpack.c.l.b16 %v35
  %v385 = vunpack.c.h.b16 %v35
  %v386 = vunpack.c.l.b16 %v36
  %v387 = vunpack.c.h.b16 %v36
  %v388 = vunpack.c.l.b16 %v37
  %v389 = vunpack.c.h.b16 %v37
  %v390 = vunpack.c.l.b16 %v38
  %v391 = vunpack.c.h.b16 %v38
  %v392 = vunpack.c.l.b16 %v39
  %v393 = vunpack.c.l.b16 %v40
  %v394 = vunpack.c.h.b16 %v40
  %v395 = vunpack.c.l.b16 %v41
  %v396 = vunpack.c.h.b16 %v41
  %v397 = vunpack.c.l.b16 %v42
  %v398 = vunpack.c.h.b16 %v42
  %v399 = vunpack.c.l.b16 %v43
  %v400 = vunpack.c.h.b16 %v43
  %v401 = vunpack.c.l.b16 %v44
  %v402 = vunpack.c.l.b16 %v45
  %v403 = vunpack.c.h.b16 %v45
  %v404 = vunpack.c.l.b16 %v46
  %v405 = vunpack.c.h.b16 %v46
  %v406 = vunpack.c.l.b16 %v47
  %v407 = vunpack.c.h.b16 %v47
  %v408 = vunpack.c.l.b16 %v48
  %v409 = vunpack.c.h.b16 %v48
  %v410 = vunpack.c.l.b16 %v49
  %v411 = vunpack.c.l.b16 %v50
  %v412 = vunpack.c.h.b16 %v50
  %v413 = vunpack.c.l.b16 %v51
  %v414 = vunpack.c.h.b16 %v51
  %v415 = vunpack.c.l.b16 %v52
  %v416 = vunpack.c.h.b16 %v52
  %v417 = vunpack.c.l.b16 %v53
  %v418 = vunpack.c.h.b16 %v53
  %v419 = vunpack.c.l.b16 %v54
  %v420 = vunpack.c.l.b16 %v55
  %v421 = vunpack.c.h.b16 %v55
  %v422 = vunpack.c.l.b16 %v56
  %v423 = vunpack.c.h.b16 %v56
  %v424 = vunpack.c.l.b16 %v57
  %v425 = vunpack.c.h.b16 %v57
  %v426 = vunpack.c.l.b16 %v58
  %v427 = vunpack.c.h.b16 %v58
  %v428 = vunpack.c.l.b16 %v59
  %v429 = vunpack.c.l.b16 %v60
  %v430 = vunpack.c.h.b16 %v60
  %v431 = vunpack.c.l.b16 %v61
  %v432 = vunpack.c.h.b16 %v61
  %v433 = vunpack.c.l.b16 %v62
  %v434 = vunpack.c.h.b16 %v62
  %v435 = vunpack.c.l.b16 %v63
  %v436 = vunpack.c.h.b16 %v63
  %v437 = vunpack.c.l.b16 %v64
  %v438 = vunpack.c.l.b16 %v65
  %v439 = vunpack.c.h.b16 %v65
  %v440 = vunpack.c.l.b16 %v66
  %v441 = vunpack.c.h.b16 %v66
  %v442 = vunpack.c.l.b16 %v67
  %v443 = vunpack.c.h.b16 %v67
  %v444 = vunpack.c.l.b16 %v68
  %v445 = vunpack.c.h.b16 %v68
  %v446 = vunpack.c.l.b16 %v69
  %v447 = vunpack.c.l.b16 %v70
  %v448 = vunpack.c.h.b16 %v70
  %v449 = vunpack.c.l.b16 %v71
  %v450 = vunpack.c.h.b16 %v71
  %v451 = vunpack.c.l.b16 %v72
  %v452 = vunpack.c.h.b16 %v72
  %v453 = vunpack.c.l.b16 %v73
  %v454 = vunpack.c.h.b16 %v73
  %v455 = vunpack.c.l.b16 %v74
  %v456 = vunpack.c.l.b16 %v75
  %v457 = vunpack.c.h.b16 %v75
  %v458 = vunpack.c.l.b16 %v76
  %v459 = vunpack.c.h.b16 %v76
  %v460 = vunpack.c.l.b16 %v77
  %v461 = vunpack.c.h.b16 %v77
  %v462 = vunpack.c.l.b16 %v78
  %v463 = vunpack.c.h.b16 %v78
  %v464 = vunpack.c.l.b16 %v79
  %v465 = vunpack.c.l.b16 %v80
  %v466 = vunpack.c.h.b16 %v80
  %v467 = vunpack.c.l.b16 %v81
  %v468 = vunpack.c.h.b16 %v81
  %v469 = vunpack.c.l.b16 %v82
  %v470 = vunpack.c.h.b16 %v82
  %v471 = vunpack.c.l.b16 %v83
  %v472 = vunpack.c.h.b16 %v83
  %v473 = vunpack.c.l.b16 %v84
  %v474 = vunpack.c.l.b16 %v85
  %v475 = vunpack.c.h.b16 %v85
  %v476 = vunpack.c.l.b16 %v86
  %v477 = vunpack.c.h.b16 %v86
  %v478 = vunpack.c.l.b16 %v87
  %v479 = vunpack.c.h.b16 %v87
  %v480 = vunpack.c.l.b16 %v88
  %v481 = vunpack.c.h.b16 %v88
  %v482 = vunpack.c.l.b16 %v89
  %v483 = vunpack.c.l.b16 %v90
  %v484 = vunpack.c.h.b16 %v90
  %v485 = vunpack.c.l.b16 %v91
  %v486 = vunpack.c.h.b16 %v91
  %v487 = vunpack.c.l.b16 %v92
  %v488 = vunpack.c.h.b16 %v92
  %v489 = vunpack.c.l.b16 %v93
  %v490 = vunpack.c.h.b16 %v93
  %v491 = vunpack.c.l.b16 %v94
  %v492 = vunpack.c.l.b16 %v95
  %v493 = vunpack.c.h.b16 %v95
  %v494 = vunpack.c.l.b16 %v96
  %v495 = vunpack.c.h.b16 %v96
  %v496 = vunpack.c.l.b16 %v97
  %v497 = vunpack.c.h.b16 %v97
  %v498 = vunpack.c.l.b16 %v98
  %v499 = vunpack.c.h.b16 %v98
  %v500 = vunpack.c.l.b16 %v99
  %v501 = vunpack.c.l.b16 %v100
  %v502 = vunpack.c.h.b16 %v100
  %v503 = vunpack.c.l.b16 %v101
  %v504 = vunpack.c.h.b16 %v101
  %v505 = vunpack.c.l.b16 %v102
  %v506 = vunpack.c.h.b16 %v102
  %v507 = vunpack.c.l.b16 %v103
  %v508 = vunpack.c.h.b16 %v103
  %v509 = vunpack.c.l.b16 %v104
  %v510 = vunpack.c.l.b16 %v105
  %v511 = vunpack.c.h.b16 %v105
  %v512 = vunpack.c.l.b16 %v106
  %v513 = vunpack.c.h.b16 %v106
  %v514 = vunpack.c.l.b16 %v107
  %v515 = vunpack.c.h.b16 %v107
  %v516 = vunpack.c.l.b16 %v108
  %v517 = vunpack.c.h.b16 %v108
  %v518 = vunpack.c.l.b16 %v109
  %v519 = vunpack.c.l.b16 %v110
  %v520 = vunpack.c.h.b16 %v110
  %v521 = vunpack.c.l.b16 %v111
  %v522 = vunpack.c.h.b16 %v111
  %v523 = vunpack.c.l.b16 %v112
  %v524 = vunpack.c.h.b16 %v112
  %v525 = vunpack.c.l.b16 %v113
  %v526 = vunpack.c.h.b16 %v113
  %v527 = vunpack.c.l.b16 %v114
  %v528 = vunpack.c.l.b16 %v115
  %v529 = vunpack.c.h.b16 %v115
  %v530 = vunpack.c.l.b16 %v116
  %v531 = vunpack.c.h.b16 %v116
  %v532 = vunpack.c.l.b16 %v117
  %v533 = vunpack.c.h.b16 %v117
  %v534 = vunpack.c.l.b16 %v118
  %v535 = vunpack.c.h.b16 %v118
  %v536 = vunpack.c.l.b16 %v119
  %v537 = vunpack.c.l.b16 %v120
  %v538 = vunpack.c.h.b16 %v120
  %v539 = vunpack.c.l.b16 %v121
  %v540 = vunpack.c.h.b16 %v121
  %v541 = vunpack.c.l.b16 %v122
  %v542 = vunpack.c.h.b16 %v122
  %v543 = vunpack.c.l.b16 %v123
  %v544 = vunpack.c.h.b16 %v123
  %v545 = vunpack.c.l.b16 %v124
  %v546 = vunpack.c.l.b16 %v125
  %v547 = vunpack.c.h.b16 %v125
  %v548 = vunpack.c.l.b16 %v126
  %v549 = vunpack.c.h.b16 %v126
  %v550 = vunpack.c.l.b16 %v127
  %v551 = vunpack.c.h.b16 %v127
  %v552 = vunpack.c.l.b16 %v128
  %v553 = vunpack.c.h.b16 %v128
  %v554 = vunpack.c.l.b16 %v129
  %v555 = vunpack.c.l.b16 %v130
  %v556 = vunpack.c.h.b16 %v130
  %v557 = vunpack.c.l.b16 %v131
  %v558 = vunpack.c.h.b16 %v131
  %v559 = vunpack.c.l.b16 %v132
  %v560 = vunpack.c.h.b16 %v132
  %v561 = vunpack.c.l.b16 %v133
  %v562 = vunpack.c.h.b16 %v133
  %v563 = vunpack.c.l.b16 %v134
  %v564 = vunpack.c.l.b16 %v135
  %v565 = vunpack.c.h.b16 %v135
  %v566 = vunpack.c.l.b16 %v136
  %v567 = vunpack.c.h.b16 %v136
  %v568 = vunpack.c.l.b16 %v137
  %v569 = vunpack.c.h.b16 %v137
  %v570 = vunpack.c.l.b16 %v138
  %v571 = vunpack.c.h.b16 %v138
  %v572 = vunpack.c.l.b16 %v139
  %v573 = vunpack.c.l.b16 %v140
  %v574 = vunpack.c.h.b16 %v140
  %v575 = vunpack.c.l.b16 %v141
  %v576 = vunpack.c.h.b16 %v141
  %v577 = vunpack.c.l.b16 %v142
  %v578 = vunpack.c.h.b16 %v142
  %v579 = vunpack.c.l.b16 %v143
  %v580 = vunpack.c.h.b16 %v143
  %v581 = vunpack.c.l.b16 %v144
  %v582 = vunpack.c.l.b16 %v145
  %v583 = vunpack.c.h.b16 %v145
  %v584 = vunpack.c.l.b16 %v146
  %v585 = vunpack.c.h.b16 %v146
  %v586 = vunpack.c.l.b16 %v147
  %v587 = vunpack.c.h.b16 %v147
  %v588 = vunpack.c.l.b16 %v148
  %v589 = vunpack.c.h.b16 %v148
  %v590 = vunpack.c.l.b16 %v149
  %v591 = vunpack.c.l.b16 %v150
  %v592 = vunpack.c.h.b16 %v150
  %v593 = vunpack.c.l.b16 %v151
  %v594 = vunpack.c.h.b16 %v151
  %v595 = vunpack.c.l.b16 %v152
  %v596 = vunpack.c.h.b16 %v152
  %v597 = vunpack.c.l.b16 %v153
  %v598 = vunpack.c.h.b16 %v153
  %v599 = vunpack.c.l.b16 %v154
  %v600 = vunpack.c.l.b16 %v155
  %v601 = vunpack.c.h.b16 %v155
  %v602 = vunpack.c.l.b16 %v156
  %v603 = vunpack.c.h.b16 %v156
  %v604 = vunpack.c.l.b16 %v157
  %v605 = vunpack.c.h.b16 %v157
  %v606 = vunpack.c.l.b16 %v158
  %v607 = vunpack.c.h.b16 %v158
  %v608 = vunpack.c.l.b16 %v159
  %v609 = vunpack.c.l.b16 %v160
  %v610 = vunpack.c.h.b16 %v160
  %v611 = vunpack.c.l.b16 %v161
  %v612 = vunpack.c.h.b16 %v161
  %v613 = vunpack.c.l.b16 %v162
  %v614 = vunpack.c.h.b16 %v162
  %v615 = vunpack.c.l.b16 %v163
  %v616 = vunpack.c.h.b16 %v163
  %v617 = vunpack.c.l.b16 %v164
  %v618 = vunpack.c.l.b16 %v165
  %v619 = vunpack.c.h.b16 %v165
  %v620 = vunpack.c.l.b16 %v166
  %v621 = vunpack.c.h.b16 %v166
  %v622 = vunpack.c.l.b16 %v167
  %v623 = vunpack.c.h.b16 %v167
  %v624 = vunpack.c.l.b16 %v168
  %v625 = vunpack.c.h.b16 %v168
  %v626 = vunpack.c.l.b16 %v169
  %v627 = vunpack.c.l.b16 %v170
  %v628 = vunpack.c.h.b16 %v170
  %v629 = vunpack.c.l.b16 %v171
  %v630 = vunpack.c.h.b16 %v171
  %v631 = vunpack.c.l.b16 %v172
  %v632 = vunpack.c.h.b16 %v172
  %v633 = vunpack.c.l.b16 %v173
  %v634 = vunpack.c.h.b16 %v173
  %v635 = vunpack.c.l.b16 %v174
  %v636 = vpack.c.b16 %v357, %v348
  %v637 = vpack.c.b16 %v358, %v349
  %v638 = vpack.c.b16 %v359, %v350
  %v639 = vpack.c.b16 %v360, %v351
  %v640 = vpack.c.b16 %v361, %v352
  %v641 = vpack.c.b16 %v362, %v353
  %v642 = vpack.c.b16 %v363, %v354
  %v643 = vpack.c.b16 %v364, %v355
  %v644 = vpack.c.b16 %v365, %v356
  %v645 = vpack.c.b16 %v375, %v366
  %v646 = vpack.c.b16 %v376, %v367
  %v647 = vpack.c.b16 %v377, %v368
  %v648 = vpack.c.b16 %v378, %v369
  %v649 = vpack.c.b16 %v379, %v370
  %v650 = vpack.c.b16 %v380, %v371
  %v651 = vpack.c.b16 %v381, %v372
  %v652 = vpack.c.b16 %v382, %v373
  %v653 = vpack.c.b16 %v383, %v374
  %v654 = vpack.c.b16 %v393, %v384
  %v655 = vpack.c.b16 %v394, %v385
  %v656 = vpack.c.b16 %v395, %v386
  %v657 = vpack.c.b16 %v396, %v387
  %v658 = vpack.c.b16 %v397, %v388
  %v659 = vpack.c.b16 %v398, %v389
  %v660 = vpack.c.b16 %v399, %v390
  %v661 = vpack.c.b16 %v400, %v391
  %v662 = vpack.c.b16 %v401, %v392
  %v663 = vpack.c.b16 %v411, %v402
  %v664 = vpack.c.b16 %v412, %v403
  %v665 = vpack.c.b16 %v413, %v404
  %v666 = vpack.c.b16 %v414, %v405
  %v667 = vpack.c.b16 %v415, %v406
  %v668 = vpack.c.b16 %v416, %v407
  %v669 = vpack.c.b16 %v417, %v408
  %v670 = vpack.c.b16 %v418, %v409
  %v671 = vpack.c.b16 %v419, %v410
  %v672 = vpack.c.b16 %v429, %v420
  %v673 = vpack.c.b16 %v430, %v421
  %v674 = vpack.c.b16 %v431, %v422
  %v675 = vpack.c.b16 %v432, %v423
  %v676 = vpack.c.b16 %v433, %v424
  %v677 = vpack.c.b16 %v434, %v425
  %v678 = vpack.c.b16 %v435, %v426
  %v679 = vpack.c.b16 %v436, %v427
  %v680 = vpack.c.b16 %v437, %v428
  %v681 = vpack.c.b16 %v447, %v438
  %v682 = vpack.c.b16 %v448, %v439
  %v683 = vpack.c.b16 %v449, %v440
  %v684 = vpack.c.b16 %v450, %v441
  %v685 = vpack.c.b16 %v451, %v442
  %v686 = vpack.c.b16 %v452, %v443
  %v687 = vpack.c.b16 %v453, %v444
  %v688 = vpack.c.b16 %v454, %v445
  %v689 = vpack.c.b16 %v455, %v446
  %v690 = vpack.c.b16 %v465, %v456
  %v691 = vpack.c.b16 %v466, %v457
  %v692 = vpack.c.b16 %v467, %v458
  %v693 = vpack.c.b16 %v468, %v459
  %v694 = vpack.c.b16 %v469, %v460
  %v695 = vpack.c.b16 %v470, %v461
  %v696 = vpack.c.b16 %v471, %v462
  %v697 = vpack.c.b16 %v472, %v463
  %v698 = vpack.c.b16 %v473, %v464
  %v699 = vpack.c.b16 %v483, %v474
  %v700 = vpack.c.b16 %v484, %v475
  %v701 = vpack.c.b16 %v485, %v476
  %v702 = vpack.c.b16 %v486, %v477
  %v703 = vpack.c.b16 %v487, %v478
  %v704 = vpack.c.b16 %v488, %v479
  %v705 = vpack.c.b16 %v489, %v480
  %v706 = vpack.c.b16 %v490, %v481
  %v707 = vpack.c.b16 %v491, %v482
  %v708 = vpack.c.b16 %v501, %v492
  %v709 = vpack.c.b16 %v502, %v493
  %v710 = vpack.c.b16 %v503, %v494
  %v711 = vpack.c.b16 %v504, %v495
  %v712 = vpack.c.b16 %v505, %v496
  %v713 = vpack.c.b16 %v506, %v497
  %v714 = vpack.c.b16 %v507, %v498
  %v715 = vpack.c.b16 %v508, %v499
  %v716 = vpack.c.b16 %v509, %v500
  %v717 = vpack.c.b16 %v519, %v510
  %v718 = vpack.c.b16 %v520, %v511
  %v719 = vpack.c.b16 %v521, %v512
  %v720 = vpack.c.b16 %v522, %v513
  %v721 = vpack.c.b16 %v523, %v514
  %v722 = vpack.c.b16 %v524, %v515
  %v723 = vpack.c.b16 %v525, %v516
  %v724 = vpack.c.b16 %v526, %v517
  %v725 = vpack.c.b16 %v527, %v518
  %v726 = vpack.c.b16 %v537, %v528
  %v727 = vpack.c.b16 %v538, %v529
  %v728 = vpack.c.b16 %v539, %v530
  %v729 = vpack.c.b16 %v540, %v531
  %v730 = vpack.c.b16 %v541, %v532
  %v731 = vpack.c.b16 %v542, %v533
  %v732 = vpack.c.b16 %v543, %v534
  %v733 = vpack.c.b16 %v544, %v535
  %v734 = vpack.c.b16 %v545, %v536
  %v735 = vpack.c.b16 %v555, %v546
  %v736 = vpack.c.b16 %v556, %v547
  %v737 = vpack.c.b16 %v557, %v548
  %v738 = vpack.c.b16 %v558, %v549
  %v739 = vpack.c.b16 %v559, %v550
  %v740 = vpack.c.b16 %v560, %v551
  %v741 = vpack.c.b16 %v561, %v552
  %v742 = vpack.c.b16 %v562, %v553
  %v743 = vpack.c.b16 %v563, %v554
  %v744 = vpack.c.b16 %v573, %v564
  %v745 = vpack.c.b16 %v574, %v565
  %v746 = vpack.c.b16 %v575, %v566
  %v747 = vpack.c.b16 %v576, %v567
  %v748 = vpack.c.b16 %v577, %v568
  %v749 = vpack.c.b16 %v578, %v569
  %v750 = vpack.c.b16 %v579, %v570
  %v751 = vpack.c.b16 %v580, %v571
  %v752 = vpack.c.b16 %v581, %v572
  %v753 = vpack.c.b16 %v591, %v582
  %v754 = vpack.c.b16 %v592, %v583
  %v755 = vpack.c.b16 %v593, %v584
  %v756 = vpack.c.b16 %v594, %v585
  %v757 = vpack.c.b16 %v595, %v586
  %v758 = vpack.c.b16 %v596, %v587
  %v759 = vpack.c.b16 %v597, %v588
  %v760 = vpack.c.b16 %v598, %v589
  %v761 = vpack.c.b16 %v599, %v590
  %v762 = vpack.c.b16 %v609, %v600
  %v763 = vpack.c.b16 %v610, %v601
  %v764 = vpack.c.b16 %v611, %v602
  %v765 = vpack.c.b16 %v612, %v603
  %v766 = vpack.c.b16 %v613, %v604
  %v767 = vpack.c.b16 %v614, %v605
  %v768 = vpack.c.b16 %v615, %v606
  %v769 = vpack.c.b16 %v616, %v607
  %v770 = vpack.c.b16 %v617, %v608
  %v771 = vpack.c.b16 %v627, %v618
  %v772 = vpack.c.b16 %v628, %v619
  %v773 = vpack.c.b16 %v629, %v620
  %v774 = vpack.c.b16 %v630, %v621
  %v775 = vpack.c.b16 %v631, %v622
  %v776 = vpack.c.b16 %v632, %v623
  %v777 = vpack.c.b16 %v633, %v624
  %v778 = vpack.c.b16 %v634, %v625
  %v779 = vpack.c.b16 %v635, %v626
  %924 = vmatpush.bf16.msra.mxu0 %v699
  %925 = vmatpush.bf16.msra.mxu0 %v690
  %926 = vmatpush.bf16.msra.mxu0 %v681
  %927 = vmatpush.bf16.msra.mxu0 %v672
  %928 = vmatpush.bf16.msra.mxu0 %v663
  %929 = vmatpush.bf16.msra.mxu0 %v654
  %930 = vmatpush.bf16.msra.mxu0 %v645
  %931 = vmatpush.bf16.msra.mxu0 %v636
  %932 = vmatmul.bf16.gmra.mxu0 %v184
  %v933 = vpop.f32.mrf.mxu0
  %v934 = vadd.f32 %v179, %v933
  %v935 = vpop.f32.mrf.mxu0
  %936 = vdwg.mxu0
  %937 = vmatpush.bf16.msra.mxu0 %v771
  %938 = vmatpush.bf16.msra.mxu0 %v762
  %939 = vmatpush.bf16.msra.mxu0 %v753
  %940 = vmatpush.bf16.msra.mxu0 %v744
  %941 = vmatpush.bf16.msra.mxu0 %v735
  %942 = vmatpush.bf16.msra.mxu0 %v726
  %943 = vmatpush.bf16.msra.mxu0 %v717
  %944 = vmatpush.bf16.msra.mxu0 %v708
  %945 = vmatmul.bf16.gmra.mxu0 %v185
  %v946 = vpop.f32.mrf.mxu0
  %v947 = vadd.f32 %v934, %v946
  %v948 = vpop.f32.mrf.mxu0
  %949 = vdwg.mxu0
  %950 = vmatpush.bf16.msra.mxu0 %v700
  %951 = vmatpush.bf16.msra.mxu0 %v691
  %952 = vmatpush.bf16.msra.mxu0 %v682
  %953 = vmatpush.bf16.msra.mxu0 %v673
  %954 = vmatpush.bf16.msra.mxu0 %v664
  %955 = vmatpush.bf16.msra.mxu0 %v655
  %956 = vmatpush.bf16.msra.mxu0 %v646
  %957 = vmatpush.bf16.msra.mxu0 %v637
  %958 = vmatmul.bf16.gmra.mxu0 %v184
  %v959 = vpop.f32.mrf.mxu0
  %v960 = vadd.f32 %v179, %v959
  %v961 = vpop.f32.mrf.mxu0
  %962 = vdwg.mxu0
  %963 = vmatpush.bf16.msra.mxu0 %v772
  %964 = vmatpush.bf16.msra.mxu0 %v763
  %965 = vmatpush.bf16.msra.mxu0 %v754
  %966 = vmatpush.bf16.msra.mxu0 %v745
  %967 = vmatpush.bf16.msra.mxu0 %v736
  %968 = vmatpush.bf16.msra.mxu0 %v727
  %969 = vmatpush.bf16.msra.mxu0 %v718
  %970 = vmatpush.bf16.msra.mxu0 %v709
  %971 = vmatmul.bf16.gmra.mxu0 %v185
  %v972 = vpop.f32.mrf.mxu0
  %v973 = vadd.f32 %v960, %v972
  %v974 = vpop.f32.mrf.mxu0
  %975 = vdwg.mxu0
  %976 = vmatpush.bf16.msra.mxu0 %v701
  %977 = vmatpush.bf16.msra.mxu0 %v692
  %978 = vmatpush.bf16.msra.mxu0 %v683
  %979 = vmatpush.bf16.msra.mxu0 %v674
  %980 = vmatpush.bf16.msra.mxu0 %v665
  %981 = vmatpush.bf16.msra.mxu0 %v656
  %982 = vmatpush.bf16.msra.mxu0 %v647
  %983 = vmatpush.bf16.msra.mxu0 %v638
  %984 = vmatmul.bf16.gmra.mxu0 %v184
  %v985 = vpop.f32.mrf.mxu0
  %v986 = vadd.f32 %v179, %v985
  %v987 = vpop.f32.mrf.mxu0
  %988 = vdwg.mxu0
  %989 = vmatpush.bf16.msra.mxu0 %v773
  %990 = vmatpush.bf16.msra.mxu0 %v764
  %991 = vmatpush.bf16.msra.mxu0 %v755
  %992 = vmatpush.bf16.msra.mxu0 %v746
  %993 = vmatpush.bf16.msra.mxu0 %v737
  %994 = vmatpush.bf16.msra.mxu0 %v728
  %995 = vmatpush.bf16.msra.mxu0 %v719
  %996 = vmatpush.bf16.msra.mxu0 %v710
  %997 = vmatmul.bf16.gmra.mxu0 %v185
  %v998 = vpop.f32.mrf.mxu0
  %v999 = vadd.f32 %v986, %v998
  %v1000 = vpop.f32.mrf.mxu0
  %1001 = vdwg.mxu0
  %1002 = vmatpush.bf16.msra.mxu0 %v702
  %1003 = vmatpush.bf16.msra.mxu0 %v693
  %1004 = vmatpush.bf16.msra.mxu0 %v684
  %1005 = vmatpush.bf16.msra.mxu0 %v675
  %1006 = vmatpush.bf16.msra.mxu0 %v666
  %1007 = vmatpush.bf16.msra.mxu0 %v657
  %1008 = vmatpush.bf16.msra.mxu0 %v648
  %1009 = vmatpush.bf16.msra.mxu0 %v639
  %1010 = vmatmul.bf16.gmra.mxu0 %v184
  %v1011 = vpop.f32.mrf.mxu0
  %v1012 = vadd.f32 %v179, %v1011
  %v1013 = vpop.f32.mrf.mxu0
  %1014 = vdwg.mxu0
  %1015 = vmatpush.bf16.msra.mxu0 %v774
  %1016 = vmatpush.bf16.msra.mxu0 %v765
  %1017 = vmatpush.bf16.msra.mxu0 %v756
  %1018 = vmatpush.bf16.msra.mxu0 %v747
  %1019 = vmatpush.bf16.msra.mxu0 %v738
  %1020 = vmatpush.bf16.msra.mxu0 %v729
  %1021 = vmatpush.bf16.msra.mxu0 %v720
  %1022 = vmatpush.bf16.msra.mxu0 %v711
  %1023 = vmatmul.bf16.gmra.mxu0 %v185
  %v1024 = vpop.f32.mrf.mxu0
  %v1025 = vadd.f32 %v1012, %v1024
  %v1026 = vpop.f32.mrf.mxu0
  %1027 = vdwg.mxu0
  %1028 = vmatpush.bf16.msra.mxu0 %v703
  %1029 = vmatpush.bf16.msra.mxu0 %v694
  %1030 = vmatpush.bf16.msra.mxu0 %v685
  %1031 = vmatpush.bf16.msra.mxu0 %v676
  %1032 = vmatpush.bf16.msra.mxu0 %v667
  %1033 = vmatpush.bf16.msra.mxu0 %v658
  %1034 = vmatpush.bf16.msra.mxu0 %v649
  %1035 = vmatpush.bf16.msra.mxu0 %v640
  %1036 = vmatmul.bf16.gmra.mxu0 %v184
  %v1037 = vpop.f32.mrf.mxu0
  %v1038 = vadd.f32 %v179, %v1037
  %v1039 = vpop.f32.mrf.mxu0
  %1040 = vdwg.mxu0
  %1041 = vmatpush.bf16.msra.mxu0 %v775
  %1042 = vmatpush.bf16.msra.mxu0 %v766
  %1043 = vmatpush.bf16.msra.mxu0 %v757
  %1044 = vmatpush.bf16.msra.mxu0 %v748
  %1045 = vmatpush.bf16.msra.mxu0 %v739
  %1046 = vmatpush.bf16.msra.mxu0 %v730
  %1047 = vmatpush.bf16.msra.mxu0 %v721
  %1048 = vmatpush.bf16.msra.mxu0 %v712
  %1049 = vmatmul.bf16.gmra.mxu0 %v185
  %v1050 = vpop.f32.mrf.mxu0
  %v1051 = vadd.f32 %v1038, %v1050
  %v1052 = vpop.f32.mrf.mxu0
  %1053 = vdwg.mxu0
  %1054 = vmatpush.bf16.msra.mxu0 %v704
  %1055 = vmatpush.bf16.msra.mxu0 %v695
  %1056 = vmatpush.bf16.msra.mxu0 %v686
  %1057 = vmatpush.bf16.msra.mxu0 %v677
  %1058 = vmatpush.bf16.msra.mxu0 %v668
  %1059 = vmatpush.bf16.msra.mxu0 %v659
  %1060 = vmatpush.bf16.msra.mxu0 %v650
  %1061 = vmatpush.bf16.msra.mxu0 %v641
  %1062 = vmatmul.bf16.gmra.mxu0 %v184
  %v1063 = vpop.f32.mrf.mxu0
  %v1064 = vadd.f32 %v179, %v1063
  %v1065 = vpop.f32.mrf.mxu0
  %1066 = vdwg.mxu0
  %1067 = vmatpush.bf16.msra.mxu0 %v776
  %1068 = vmatpush.bf16.msra.mxu0 %v767
  %1069 = vmatpush.bf16.msra.mxu0 %v758
  %1070 = vmatpush.bf16.msra.mxu0 %v749
  %1071 = vmatpush.bf16.msra.mxu0 %v740
  %1072 = vmatpush.bf16.msra.mxu0 %v731
  %1073 = vmatpush.bf16.msra.mxu0 %v722
  %1074 = vmatpush.bf16.msra.mxu0 %v713
  %1075 = vmatmul.bf16.gmra.mxu0 %v185
  %v1076 = vpop.f32.mrf.mxu0
  %v1077 = vadd.f32 %v1064, %v1076
  %v1078 = vpop.f32.mrf.mxu0
  %1079 = vdwg.mxu0
  %1080 = vmatpush.bf16.msra.mxu0 %v705
  %1081 = vmatpush.bf16.msra.mxu0 %v696
  %1082 = vmatpush.bf16.msra.mxu0 %v687
  %1083 = vmatpush.bf16.msra.mxu0 %v678
  %1084 = vmatpush.bf16.msra.mxu0 %v669
  %1085 = vmatpush.bf16.msra.mxu0 %v660
  %1086 = vmatpush.bf16.msra.mxu0 %v651
  %1087 = vmatpush.bf16.msra.mxu0 %v642
  %1088 = vmatmul.bf16.gmra.mxu0 %v184
  %v1089 = vpop.f32.mrf.mxu0
  %v1090 = vadd.f32 %v179, %v1089
  %v1091 = vpop.f32.mrf.mxu0
  %1092 = vdwg.mxu0
  %1093 = vmatpush.bf16.msra.mxu0 %v777
  %1094 = vmatpush.bf16.msra.mxu0 %v768
  %1095 = vmatpush.bf16.msra.mxu0 %v759
  %1096 = vmatpush.bf16.msra.mxu0 %v750
  %1097 = vmatpush.bf16.msra.mxu0 %v741
  %1098 = vmatpush.bf16.msra.mxu0 %v732
  %1099 = vmatpush.bf16.msra.mxu0 %v723
  %1100 = vmatpush.bf16.msra.mxu0 %v714
  %1101 = vmatmul.bf16.gmra.mxu0 %v185
  %v1102 = vpop.f32.mrf.mxu0
  %v1103 = vadd.f32 %v1090, %v1102
  %v1104 = vpop.f32.mrf.mxu0
  %1105 = vdwg.mxu0
  %1106 = vmatpush.bf16.msra.mxu0 %v706
  %1107 = vmatpush.bf16.msra.mxu0 %v697
  %1108 = vmatpush.bf16.msra.mxu0 %v688
  %1109 = vmatpush.bf16.msra.mxu0 %v679
  %1110 = vmatpush.bf16.msra.mxu0 %v670
  %1111 = vmatpush.bf16.msra.mxu0 %v661
  %1112 = vmatpush.bf16.msra.mxu0 %v652
  %1113 = vmatpush.bf16.msra.mxu0 %v643
  %1114 = vmatmul.bf16.gmra.mxu0 %v184
  %v1115 = vpop.f32.mrf.mxu0
  %v1116 = vadd.f32 %v179, %v1115
  %v1117 = vpop.f32.mrf.mxu0
  %1118 = vdwg.mxu0
  %1119 = vmatpush.bf16.msra.mxu0 %v778
  %1120 = vmatpush.bf16.msra.mxu0 %v769
  %1121 = vmatpush.bf16.msra.mxu0 %v760
  %1122 = vmatpush.bf16.msra.mxu0 %v751
  %1123 = vmatpush.bf16.msra.mxu0 %v742
  %1124 = vmatpush.bf16.msra.mxu0 %v733
  %1125 = vmatpush.bf16.msra.mxu0 %v724
  %1126 = vmatpush.bf16.msra.mxu0 %v715
  %1127 = vmatmul.bf16.gmra.mxu0 %v185
  %v1128 = vpop.f32.mrf.mxu0
  %v1129 = vadd.f32 %v1116, %v1128
  %v1130 = vpop.f32.mrf.mxu0
  %1131 = vdwg.mxu0
  %1132 = vmatpush.bf16.msra.mxu0 %v707
  %1133 = vmatpush.bf16.msra.mxu0 %v698
  %1134 = vmatpush.bf16.msra.mxu0 %v689
  %1135 = vmatpush.bf16.msra.mxu0 %v680
  %1136 = vmatpush.bf16.msra.mxu0 %v671
  %1137 = vmatpush.bf16.msra.mxu0 %v662
  %1138 = vmatpush.bf16.msra.mxu0 %v653
  %1139 = vmatpush.bf16.msra.mxu0 %v644
  %1140 = vmatmul.bf16.gmra.mxu0 %v184
  %v1141 = vpop.f32.mrf.mxu0
  %v1142 = vadd.f32 %v179, %v1141
  %v1143 = vpop.f32.mrf.mxu0
  %1144 = vdwg.mxu0
  %1145 = vmatpush.bf16.msra.mxu0 %v779
  %1146 = vmatpush.bf16.msra.mxu0 %v770
  %1147 = vmatpush.bf16.msra.mxu0 %v761
  %1148 = vmatpush.bf16.msra.mxu0 %v752
  %1149 = vmatpush.bf16.msra.mxu0 %v743
  %1150 = vmatpush.bf16.msra.mxu0 %v734
  %1151 = vmatpush.bf16.msra.mxu0 %v725
  %1152 = vmatpush.bf16.msra.mxu0 %v716
  %1153 = vmatmul.bf16.gmra.mxu0 %v185
  %v1154 = vpop.f32.mrf.mxu0
  %v1155 = vadd.f32 %v1142, %v1154
  %v1156 = vpop.f32.mrf.mxu0
  %1157 = vdwg.mxu0
  %v1158 = vmax.f32 %v947, 0.0
  %v1159 = vmax.f32 %v973, 0.0
  %v1160 = vmax.f32 %v999, 0.0
  %v1161 = vmax.f32 %v1025, 0.0
  %v1162 = vmax.f32 %v1051, 0.0
  %v1163 = vmax.f32 %v1077, 0.0
  %v1164 = vmax.f32 %v1103, 0.0
  %v1165 = vmax.f32 %v1129, 0.0
  %v1166 = vmax.f32 %v1155, 0.0
  %v1167 = vpack.c.bf16 %v1159, %v1158
  %v1168 = vpack.c.bf16 %v1161, %v1160
  %v1169 = vpack.c.bf16 %v1163, %v1162
  %v1170 = vpack.c.bf16 %v1165, %v1164
  %v1171 = vpack.c.bf16 %v1166, %v1166
  %1172 = vst [vmem:[%s3] sm:$0xff] %v1167
  %1173 = vst [vmem:[%s3 + $0x8] sm:$0xff] %v1168
  %1174 = vst [vmem:[%s3 + $0x10] sm:$0xff] %v1169
  %1175 = vst [vmem:[%s3 + $0x18] sm:$0xff] %v1170
  %1176 = vst [vmem:[%s3 + $0x20] sm:$0xf] %v1171
  // Predicated region
  $region14: #{actor_forward.2} parent=0 // pred_check
    _
  $region15: #{actor_forward.2} parent=0 // pred_check_branch
    %1178 = sbr.rel (0) target = $region17
  $region16: #{actor_forward.2} parent=0 // pred_region
    _
  $region17: #{actor_forward.2} parent=0 // pred_fallthru
    _
  // Predicated region
  $region18: #{actor_forward.2} parent=0 // pred_check
    _
  $region19: #{actor_forward.2} parent=0 // pred_check_branch
    %1180 = sbr.rel (0) target = $region21
  $region20: #{actor_forward.2} parent=0 // pred_region
    _
  $region21: #{actor_forward.2} parent=0 // pred_fallthru
    _

// kernel: actor_forward.3
$region0: #{actor_forward.3}
  #allocation0 [shape = 'u32[]', space=smem, size = 0x4, offset = 0x4, fixed_abs, tag = 'smem constant byte address 0x4 - core index']
  #allocation1 [shape = 'u32[72,128]{1,0:T(1,128)}', space=vmem, size = 0x9000, scoped, tag = 'internal scratch']
  %s0 = inlined_call_operand.vmem [shape: bf16[16,256], index: 0, kind: input, shape index: {}]
  %s1 = inlined_call_operand.vmem [shape: f32[16,1], index: 1, kind: input, shape index: {}]
  %s2 = inlined_call_operand.vmem [shape: bf16[256,162], index: 2, kind: input, shape index: {}]
  %s3 = inlined_call_operand.vmem [shape: bf16[9,32,16], index: 3, kind: input, shape index: {}]
  %s4 = inlined_call_operand.vmem [shape: f32[32,1], index: 4, kind: input, shape index: {}]
  %s5 = inlined_call_operand.vmem [shape: bf16[9,64,32], index: 5, kind: input, shape index: {}]
  %s6 = inlined_call_operand.vmem [shape: f32[64,1], index: 6, kind: input, shape index: {}]
  %s7 = inlined_call_operand.vmem [shape: bf16[64,64], index: 7, kind: input, shape index: {}]
  %s8 = inlined_call_operand.vmem [shape: f32[64,1], index: 8, kind: input, shape index: {}]
  %s9 = inlined_call_operand.vmem [shape: bf16[3,64], index: 9, kind: input, shape index: {}]
  %s10 = inlined_call_operand.vmem [shape: f32[3,1], index: 10, kind: input, shape index: {}]
  %s11 = inlined_call_operand.vmem [shape: bf16[3,64], index: 11, kind: input, shape index: {}]
  %s12 = inlined_call_operand.vmem [shape: f32[3,1], index: 12, kind: input, shape index: {}]
  %s13 = inlined_call_operand.vmem [shape: f32[3,2], index: 13, kind: input, shape index: {}]
  %s14 = inlined_call_operand.vmem [shape: f32[3,1], index: 14, kind: input, shape index: {}]
  %s15 = inlined_call_operand.vmem [shape: f32[3,1], index: 15, kind: input, shape index: {}]
  %s16 = inlined_call_operand.vmem [shape: f32[3,1], index: 16, kind: input, shape index: {}]
  %s17 = inlined_call_operand.vmem [shape: f32[68,2], index: 17, kind: output, shape index: {}]
  %s18 = sld [smem:[#allocation0]]
  $region78: #{actor_forward.3} parent=0
    _
  %s20 = ssub.s32 1, %s18
  %s21 = scalar_select 0, %s20, %s18
  // Predicated region
  $region2: #{actor_forward.3} parent=0 // pred_check
    _
  $region3: #{actor_forward.3} parent=0 // pred_check_branch
    %23 = sbr.rel (0) target = $region5
  $region4: #{actor_forward.3} parent=0 // pred_region
    _
  $region5: #{actor_forward.3} parent=0 // pred_fallthru
    _
  // Predicated region
  $region6: #{actor_forward.3} parent=0 // pred_check
    _
  $region7: #{actor_forward.3} parent=0 // pred_check_branch
    %25 = sbr.rel (0) target = $region9
  $region8: #{actor_forward.3} parent=0 // pred_region
    _
  $region9: #{actor_forward.3} parent=0 // pred_fallthru
    _
  // Predicated region
  $region10: #{actor_forward.3} parent=0 // pred_check
    _
  $region11: #{actor_forward.3} parent=0 // pred_check_branch
    %27 = sbr.rel (0) target = $region13
  $region12: #{actor_forward.3} parent=0 // pred_region
    _
  $region13: #{actor_forward.3} parent=0 // pred_fallthru
    _
  // Predicated region
  $region14: #{actor_forward.3} parent=0 // pred_check
    _
  $region15: #{actor_forward.3} parent=0 // pred_check_branch
    %29 = sbr.rel (0) target = $region17
  $region16: #{actor_forward.3} parent=0 // pred_region
    _
  $region17: #{actor_forward.3} parent=0 // pred_fallthru
    _
  // Predicated region
  $region18: #{actor_forward.3} parent=0 // pred_check
    _
  $region19: #{actor_forward.3} parent=0 // pred_check_branch
    %31 = sbr.rel (0) target = $region21
  $region20: #{actor_forward.3} parent=0 // pred_region
    _
  $region21: #{actor_forward.3} parent=0 // pred_fallthru
    _
  // Predicated region
  $region22: #{actor_forward.3} parent=0 // pred_check
    _
  $region23: #{actor_forward.3} parent=0 // pred_check_branch
    %33 = sbr.rel (0) target = $region25
  $region24: #{actor_forward.3} parent=0 // pred_region
    _
  $region25: #{actor_forward.3} parent=0 // pred_fallthru
    _
  // Predicated region
  $region26: #{actor_forward.3} parent=0 // pred_check
    _
  $region27: #{actor_forward.3} parent=0 // pred_check_branch
    %35 = sbr.rel (0) target = $region29
  $region28: #{actor_forward.3} parent=0 // pred_region
    _
  $region29: #{actor_forward.3} parent=0 // pred_fallthru
    _
  // Predicated region
  $region30: #{actor_forward.3} parent=0 // pred_check
    _
  $region31: #{actor_forward.3} parent=0 // pred_check_branch
    %37 = sbr.rel (0) target = $region33
  $region32: #{actor_forward.3} parent=0 // pred_region
    _
  $region33: #{actor_forward.3} parent=0 // pred_fallthru
    _
  // Predicated region
  $region34: #{actor_forward.3} parent=0 // pred_check
    _
  $region35: #{actor_forward.3} parent=0 // pred_check_branch
    %39 = sbr.rel (0) target = $region37
  $region36: #{actor_forward.3} parent=0 // pred_region
    _
  $region37: #{actor_forward.3} parent=0 // pred_fallthru
    _
  // Predicated region
  $region38: #{actor_forward.3} parent=0 // pred_check
    _
  $region39: #{actor_forward.3} parent=0 // pred_check_branch
    %41 = sbr.rel (0) target = $region41
  $region40: #{actor_forward.3} parent=0 // pred_region
    _
  $region41: #{actor_forward.3} parent=0 // pred_fallthru
    _
  // Predicated region
  $region42: #{actor_forward.3} parent=0 // pred_check
    _
  $region43: #{actor_forward.3} parent=0 // pred_check_branch
    %43 = sbr.rel (0) target = $region45
  $region44: #{actor_forward.3} parent=0 // pred_region
    _
  $region45: #{actor_forward.3} parent=0 // pred_fallthru
    _
  // Predicated region
  $region46: #{actor_forward.3} parent=0 // pred_check
    _
  $region47: #{actor_forward.3} parent=0 // pred_check_branch
    %45 = sbr.rel (0) target = $region49
  $region48: #{actor_forward.3} parent=0 // pred_region
    _
  $region49: #{actor_forward.3} parent=0 // pred_fallthru
    _
  // Predicated region
  $region50: #{actor_forward.3} parent=0 // pred_check
    _
  $region51: #{actor_forward.3} parent=0 // pred_check_branch
    %47 = sbr.rel (0) target = $region53
  $region52: #{actor_forward.3} parent=0 // pred_region
    _
  $region53: #{actor_forward.3} parent=0 // pred_fallthru
    _
  // Predicated region
  $region54: #{actor_forward.3} parent=0 // pred_check
    _
  $region55: #{actor_forward.3} parent=0 // pred_check_branch
    %49 = sbr.rel (0) target = $region57
  $region56: #{actor_forward.3} parent=0 // pred_region
    _
  $region57: #{actor_forward.3} parent=0 // pred_fallthru
    _
  // Predicated region
  $region58: #{actor_forward.3} parent=0 // pred_check
    _
  $region59: #{actor_forward.3} parent=0 // pred_check_branch
    %51 = sbr.rel (0) target = $region61
  $region60: #{actor_forward.3} parent=0 // pred_region
    _
  $region61: #{actor_forward.3} parent=0 // pred_fallthru
    _
  // Predicated region
  $region62: #{actor_forward.3} parent=0 // pred_check
    _
  $region63: #{actor_forward.3} parent=0 // pred_check_branch
    %53 = sbr.rel (0) target = $region65
  $region64: #{actor_forward.3} parent=0 // pred_region
    _
  $region65: #{actor_forward.3} parent=0 // pred_fallthru
    _
  // Predicated region
  $region66: #{actor_forward.3} parent=0 // pred_check
    _
  $region67: #{actor_forward.3} parent=0 // pred_check_branch
    %55 = sbr.rel (0) target = $region69
  $region68: #{actor_forward.3} parent=0 // pred_region
    _
  $region69: #{actor_forward.3} parent=0 // pred_fallthru
    _
  %v57 = vld [vmem:[%s0] sm:$0xff]
  %v58 = vld [vmem:[%s0 + $0x8] sm:$0xff]
  %v59 = vld [vmem:[%s2] sm:$0xff]
  %v60 = vld [vmem:[%s2 + $0x8] sm:$0xff]
  %v61 = vld [vmem:[%s2 + $0x10] sm:$0xff]
  %v62 = vld [vmem:[%s2 + $0x18] sm:$0xff]
  %v63 = vld [vmem:[%s2 + $0x20] sm:$0xff]
  %v64 = vld [vmem:[%s2 + $0x28] sm:$0xff]
  %v65 = vld [vmem:[%s2 + $0x30] sm:$0xff]
  %v66 = vld [vmem:[%s2 + $0x38] sm:$0xff]
  %v67 = vld [vmem:[%s2 + $0x40] sm:$0xff]
  %v68 = vld [vmem:[%s2 + $0x48] sm:$0xff]
  %v69 = vld [vmem:[%s2 + $0x50] sm:$0xff]
  %v70 = vld [vmem:[%s2 + $0x58] sm:$0xff]
  %v71 = vld [vmem:[%s2 + $0x60] sm:$0xff]
  %v72 = vld [vmem:[%s2 + $0x68] sm:$0xff]
  %v73 = vld [vmem:[%s2 + $0x70] sm:$0xff]
  %v74 = vld [vmem:[%s2 + $0x78] sm:$0xff]
  %v75 = vld [vmem:[%s2 + $0x80] sm:$0xff]
  %v76 = vld [vmem:[%s2 + $0x88] sm:$0xff]
  %v77 = vld [vmem:[%s2 + $0x90] sm:$0xff]
  %v78 = vld [vmem:[%s2 + $0x98] sm:$0xff]
  %v79 = vld [vmem:[%s2 + $0xa0] sm:$0xff]
  %v80 = vld [vmem:[%s2 + $0xa8] sm:$0xff]
  %v81 = vld [vmem:[%s2 + $0xb0] sm:$0xff]
  %v82 = vld [vmem:[%s2 + $0xb8] sm:$0xff]
  %v83 = vld [vmem:[%s2 + $0xc0] sm:$0xff]
  %v84 = vld [vmem:[%s2 + $0xc8] sm:$0xff]
  %v85 = vld [vmem:[%s2 + $0xd0] sm:$0xff]
  %v86 = vld [vmem:[%s2 + $0xd8] sm:$0xff]
  %v87 = vld [vmem:[%s2 + $0xe0] sm:$0xff]
  %v88 = vld [vmem:[%s2 + $0xe8] sm:$0xff]
  %v89 = vld [vmem:[%s2 + $0xf0] sm:$0xff]
  %v90 = vld [vmem:[%s2 + $0xf8] sm:$0xff]
  %v91 = vld [vmem:[%s1] sm:$0xff]
  %v92 = vld [vmem:[%s1 + $0x8] sm:$0xff]
  %94 = vset.pattern.permute.xlu0 0
  %95 = vperm.xlu0 %94, %v91
  %v96 = vpop.permute.xlu0 %95
  %99 = vset.pattern.permute.xlu0 0
  %100 = vperm.xlu0 %99, %v92
  %v101 = vpop.permute.xlu0 %100
  %v105 = vunpack.c.l.b16 %v57
  %v106 = vunpack.c.h.b16 %v57
  %v107 = vunpack.c.l.b16 %v58
  %v108 = vunpack.c.h.b16 %v58
  %v109 = vpack.c.b16 %v107, %v105
  %v110 = vpack.c.b16 %v108, %v106
  %v145 = vunpack.c.l.b16 %v59
  %v146 = vunpack.c.h.b16 %v59
  %v147 = vunpack.c.l.b16 %v60
  %v148 = vunpack.c.h.b16 %v60
  %v149 = vunpack.c.l.b16 %v61
  %v150 = vunpack.c.h.b16 %v61
  %v151 = vunpack.c.l.b16 %v62
  %v152 = vunpack.c.h.b16 %v62
  %v153 = vunpack.c.l.b16 %v63
  %v154 = vunpack.c.h.b16 %v63
  %v155 = vunpack.c.l.b16 %v64
  %v156 = vunpack.c.h.b16 %v64
  %v157 = vunpack.c.l.b16 %v65
  %v158 = vunpack.c.h.b16 %v65
  %v159 = vunpack.c.l.b16 %v66
  %v160 = vunpack.c.h.b16 %v66
  %v161 = vunpack.c.l.b16 %v67
  %v162 = vunpack.c.h.b16 %v67
  %v163 = vunpack.c.l.b16 %v68
  %v164 = vunpack.c.h.b16 %v68
  %v165 = vunpack.c.l.b16 %v69
  %v166 = vunpack.c.h.b16 %v69
  %v167 = vunpack.c.l.b16 %v70
  %v168 = vunpack.c.h.b16 %v70
  %v169 = vunpack.c.l.b16 %v71
  %v170 = vunpack.c.h.b16 %v71
  %v171 = vunpack.c.l.b16 %v72
  %v172 = vunpack.c.h.b16 %v72
  %v173 = vunpack.c.l.b16 %v73
  %v174 = vunpack.c.h.b16 %v73
  %v175 = vunpack.c.l.b16 %v74
  %v176 = vunpack.c.h.b16 %v74
  %v177 = vunpack.c.l.b16 %v75
  %v178 = vunpack.c.h.b16 %v75
  %v179 = vunpack.c.l.b16 %v76
  %v180 = vunpack.c.h.b16 %v76
  %v181 = vunpack.c.l.b16 %v77
  %v182 = vunpack.c.h.b16 %v77
  %v183 = vunpack.c.l.b16 %v78
  %v184 = vunpack.c.h.b16 %v78
  %v185 = vunpack.c.l.b16 %v79
  %v186 = vunpack.c.h.b16 %v79
  %v187 = vunpack.c.l.b16 %v80
  %v188 = vunpack.c.h.b16 %v80
  %v189 = vunpack.c.l.b16 %v81
  %v190 = vunpack.c.h.b16 %v81
  %v191 = vunpack.c.l.b16 %v82
  %v192 = vunpack.c.h.b16 %v82
  %v193 = vunpack.c.l.b16 %v83
  %v194 = vunpack.c.h.b16 %v83
  %v195 = vunpack.c.l.b16 %v84
  %v196 = vunpack.c.h.b16 %v84
  %v197 = vunpack.c.l.b16 %v85
  %v198 = vunpack.c.h.b16 %v85
  %v199 = vunpack.c.l.b16 %v86
  %v200 = vunpack.c.h.b16 %v86
  %v201 = vunpack.c.l.b16 %v87
  %v202 = vunpack.c.h.b16 %v87
  %v203 = vunpack.c.l.b16 %v88
  %v204 = vunpack.c.h.b16 %v88
  %v205 = vunpack.c.l.b16 %v89
  %v206 = vunpack.c.h.b16 %v89
  %v207 = vunpack.c.l.b16 %v90
  %v208 = vunpack.c.h.b16 %v90
  %v209 = vpack.c.b16 %v147, %v145
  %v210 = vpack.c.b16 %v148, %v146
  %v211 = vpack.c.b16 %v151, %v149
  %v212 = vpack.c.b16 %v152, %v150
  %v213 = vpack.c.b16 %v155, %v153
  %v214 = vpack.c.b16 %v156, %v154
  %v215 = vpack.c.b16 %v159, %v157
  %v216 = vpack.c.b16 %v160, %v158
  %v217 = vpack.c.b16 %v163, %v161
  %v218 = vpack.c.b16 %v164, %v162
  %v219 = vpack.c.b16 %v167, %v165
  %v220 = vpack.c.b16 %v168, %v166
  %v221 = vpack.c.b16 %v171, %v169
  %v222 = vpack.c.b16 %v172, %v170
  %v223 = vpack.c.b16 %v175, %v173
  %v224 = vpack.c.b16 %v176, %v174
  %v225 = vpack.c.b16 %v179, %v177
  %v226 = vpack.c.b16 %v180, %v178
  %v227 = vpack.c.b16 %v183, %v181
  %v228 = vpack.c.b16 %v184, %v182
  %v229 = vpack.c.b16 %v187, %v185
  %v230 = vpack.c.b16 %v188, %v186
  %v231 = vpack.c.b16 %v191, %v189
  %v232 = vpack.c.b16 %v192, %v190
  %v233 = vpack.c.b16 %v195, %v193
  %v234 = vpack.c.b16 %v196, %v194
  %v235 = vpack.c.b16 %v199, %v197
  %v236 = vpack.c.b16 %v200, %v198
  %v237 = vpack.c.b16 %v203, %v201
  %v238 = vpack.c.b16 %v204, %v202
  %v239 = vpack.c.b16 %v207, %v205
  %v240 = vpack.c.b16 %v208, %v206
  %273 = vmatpush.bf16.msra.mxu0 %v223
  %274 = vmatpush.bf16.msra.mxu0 %v221
  %275 = vmatpush.bf16.msra.mxu0 %v219
  %276 = vmatpush.bf16.msra.mxu0 %v217
  %277 = vmatpush.bf16.msra.mxu0 %v215
  %278 = vmatpush.bf16.msra.mxu0 %v213
  %279 = vmatpush.bf16.msra.mxu0 %v211
  %280 = vmatpush.bf16.msra.mxu0 %v209
  %281 = vmatmul.bf16.gmra.mxu0 %v109
  %v282 = vpop.f32.mrf.mxu0
  %v283 = vadd.f32 %v96, %v282
  %v284 = vpop.f32.mrf.mxu0
  %v285 = vadd.f32 %v101, %v284
  %286 = vdwg.mxu0
  %287 = vmatpush.bf16.msra.mxu0 %v239
  %288 = vmatpush.bf16.msra.mxu0 %v237
  %289 = vmatpush.bf16.msra.mxu0 %v235
  %290 = vmatpush.bf16.msra.mxu0 %v233
  %291 = vmatpush.bf16.msra.mxu0 %v231
  %292 = vmatpush.bf16.msra.mxu0 %v229
  %293 = vmatpush.bf16.msra.mxu0 %v227
  %294 = vmatpush.bf16.msra.mxu0 %v225
  %295 = vmatmul.bf16.gmra.mxu0 %v110
  %v296 = vpop.f32.mrf.mxu0
  %v297 = vadd.f32 %v283, %v296
  %v298 = vpop.f32.mrf.mxu0
  %v299 = vadd.f32 %v285, %v298
  %300 = vdwg.mxu0
  %301 = vmatpush.bf16.msra.mxu0 %v224
  %302 = vmatpush.bf16.msra.mxu0 %v222
  %303 = vmatpush.bf16.msra.mxu0 %v220
  %304 = vmatpush.bf16.msra.mxu0 %v218
  %305 = vmatpush.bf16.msra.mxu0 %v216
  %306 = vmatpush.bf16.msra.mxu0 %v214
  %307 = vmatpush.bf16.msra.mxu0 %v212
  %308 = vmatpush.bf16.msra.mxu0 %v210
  %309 = vmatmul.bf16.gmra.mxu0 %v109
  %v310 = vpop.f32.mrf.mxu0
  %v311 = vadd.f32 %v96, %v310
  %v312 = vpop.f32.mrf.mxu0
  %v313 = vadd.f32 %v101, %v312
  %314 = vdwg.mxu0
  %315 = vmatpush.bf16.msra.mxu0 %v240
  %316 = vmatpush.bf16.msra.mxu0 %v238
  %317 = vmatpush.bf16.msra.mxu0 %v236
  %318 = vmatpush.bf16.msra.mxu0 %v234
  %319 = vmatpush.bf16.msra.mxu0 %v232
  %320 = vmatpush.bf16.msra.mxu0 %v230
  %321 = vmatpush.bf16.msra.mxu0 %v228
  %322 = vmatpush.bf16.msra.mxu0 %v226
  %323 = vmatmul.bf16.gmra.mxu0 %v110
  %v324 = vpop.f32.mrf.mxu0
  %v325 = vadd.f32 %v311, %v324
  %v326 = vpop.f32.mrf.mxu0
  %v327 = vadd.f32 %v313, %v326
  %328 = vdwg.mxu0
  %v329 = vmax.f32 %v297, 0.0
  %v330 = vmax.f32 %v325, 0.0
  %v331 = vmax.f32 %v299, 0.0
  %v332 = vmax.f32 %v327, 0.0
  %v333 = vpack.c.bf16 %v330, %v329
  %v334 = vpack.c.bf16 %v332, %v331
  %v335 = vld [vmem:[%s3] sm:$0xf]
  %v336 = vld [vmem:[%s3 + $0x4] sm:$0xf]
  %v337 = vld [vmem:[%s3 + $0x8] sm:$0xf]
  %v338 = vld [vmem:[%s3 + $0xc] sm:$0xf]
  %s339 = scalar_lea.vmem %s3, 16
  %v340 = vld [vmem:[%s339] sm:$0xf]
  %v341 = vld [vmem:[%s339 + $0x4] sm:$0xf]
  %v342 = vld [vmem:[%s339 + $0x8] sm:$0xf]
  %v343 = vld [vmem:[%s339 + $0xc] sm:$0xf]
  %v348 = vunpack.c.l.b16 %v340
  %v349 = vunpack.c.l.b16 %v341
  %v350 = vunpack.c.l.b16 %v342
  %v351 = vunpack.c.l.b16 %v343
  %v352 = vpack.c.b16 %v349, %v348
  %v353 = vpack.c.b16 %v351, %v350
  %v356 = vunpack.c.l.b16 %v333
  %v357 = vunpack.c.l.b16 %v334
  %v358 = vpack.c.b16 %v357, %v356
  %359 = vrot.lane.b32.xlu0 %v358, 110
  %v360 = vpop.permute.xlu0 %359
  %vm362 = vcmask 130048
  %v364 = vsel %vm362, %v352, 0
  %v367 = vsel %vm362, %v353, 0
  %369 = vmatpush.bf16.msra.mxu0 0
  %370 = vmatpush.bf16.msra.mxu0 0
  %371 = vmatpush.bf16.msra.mxu0 0
  %372 = vmatpush.bf16.msra.mxu0 0
  %373 = vmatpush.bf16.msra.mxu0 0
  %374 = vmatpush.bf16.msra.mxu0 0
  %375 = vmatpush.bf16.msra.mxu0 0
  %376 = vmatpush.bf16.msra.mxu0 %v360
  %377 = vmatmul.bf16.gmra.mxu0 %v364
  %v378 = vpop.f32.mrf.mxu0
  %v379 = vadd.f32 0.0, %v378
  %v380 = vpop.f32.mrf.mxu0
  %v381 = vadd.f32 0.0, %v380
  %382 = vmatmul.bf16.gmra.mxu0 %v367
  %v383 = vpop.f32.mrf.mxu0
  %v384 = vadd.f32 0.0, %v383
  %v385 = vpop.f32.mrf.mxu0
  %v386 = vadd.f32 0.0, %v385
  %387 = vdwg.mxu0
  %v392 = vunpack.c.l.b16 %v335
  %v393 = vunpack.c.l.b16 %v336
  %v394 = vunpack.c.l.b16 %v337
  %v395 = vunpack.c.l.b16 %v338
  %v396 = vpack.c.b16 %v393, %v392
  %v397 = vpack.c.b16 %v395, %v394
  %v400 = vsel %vm362, %v396, 0
  %v403 = vsel %vm362, %v397, 0
  %405 = vmatpush.bf16.msra.mxu0 0
  %406 = vmatpush.bf16.msra.mxu0 0
  %407 = vmatpush.bf16.msra.mxu0 0
  %408 = vmatpush.bf16.msra.mxu0 0
  %409 = vmatpush.bf16.msra.mxu0 0
  %410 = vmatpush.bf16.msra.mxu0 0
  %411 = vmatpush.bf16.msra.mxu0 0
  %412 = vmatpush.bf16.msra.mxu0 %v358
  %413 = vmatmul.bf16.gmra.mxu0 %v400
  %v414 = vpop.f32.mrf.mxu0
  %v415 = vadd.f32 %v379, %v414
  %v416 = vpop.f32.mrf.mxu0
  %v417 = vadd.f32 %v381, %v416
  %418 = vmatmul.bf16.gmra.mxu0 %v403
  %v419 = vpop.f32.mrf.mxu0
  %v420 = vadd.f32 %v384, %v419
  %v421 = vpop.f32.mrf.mxu0
  %v422 = vadd.f32 %v386, %v421
  %423 = vdwg.mxu0
  %s424 = scalar_lea.vmem %s3, 32
  %v425 = vld [vmem:[%s424] sm:$0xf]
  %v426 = vld [vmem:[%s424 + $0x4] sm:$0xf]
  %v427 = vld [vmem:[%s424 + $0x8] sm:$0xf]
  %v428 = vld [vmem:[%s424 + $0xc] sm:$0xf]
  %v433 = vunpack.c.l.b16 %v425
  %v434 = vunpack.c.l.b16 %v426
  %v435 = vunpack.c.l.b16 %v427
  %v436 = vunpack.c.l.b16 %v428
  %v437 = vpack.c.b16 %v434, %v433
  %v438 = vpack.c.b16 %v436, %v435
  %439 = vrot.lane.b32.xlu0 %v358, 92
  %v440 = vpop.permute.xlu0 %439
  %v443 = vsel %vm362, %v437, 0
  %v446 = vsel %vm362, %v438, 0
  %448 = vmatpush.bf16.msra.mxu0 0
  %449 = vmatpush.bf16.msra.mxu0 0
  %450 = vmatpush.bf16.msra.mxu0 0
  %451 = vmatpush.bf16.msra.mxu0 0
  %452 = vmatpush.bf16.msra.mxu0 0
  %453 = vmatpush.bf16.msra.mxu0 0
  %454 = vmatpush.bf16.msra.mxu0 0
  %455 = vmatpush.bf16.msra.mxu0 %v440
  %456 = vmatmul.bf16.gmra.mxu0 %v443
  %v457 = vpop.f32.mrf.mxu0
  %v458 = vadd.f32 0.0, %v457
  %v459 = vpop.f32.mrf.mxu0
  %v460 = vadd.f32 0.0, %v459
  %461 = vmatmul.bf16.gmra.mxu0 %v446
  %v462 = vpop.f32.mrf.mxu0
  %v463 = vadd.f32 0.0, %v462
  %v464 = vpop.f32.mrf.mxu0
  %v465 = vadd.f32 0.0, %v464
  %466 = vdwg.mxu0
  %v467 = vadd.f32 %v415, %v458
  %v468 = vadd.f32 %v417, %v460
  %v469 = vadd.f32 %v420, %v463
  %v470 = vadd.f32 %v422, %v465
  %s471 = scalar_lea.vmem %s3, 48
  %v472 = vld [vmem:[%s471] sm:$0xf]
  %v473 = vld [vmem:[%s471 + $0x4] sm:$0xf]
  %v474 = vld [vmem:[%s471 + $0x8] sm:$0xf]
  %v475 = vld [vmem:[%s471 + $0xc] sm:$0xf]
  %v480 = vunpack.c.l.b16 %v472
  %v481 = vunpack.c.l.b16 %v473
  %v482 = vunpack.c.l.b16 %v474
  %v483 = vunpack.c.l.b16 %v475
  %v484 = vpack.c.b16 %v481, %v480
  %v485 = vpack.c.b16 %v483, %v482
  %486 = vrot.lane.b32.xlu0 %v358, 74
  %v487 = vpop.permute.xlu0 %486
  %v490 = vsel %vm362, %v484, 0
  %v493 = vsel %vm362, %v485, 0
  %495 = vmatpush.bf16.msra.mxu0 0
  %496 = vmatpush.bf16.msra.mxu0 0
  %497 = vmatpush.bf16.msra.mxu0 0
  %498 = vmatpush.bf16.msra.mxu0 0
  %499 = vmatpush.bf16.msra.mxu0 0
  %500 = vmatpush.bf16.msra.mxu0 0
  %501 = vmatpush.bf16.msra.mxu0 0
  %502 = vmatpush.bf16.msra.mxu0 %v487
  %503 = vmatmul.bf16.gmra.mxu0 %v490
  %v504 = vpop.f32.mrf.mxu0
  %v505 = vadd.f32 0.0, %v504
  %v506 = vpop.f32.mrf.mxu0
  %v507 = vadd.f32 0.0, %v506
  %508 = vmatmul.bf16.gmra.mxu0 %v493
  %v509 = vpop.f32.mrf.mxu0
  %v510 = vadd.f32 0.0, %v509
  %v511 = vpop.f32.mrf.mxu0
  %v512 = vadd.f32 0.0, %v511
  %513 = vdwg.mxu0
  %v514 = vadd.f32 %v467, %v505
  %v515 = vadd.f32 %v468, %v507
  %v516 = vadd.f32 %v469, %v510
  %v517 = vadd.f32 %v470, %v512
  %s518 = scalar_lea.vmem %s3, 64
  %v519 = vld [vmem:[%s518] sm:$0xf]
  %v520 = vld [vmem:[%s518 + $0x4] sm:$0xf]
  %v521 = vld [vmem:[%s518 + $0x8] sm:$0xf]
  %v522 = vld [vmem:[%s518 + $0xc] sm:$0xf]
  %v527 = vunpack.c.l.b16 %v519
  %v528 = vunpack.c.l.b16 %v520
  %v529 = vunpack.c.l.b16 %v521
  %v530 = vunpack.c.l.b16 %v522
  %v531 = vpack.c.b16 %v528, %v527
  %v532 = vpack.c.b16 %v530, %v529
  %533 = vrot.lane.b32.xlu0 %v358, 56
  %v534 = vpop.permute.xlu0 %533
  %v537 = vsel %vm362, %v531, 0
  %v540 = vsel %vm362, %v532, 0
  %542 = vmatpush.bf16.msra.mxu0 0
  %543 = vmatpush.bf16.msra.mxu0 0
  %544 = vmatpush.bf16.msra.mxu0 0
  %545 = vmatpush.bf16.msra.mxu0 0
  %546 = vmatpush.bf16.msra.mxu0 0
  %547 = vmatpush.bf16.msra.mxu0 0
  %548 = vmatpush.bf16.msra.mxu0 0
  %549 = vmatpush.bf16.msra.mxu0 %v534
  %550 = vmatmul.bf16.gmra.mxu0 %v537
  %v551 = vpop.f32.mrf.mxu0
  %v552 = vadd.f32 0.0, %v551
  %v553 = vpop.f32.mrf.mxu0
  %v554 = vadd.f32 0.0, %v553
  %555 = vmatmul.bf16.gmra.mxu0 %v540
  %v556 = vpop.f32.mrf.mxu0
  %v557 = vadd.f32 0.0, %v556
  %v558 = vpop.f32.mrf.mxu0
  %v559 = vadd.f32 0.0, %v558
  %560 = vdwg.mxu0
  %v561 = vadd.f32 %v514, %v552
  %v562 = vadd.f32 %v515, %v554
  %v563 = vadd.f32 %v516, %v557
  %v564 = vadd.f32 %v517, %v559
  %s565 = scalar_lea.vmem %s3, 80
  %v566 = vld [vmem:[%s565] sm:$0xf]
  %v567 = vld [vmem:[%s565 + $0x4] sm:$0xf]
  %v568 = vld [vmem:[%s565 + $0x8] sm:$0xf]
  %v569 = vld [vmem:[%s565 + $0xc] sm:$0xf]
  %v574 = vunpack.c.l.b16 %v566
  %v575 = vunpack.c.l.b16 %v567
  %v576 = vunpack.c.l.b16 %v568
  %v577 = vunpack.c.l.b16 %v569
  %v578 = vpack.c.b16 %v575, %v574
  %v579 = vpack.c.b16 %v577, %v576
  %580 = vrot.lane.b32.xlu0 %v358, 38
  %v581 = vpop.permute.xlu0 %580
  %v584 = vsel %vm362, %v578, 0
  %v587 = vsel %vm362, %v579, 0
  %589 = vmatpush.bf16.msra.mxu0 0
  %590 = vmatpush.bf16.msra.mxu0 0
  %591 = vmatpush.bf16.msra.mxu0 0
  %592 = vmatpush.bf16.msra.mxu0 0
  %593 = vmatpush.bf16.msra.mxu0 0
  %594 = vmatpush.bf16.msra.mxu0 0
  %595 = vmatpush.bf16.msra.mxu0 0
  %596 = vmatpush.bf16.msra.mxu0 %v581
  %597 = vmatmul.bf16.gmra.mxu0 %v584
  %v598 = vpop.f32.mrf.mxu0
  %v599 = vadd.f32 0.0, %v598
  %v600 = vpop.f32.mrf.mxu0
  %v601 = vadd.f32 0.0, %v600
  %602 = vmatmul.bf16.gmra.mxu0 %v587
  %v603 = vpop.f32.mrf.mxu0
  %v604 = vadd.f32 0.0, %v603
  %v605 = vpop.f32.mrf.mxu0
  %v606 = vadd.f32 0.0, %v605
  %607 = vdwg.mxu0
  %v608 = vadd.f32 %v561, %v599
  %v609 = vadd.f32 %v562, %v601
  %v610 = vadd.f32 %v563, %v604
  %v611 = vadd.f32 %v564, %v606
  %s612 = scalar_lea.vmem %s3, 96
  %v613 = vld [vmem:[%s612] sm:$0xf]
  %v614 = vld [vmem:[%s612 + $0x4] sm:$0xf]
  %v615 = vld [vmem:[%s612 + $0x8] sm:$0xf]
  %v616 = vld [vmem:[%s612 + $0xc] sm:$0xf]
  %v621 = vunpack.c.l.b16 %v613
  %v622 = vunpack.c.l.b16 %v614
  %v623 = vunpack.c.l.b16 %v615
  %v624 = vunpack.c.l.b16 %v616
  %v625 = vpack.c.b16 %v622, %v621
  %v626 = vpack.c.b16 %v624, %v623
  %627 = vrot.lane.b32.xlu0 %v358, 20
  %v628 = vpop.permute.xlu0 %627
  %v631 = vsel %vm362, %v625, 0
  %v634 = vsel %vm362, %v626, 0
  %636 = vmatpush.bf16.msra.mxu0 0
  %637 = vmatpush.bf16.msra.mxu0 0
  %638 = vmatpush.bf16.msra.mxu0 0
  %639 = vmatpush.bf16.msra.mxu0 0
  %640 = vmatpush.bf16.msra.mxu0 0
  %641 = vmatpush.bf16.msra.mxu0 0
  %642 = vmatpush.bf16.msra.mxu0 0
  %643 = vmatpush.bf16.msra.mxu0 %v628
  %644 = vmatmul.bf16.gmra.mxu0 %v631
  %v645 = vpop.f32.mrf.mxu0
  %v646 = vadd.f32 0.0, %v645
  %v647 = vpop.f32.mrf.mxu0
  %v648 = vadd.f32 0.0, %v647
  %649 = vmatmul.bf16.gmra.mxu0 %v634
  %v650 = vpop.f32.mrf.mxu0
  %v651 = vadd.f32 0.0, %v650
  %v652 = vpop.f32.mrf.mxu0
  %v653 = vadd.f32 0.0, %v652
  %654 = vdwg.mxu0
  %v655 = vadd.f32 %v608, %v646
  %v656 = vadd.f32 %v609, %v648
  %v657 = vadd.f32 %v610, %v651
  %v658 = vadd.f32 %v611, %v653
  %s659 = scalar_lea.vmem %s3, 112
  %v660 = vld [vmem:[%s659] sm:$0xf]
  %v661 = vld [vmem:[%s659 + $0x4] sm:$0xf]
  %v662 = vld [vmem:[%s659 + $0x8] sm:$0xf]
  %v663 = vld [vmem:[%s659 + $0xc] sm:$0xf]
  %v668 = vunpack.c.l.b16 %v660
  %v669 = vunpack.c.l.b16 %v661
  %v670 = vunpack.c.l.b16 %v662
  %v671 = vunpack.c.l.b16 %v663
  %v672 = vpack.c.b16 %v669, %v668
  %v673 = vpack.c.b16 %v671, %v670
  %v674 = vunpack.c.h.b16 %v333
  %v675 = vunpack.c.h.b16 %v334
  %v676 = vpack.c.b16 %v675, %v674
  %677 = vrot.lane.b32.xlu0 %v358, 2
  %v678 = vpop.permute.xlu0 %677
  %679 = vrot.lane.b32.xlu0 %v676, 2
  %v680 = vpop.permute.xlu0 %679
  %vm681 = vcmask 15360
  %v682 = vsel %vm681, %v678, %v680
  %v685 = vsel %vm362, %v672, 0
  %v688 = vsel %vm362, %v673, 0
  %690 = vmatpush.bf16.msra.mxu0 0
  %691 = vmatpush.bf16.msra.mxu0 0
  %692 = vmatpush.bf16.msra.mxu0 0
  %693 = vmatpush.bf16.msra.mxu0 0
  %694 = vmatpush.bf16.msra.mxu0 0
  %695 = vmatpush.bf16.msra.mxu0 0
  %696 = vmatpush.bf16.msra.mxu0 0
  %697 = vmatpush.bf16.msra.mxu0 %v682
  %698 = vmatmul.bf16.gmra.mxu0 %v685
  %v699 = vpop.f32.mrf.mxu0
  %v700 = vadd.f32 0.0, %v699
  %v701 = vpop.f32.mrf.mxu0
  %v702 = vadd.f32 0.0, %v701
  %703 = vmatmul.bf16.gmra.mxu0 %v688
  %v704 = vpop.f32.mrf.mxu0
  %v705 = vadd.f32 0.0, %v704
  %v706 = vpop.f32.mrf.mxu0
  %v707 = vadd.f32 0.0, %v706
  %708 = vdwg.mxu0
  %v709 = vadd.f32 %v655, %v700
  %v710 = vadd.f32 %v656, %v702
  %v711 = vadd.f32 %v657, %v705
  %v712 = vadd.f32 %v658, %v707
  %s713 = scalar_lea.vmem %s3, 128
  %v714 = vld [vmem:[%s713] sm:$0xf]
  %v715 = vld [vmem:[%s713 + $0x4] sm:$0xf]
  %v716 = vld [vmem:[%s713 + $0x8] sm:$0xf]
  %v717 = vld [vmem:[%s713 + $0xc] sm:$0xf]
  %v722 = vunpack.c.l.b16 %v714
  %v723 = vunpack.c.l.b16 %v715
  %v724 = vunpack.c.l.b16 %v716
  %v725 = vunpack.c.l.b16 %v717
  %v726 = vpack.c.b16 %v723, %v722
  %v727 = vpack.c.b16 %v725, %v724
  %728 = vrot.lane.b32.xlu0 %v676, 112
  %v729 = vpop.permute.xlu0 %728
  %v732 = vsel %vm362, %v726, 0
  %v735 = vsel %vm362, %v727, 0
  %737 = vmatpush.bf16.msra.mxu0 0
  %738 = vmatpush.bf16.msra.mxu0 0
  %739 = vmatpush.bf16.msra.mxu0 0
  %740 = vmatpush.bf16.msra.mxu0 0
  %741 = vmatpush.bf16.msra.mxu0 0
  %742 = vmatpush.bf16.msra.mxu0 0
  %743 = vmatpush.bf16.msra.mxu0 0
  %744 = vmatpush.bf16.msra.mxu0 %v729
  %745 = vmatmul.bf16.gmra.mxu0 %v732
  %v746 = vpop.f32.mrf.mxu0
  %v747 = vadd.f32 0.0, %v746
  %v748 = vpop.f32.mrf.mxu0
  %v749 = vadd.f32 0.0, %v748
  %750 = vmatmul.bf16.gmra.mxu0 %v735
  %v751 = vpop.f32.mrf.mxu0
  %v752 = vadd.f32 0.0, %v751
  %v753 = vpop.f32.mrf.mxu0
  %v754 = vadd.f32 0.0, %v753
  %755 = vdwg.mxu0
  %v756 = vadd.f32 %v709, %v747
  %v757 = vadd.f32 %v710, %v749
  %v758 = vadd.f32 %v711, %v752
  %v759 = vadd.f32 %v712, %v754
  %v760 = vld [vmem:[%s4] sm:$0xff]
  %v761 = vld [vmem:[%s4 + $0x8] sm:$0xff]
  %v762 = vld [vmem:[%s4 + $0x10] sm:$0xff]
  %v763 = vld [vmem:[%s4 + $0x18] sm:$0xff]
  %765 = vset.pattern.permute.xlu0 0
  %766 = vperm.xlu0 %765, %v760
  %v767 = vpop.permute.xlu0 %766
  %770 = vset.pattern.permute.xlu0 0
  %771 = vperm.xlu0 %770, %v761
  %v772 = vpop.permute.xlu0 %771
  %775 = vset.pattern.permute.xlu0 0
  %776 = vperm.xlu0 %775, %v762
  %v777 = vpop.permute.xlu0 %776
  %780 = vset.pattern.permute.xlu0 0
  %781 = vperm.xlu0 %780, %v763
  %v782 = vpop.permute.xlu0 %781
  %v784 = vadd.f32 %v756, %v767
  %v785 = vadd.f32 %v757, %v772
  %v786 = vadd.f32 %v758, %v777
  %v787 = vadd.f32 %v759, %v782
  %v788 = vmax.f32 %v784, 0.0
  %v789 = vmax.f32 %v785, 0.0
  %v790 = vmax.f32 %v786, 0.0
  %v791 = vmax.f32 %v787, 0.0
  %v792 = vpack.c.bf16 %v788, %v788
  %v793 = vpack.c.bf16 %v789, %v789
  %v794 = vpack.c.bf16 %v790, %v790
  %v795 = vpack.c.bf16 %v791, %v791
  %v796 = vld [vmem:[%s5] sm:$0xf]
  %v797 = vld [vmem:[%s5 + $0x4] sm:$0xf]
  %v798 = vld [vmem:[%s5 + $0x8] sm:$0xf]
  %v799 = vld [vmem:[%s5 + $0xc] sm:$0xf]
  %v800 = vld [vmem:[%s5 + $0x10] sm:$0xf]
  %v801 = vld [vmem:[%s5 + $0x14] sm:$0xf]
  %v802 = vld [vmem:[%s5 + $0x18] sm:$0xf]
  %v803 = vld [vmem:[%s5 + $0x1c] sm:$0xf]
  %s804 = scalar_lea.vmem %s5, 32
  %v805 = vld [vmem:[%s804] sm:$0xf]
  %v806 = vld [vmem:[%s804 + $0x4] sm:$0xf]
  %v807 = vld [vmem:[%s804 + $0x8] sm:$0xf]
  %v808 = vld [vmem:[%s804 + $0xc] sm:$0xf]
  %v809 = vld [vmem:[%s804 + $0x10] sm:$0xf]
  %v810 = vld [vmem:[%s804 + $0x14] sm:$0xf]
  %v811 = vld [vmem:[%s804 + $0x18] sm:$0xf]
  %v812 = vld [vmem:[%s804 + $0x1c] sm:$0xf]
  %v821 = vunpack.c.l.b16 %v805
  %v822 = vunpack.c.l.b16 %v806
  %v823 = vunpack.c.l.b16 %v807
  %v824 = vunpack.c.l.b16 %v808
  %v825 = vunpack.c.l.b16 %v809
  %v826 = vunpack.c.l.b16 %v810
  %v827 = vunpack.c.l.b16 %v811
  %v828 = vunpack.c.l.b16 %v812
  %v829 = vpack.c.b16 %v822, %v821
  %v830 = vpack.c.b16 %v824, %v823
  %v831 = vpack.c.b16 %v826, %v825
  %v832 = vpack.c.b16 %v828, %v827
  %v837 = vunpack.c.l.b16 %v792
  %v838 = vunpack.c.l.b16 %v793
  %v839 = vunpack.c.l.b16 %v794
  %v840 = vunpack.c.l.b16 %v795
  %v841 = vpack.c.b16 %v838, %v837
  %v842 = vpack.c.b16 %v840, %v839
  %843 = vrot.lane.b32.xlu0 %v841, 126
  %v844 = vpop.permute.xlu0 %843
  %845 = vrot.lane.b32.xlu0 %v842, 126
  %v846 = vpop.permute.xlu0 %845
  %vm849 = vcmask 261120
  %v851 = vsel %vm849, %v829, 0
  %v854 = vsel %vm849, %v830, 0
  %v857 = vsel %vm849, %v831, 0
  %v860 = vsel %vm849, %v832, 0
  %862 = vmatpush.bf16.msra.mxu0 0
  %863 = vmatpush.bf16.msra.mxu0 0
  %864 = vmatpush.bf16.msra.mxu0 0
  %865 = vmatpush.bf16.msra.mxu0 0
  %866 = vmatpush.bf16.msra.mxu0 0
  %867 = vmatpush.bf16.msra.mxu0 0
  %868 = vmatpush.bf16.msra.mxu0 %v846
  %869 = vmatpush.bf16.msra.mxu0 %v844
  %870 = vmatmul.bf16.gmra.mxu0 %v851
  %v871 = vpop.f32.mrf.mxu0
  %v872 = vadd.f32 0.0, %v871
  %v873 = vpop.f32.mrf.mxu0
  %v874 = vadd.f32 0.0, %v873
  %875 = vmatmul.bf16.gmra.mxu0 %v854
  %v876 = vpop.f32.mrf.mxu0
  %v877 = vadd.f32 0.0, %v876
  %v878 = vpop.f32.mrf.mxu0
  %v879 = vadd.f32 0.0, %v878
  %880 = vmatmul.bf16.gmra.mxu0 %v857
  %v881 = vpop.f32.mrf.mxu0
  %v882 = vadd.f32 0.0, %v881
  %v883 = vpop.f32.mrf.mxu0
  %v884 = vadd.f32 0.0, %v883
  %885 = vmatmul.bf16.gmra.mxu0 %v860
  %v886 = vpop.f32.mrf.mxu0
  %v887 = vadd.f32 0.0, %v886
  %v888 = vpop.f32.mrf.mxu0
  %v889 = vadd.f32 0.0, %v888
  %890 = vdwg.mxu0
  %v899 = vunpack.c.l.b16 %v796
  %v900 = vunpack.c.l.b16 %v797
  %v901 = vunpack.c.l.b16 %v798
  %v902 = vunpack.c.l.b16 %v799
  %v903 = vunpack.c.l.b16 %v800
  %v904 = vunpack.c.l.b16 %v801
  %v905 = vunpack.c.l.b16 %v802
  %v906 = vunpack.c.l.b16 %v803
  %v907 = vpack.c.b16 %v900, %v899
  %v908 = vpack.c.b16 %v902, %v901
  %v909 = vpack.c.b16 %v904, %v903
  %v910 = vpack.c.b16 %v906, %v905
  %v914 = vsel %vm849, %v907, 0
  %v917 = vsel %vm849, %v908, 0
  %v920 = vsel %vm849, %v909, 0
  %v923 = vsel %vm849, %v910, 0
  %925 = vmatpush.bf16.msra.mxu0 0
  %926 = vmatpush.bf16.msra.mxu0 0
  %927 = vmatpush.bf16.msra.mxu0 0
  %928 = vmatpush.bf16.msra.mxu0 0
  %929 = vmatpush.bf16.msra.mxu0 0
  %930 = vmatpush.bf16.msra.mxu0 0
  %931 = vmatpush.bf16.msra.mxu0 %v842
  %932 = vmatpush.bf16.msra.mxu0 %v841
  %933 = vmatmul.bf16.gmra.mxu0 %v914
  %v934 = vpop.f32.mrf.mxu0
  %v935 = vadd.f32 %v872, %v934
  %v936 = vpop.f32.mrf.mxu0
  %v937 = vadd.f32 %v874, %v936
  %938 = vmatmul.bf16.gmra.mxu0 %v917
  %v939 = vpop.f32.mrf.mxu0
  %v940 = vadd.f32 %v877, %v939
  %v941 = vpop.f32.mrf.mxu0
  %v942 = vadd.f32 %v879, %v941
  %943 = vmatmul.bf16.gmra.mxu0 %v920
  %v944 = vpop.f32.mrf.mxu0
  %v945 = vadd.f32 %v882, %v944
  %v946 = vpop.f32.mrf.mxu0
  %v947 = vadd.f32 %v884, %v946
  %948 = vmatmul.bf16.gmra.mxu0 %v923
  %v949 = vpop.f32.mrf.mxu0
  %v950 = vadd.f32 %v887, %v949
  %v951 = vpop.f32.mrf.mxu0
  %v952 = vadd.f32 %v889, %v951
  %953 = vdwg.mxu0
  %s954 = scalar_lea.vmem %s5, 64
  %v955 = vld [vmem:[%s954] sm:$0xf]
  %v956 = vld [vmem:[%s954 + $0x4] sm:$0xf]
  %v957 = vld [vmem:[%s954 + $0x8] sm:$0xf]
  %v958 = vld [vmem:[%s954 + $0xc] sm:$0xf]
  %v959 = vld [vmem:[%s954 + $0x10] sm:$0xf]
  %v960 = vld [vmem:[%s954 + $0x14] sm:$0xf]
  %v961 = vld [vmem:[%s954 + $0x18] sm:$0xf]
  %v962 = vld [vmem:[%s954 + $0x1c] sm:$0xf]
  %v971 = vunpack.c.l.b16 %v955
  %v972 = vunpack.c.l.b16 %v956
  %v973 = vunpack.c.l.b16 %v957
  %v974 = vunpack.c.l.b16 %v958
  %v975 = vunpack.c.l.b16 %v959
  %v976 = vunpack.c.l.b16 %v960
  %v977 = vunpack.c.l.b16 %v961
  %v978 = vunpack.c.l.b16 %v962
  %v979 = vpack.c.b16 %v972, %v971
  %v980 = vpack.c.b16 %v974, %v973
  %v981 = vpack.c.b16 %v976, %v975
  %v982 = vpack.c.b16 %v978, %v977
  %983 = vrot.lane.b32.xlu0 %v841, 124
  %v984 = vpop.permute.xlu0 %983
  %985 = vrot.lane.b32.xlu0 %v842, 124
  %v986 = vpop.permute.xlu0 %985
  %v990 = vsel %vm849, %v979, 0
  %v993 = vsel %vm849, %v980, 0
  %v996 = vsel %vm849, %v981, 0
  %v999 = vsel %vm849, %v982, 0
  %1001 = vmatpush.bf16.msra.mxu0 0
  %1002 = vmatpush.bf16.msra.mxu0 0
  %1003 = vmatpush.bf16.msra.mxu0 0
  %1004 = vmatpush.bf16.msra.mxu0 0
  %1005 = vmatpush.bf16.msra.mxu0 0
  %1006 = vmatpush.bf16.msra.mxu0 0
  %1007 = vmatpush.bf16.msra.mxu0 %v986
  %1008 = vmatpush.bf16.msra.mxu0 %v984
  %1009 = vmatmul.bf16.gmra.mxu0 %v990
  %v1010 = vpop.f32.mrf.mxu0
  %v1011 = vadd.f32 0.0, %v1010
  %v1012 = vpop.f32.mrf.mxu0
  %v1013 = vadd.f32 0.0, %v1012
  %1014 = vmatmul.bf16.gmra.mxu0 %v993
  %v1015 = vpop.f32.mrf.mxu0
  %v1016 = vadd.f32 0.0, %v1015
  %v1017 = vpop.f32.mrf.mxu0
  %v1018 = vadd.f32 0.0, %v1017
  %1019 = vmatmul.bf16.gmra.mxu0 %v996
  %v1020 = vpop.f32.mrf.mxu0
  %v1021 = vadd.f32 0.0, %v1020
  %v1022 = vpop.f32.mrf.mxu0
  %v1023 = vadd.f32 0.0, %v1022
  %1024 = vmatmul.bf16.gmra.mxu0 %v999
  %v1025 = vpop.f32.mrf.mxu0
  %v1026 = vadd.f32 0.0, %v1025
  %v1027 = vpop.f32.mrf.mxu0
  %v1028 = vadd.f32 0.0, %v1027
  %1029 = vdwg.mxu0
  %v1030 = vadd.f32 %v935, %v1011
  %v1031 = vadd.f32 %v937, %v1013
  %v1032 = vadd.f32 %v940, %v1016
  %v1033 = vadd.f32 %v942, %v1018
  %v1034 = vadd.f32 %v945, %v1021
  %v1035 = vadd.f32 %v947, %v1023
  %v1036 = vadd.f32 %v950, %v1026
  %v1037 = vadd.f32 %v952, %v1028
  %s1038 = scalar_lea.vmem %s5, 96
  %v1039 = vld [vmem:[%s1038] sm:$0xf]
  %v1040 = vld [vmem:[%s1038 + $0x4] sm:$0xf]
  %v1041 = vld [vmem:[%s1038 + $0x8] sm:$0xf]
  %v1042 = vld [vmem:[%s1038 + $0xc] sm:$0xf]
  %v1043 = vld [vmem:[%s1038 + $0x10] sm:$0xf]
  %v1044 = vld [vmem:[%s1038 + $0x14] sm:$0xf]
  %v1045 = vld [vmem:[%s1038 + $0x18] sm:$0xf]
  %v1046 = vld [vmem:[%s1038 + $0x1c] sm:$0xf]
  %v1055 = vunpack.c.l.b16 %v1039
  %v1056 = vunpack.c.l.b16 %v1040
  %v1057 = vunpack.c.l.b16 %v1041
  %v1058 = vunpack.c.l.b16 %v1042
  %v1059 = vunpack.c.l.b16 %v1043
  %v1060 = vunpack.c.l.b16 %v1044
  %v1061 = vunpack.c.l.b16 %v1045
  %v1062 = vunpack.c.l.b16 %v1046
  %v1063 = vpack.c.b16 %v1056, %v1055
  %v1064 = vpack.c.b16 %v1058, %v1057
  %v1065 = vpack.c.b16 %v1060, %v1059
  %v1066 = vpack.c.b16 %v1062, %v1061
  %1067 = vrot.lane.b32.xlu0 %v841, 122
  %v1068 = vpop.permute.xlu0 %1067
  %1069 = vrot.lane.b32.xlu0 %v842, 122
  %v1070 = vpop.permute.xlu0 %1069
  %v1074 = vsel %vm849, %v1063, 0
  %v1077 = vsel %vm849, %v1064, 0
  %v1080 = vsel %vm849, %v1065, 0
  %v1083 = vsel %vm849, %v1066, 0
  %1085 = vmatpush.bf16.msra.mxu0 0
  %1086 = vmatpush.bf16.msra.mxu0 0
  %1087 = vmatpush.bf16.msra.mxu0 0
  %1088 = vmatpush.bf16.msra.mxu0 0
  %1089 = vmatpush.bf16.msra.mxu0 0
  %1090 = vmatpush.bf16.msra.mxu0 0
  %1091 = vmatpush.bf16.msra.mxu0 %v1070
  %1092 = vmatpush.bf16.msra.mxu0 %v1068
  %1093 = vmatmul.bf16.gmra.mxu0 %v1074
  %v1094 = vpop.f32.mrf.mxu0
  %v1095 = vadd.f32 0.0, %v1094
  %v1096 = vpop.f32.mrf.mxu0
  %v1097 = vadd.f32 0.0, %v1096
  %1098 = vmatmul.bf16.gmra.mxu0 %v1077
  %v1099 = vpop.f32.mrf.mxu0
  %v1100 = vadd.f32 0.0, %v1099
  %v1101 = vpop.f32.mrf.mxu0
  %v1102 = vadd.f32 0.0, %v1101
  %1103 = vmatmul.bf16.gmra.mxu0 %v1080
  %v1104 = vpop.f32.mrf.mxu0
  %v1105 = vadd.f32 0.0, %v1104
  %v1106 = vpop.f32.mrf.mxu0
  %v1107 = vadd.f32 0.0, %v1106
  %1108 = vmatmul.bf16.gmra.mxu0 %v1083
  %v1109 = vpop.f32.mrf.mxu0
  %v1110 = vadd.f32 0.0, %v1109
  %v1111 = vpop.f32.mrf.mxu0
  %v1112 = vadd.f32 0.0, %v1111
  %1113 = vdwg.mxu0
  %v1114 = vadd.f32 %v1030, %v1095
  %v1115 = vadd.f32 %v1031, %v1097
  %v1116 = vadd.f32 %v1032, %v1100
  %v1117 = vadd.f32 %v1033, %v1102
  %v1118 = vadd.f32 %v1034, %v1105
  %v1119 = vadd.f32 %v1035, %v1107
  %v1120 = vadd.f32 %v1036, %v1110
  %v1121 = vadd.f32 %v1037, %v1112
  %s1122 = scalar_lea.vmem %s5, 128
  %v1123 = vld [vmem:[%s1122] sm:$0xf]
  %v1124 = vld [vmem:[%s1122 + $0x4] sm:$0xf]
  %v1125 = vld [vmem:[%s1122 + $0x8] sm:$0xf]
  %v1126 = vld [vmem:[%s1122 + $0xc] sm:$0xf]
  %v1127 = vld [vmem:[%s1122 + $0x10] sm:$0xf]
  %v1128 = vld [vmem:[%s1122 + $0x14] sm:$0xf]
  %v1129 = vld [vmem:[%s1122 + $0x18] sm:$0xf]
  %v1130 = vld [vmem:[%s1122 + $0x1c] sm:$0xf]
  %v1139 = vunpack.c.l.b16 %v1123
  %v1140 = vunpack.c.l.b16 %v1124
  %v1141 = vunpack.c.l.b16 %v1125
  %v1142 = vunpack.c.l.b16 %v1126
  %v1143 = vunpack.c.l.b16 %v1127
  %v1144 = vunpack.c.l.b16 %v1128
  %v1145 = vunpack.c.l.b16 %v1129
  %v1146 = vunpack.c.l.b16 %v1130
  %v1147 = vpack.c.b16 %v1140, %v1139
  %v1148 = vpack.c.b16 %v1142, %v1141
  %v1149 = vpack.c.b16 %v1144, %v1143
  %v1150 = vpack.c.b16 %v1146, %v1145
  %1151 = vrot.lane.b32.xlu0 %v841, 120
  %v1152 = vpop.permute.xlu0 %1151
  %1153 = vrot.lane.b32.xlu0 %v842, 120
  %v1154 = vpop.permute.xlu0 %1153
  %v1158 = vsel %vm849, %v1147, 0
  %v1161 = vsel %vm849, %v1148, 0
  %v1164 = vsel %vm849, %v1149, 0
  %v1167 = vsel %vm849, %v1150, 0
  %1169 = vmatpush.bf16.msra.mxu0 0
  %1170 = vmatpush.bf16.msra.mxu0 0
  %1171 = vmatpush.bf16.msra.mxu0 0
  %1172 = vmatpush.bf16.msra.mxu0 0
  %1173 = vmatpush.bf16.msra.mxu0 0
  %1174 = vmatpush.bf16.msra.mxu0 0
  %1175 = vmatpush.bf16.msra.mxu0 %v1154
  %1176 = vmatpush.bf16.msra.mxu0 %v1152
  %1177 = vmatmul.bf16.gmra.mxu0 %v1158
  %v1178 = vpop.f32.mrf.mxu0
  %v1179 = vadd.f32 0.0, %v1178
  %v1180 = vpop.f32.mrf.mxu0
  %v1181 = vadd.f32 0.0, %v1180
  %1182 = vmatmul.bf16.gmra.mxu0 %v1161
  %v1183 = vpop.f32.mrf.mxu0
  %v1184 = vadd.f32 0.0, %v1183
  %v1185 = vpop.f32.mrf.mxu0
  %v1186 = vadd.f32 0.0, %v1185
  %1187 = vmatmul.bf16.gmra.mxu0 %v1164
  %v1188 = vpop.f32.mrf.mxu0
  %v1189 = vadd.f32 0.0, %v1188
  %v1190 = vpop.f32.mrf.mxu0
  %v1191 = vadd.f32 0.0, %v1190
  %1192 = vmatmul.bf16.gmra.mxu0 %v1167
  %v1193 = vpop.f32.mrf.mxu0
  %v1194 = vadd.f32 0.0, %v1193
  %v1195 = vpop.f32.mrf.mxu0
  %v1196 = vadd.f32 0.0, %v1195
  %1197 = vdwg.mxu0
  %v1198 = vadd.f32 %v1114, %v1179
  %v1199 = vadd.f32 %v1115, %v1181
  %v1200 = vadd.f32 %v1116, %v1184
  %v1201 = vadd.f32 %v1117, %v1186
  %v1202 = vadd.f32 %v1118, %v1189
  %v1203 = vadd.f32 %v1119, %v1191
  %v1204 = vadd.f32 %v1120, %v1194
  %v1205 = vadd.f32 %v1121, %v1196
  %s1206 = scalar_lea.vmem %s5, 160
  %v1207 = vld [vmem:[%s1206] sm:$0xf]
  %v1208 = vld [vmem:[%s1206 + $0x4] sm:$0xf]
  %v1209 = vld [vmem:[%s1206 + $0x8] sm:$0xf]
  %v1210 = vld [vmem:[%s1206 + $0xc] sm:$0xf]
  %v1211 = vld [vmem:[%s1206 + $0x10] sm:$0xf]
  %v1212 = vld [vmem:[%s1206 + $0x14] sm:$0xf]
  %v1213 = vld [vmem:[%s1206 + $0x18] sm:$0xf]
  %v1214 = vld [vmem:[%s1206 + $0x1c] sm:$0xf]
  %v1223 = vunpack.c.l.b16 %v1207
  %v1224 = vunpack.c.l.b16 %v1208
  %v1225 = vunpack.c.l.b16 %v1209
  %v1226 = vunpack.c.l.b16 %v1210
  %v1227 = vunpack.c.l.b16 %v1211
  %v1228 = vunpack.c.l.b16 %v1212
  %v1229 = vunpack.c.l.b16 %v1213
  %v1230 = vunpack.c.l.b16 %v1214
  %v1231 = vpack.c.b16 %v1224, %v1223
  %v1232 = vpack.c.b16 %v1226, %v1225
  %v1233 = vpack.c.b16 %v1228, %v1227
  %v1234 = vpack.c.b16 %v1230, %v1229
  %1235 = vrot.lane.b32.xlu0 %v841, 118
  %v1236 = vpop.permute.xlu0 %1235
  %1237 = vrot.lane.b32.xlu0 %v842, 118
  %v1238 = vpop.permute.xlu0 %1237
  %v1242 = vsel %vm849, %v1231, 0
  %v1245 = vsel %vm849, %v1232, 0
  %v1248 = vsel %vm849, %v1233, 0
  %v1251 = vsel %vm849, %v1234, 0
  %1253 = vmatpush.bf16.msra.mxu0 0
  %1254 = vmatpush.bf16.msra.mxu0 0
  %1255 = vmatpush.bf16.msra.mxu0 0
  %1256 = vmatpush.bf16.msra.mxu0 0
  %1257 = vmatpush.bf16.msra.mxu0 0
  %1258 = vmatpush.bf16.msra.mxu0 0
  %1259 = vmatpush.bf16.msra.mxu0 %v1238
  %1260 = vmatpush.bf16.msra.mxu0 %v1236
  %1261 = vmatmul.bf16.gmra.mxu0 %v1242
  %v1262 = vpop.f32.mrf.mxu0
  %v1263 = vadd.f32 0.0, %v1262
  %v1264 = vpop.f32.mrf.mxu0
  %v1265 = vadd.f32 0.0, %v1264
  %1266 = vmatmul.bf16.gmra.mxu0 %v1245
  %v1267 = vpop.f32.mrf.mxu0
  %v1268 = vadd.f32 0.0, %v1267
  %v1269 = vpop.f32.mrf.mxu0
  %v1270 = vadd.f32 0.0, %v1269
  %1271 = vmatmul.bf16.gmra.mxu0 %v1248
  %v1272 = vpop.f32.mrf.mxu0
  %v1273 = vadd.f32 0.0, %v1272
  %v1274 = vpop.f32.mrf.mxu0
  %v1275 = vadd.f32 0.0, %v1274
  %1276 = vmatmul.bf16.gmra.mxu0 %v1251
  %v1277 = vpop.f32.mrf.mxu0
  %v1278 = vadd.f32 0.0, %v1277
  %v1279 = vpop.f32.mrf.mxu0
  %v1280 = vadd.f32 0.0, %v1279
  %1281 = vdwg.mxu0
  %v1282 = vadd.f32 %v1198, %v1263
  %v1283 = vadd.f32 %v1199, %v1265
  %v1284 = vadd.f32 %v1200, %v1268
  %v1285 = vadd.f32 %v1201, %v1270
  %v1286 = vadd.f32 %v1202, %v1273
  %v1287 = vadd.f32 %v1203, %v1275
  %v1288 = vadd.f32 %v1204, %v1278
  %v1289 = vadd.f32 %v1205, %v1280
  %s1290 = scalar_lea.vmem %s5, 192
  %v1291 = vld [vmem:[%s1290] sm:$0xf]
  %v1292 = vld [vmem:[%s1290 + $0x4] sm:$0xf]
  %v1293 = vld [vmem:[%s1290 + $0x8] sm:$0xf]
  %v1294 = vld [vmem:[%s1290 + $0xc] sm:$0xf]
  %v1295 = vld [vmem:[%s1290 + $0x10] sm:$0xf]
  %v1296 = vld [vmem:[%s1290 + $0x14] sm:$0xf]
  %v1297 = vld [vmem:[%s1290 + $0x18] sm:$0xf]
  %v1298 = vld [vmem:[%s1290 + $0x1c] sm:$0xf]
  %v1307 = vunpack.c.l.b16 %v1291
  %v1308 = vunpack.c.l.b16 %v1292
  %v1309 = vunpack.c.l.b16 %v1293
  %v1310 = vunpack.c.l.b16 %v1294
  %v1311 = vunpack.c.l.b16 %v1295
  %v1312 = vunpack.c.l.b16 %v1296
  %v1313 = vunpack.c.l.b16 %v1297
  %v1314 = vunpack.c.l.b16 %v1298
  %v1315 = vpack.c.b16 %v1308, %v1307
  %v1316 = vpack.c.b16 %v1310, %v1309
  %v1317 = vpack.c.b16 %v1312, %v1311
  %v1318 = vpack.c.b16 %v1314, %v1313
  %1319 = vrot.lane.b32.xlu0 %v841, 116
  %v1320 = vpop.permute.xlu0 %1319
  %1321 = vrot.lane.b32.xlu0 %v842, 116
  %v1322 = vpop.permute.xlu0 %1321
  %v1326 = vsel %vm849, %v1315, 0
  %v1329 = vsel %vm849, %v1316, 0
  %v1332 = vsel %vm849, %v1317, 0
  %v1335 = vsel %vm849, %v1318, 0
  %1337 = vmatpush.bf16.msra.mxu0 0
  %1338 = vmatpush.bf16.msra.mxu0 0
  %1339 = vmatpush.bf16.msra.mxu0 0
  %1340 = vmatpush.bf16.msra.mxu0 0
  %1341 = vmatpush.bf16.msra.mxu0 0
  %1342 = vmatpush.bf16.msra.mxu0 0
  %1343 = vmatpush.bf16.msra.mxu0 %v1322
  %1344 = vmatpush.bf16.msra.mxu0 %v1320
  %1345 = vmatmul.bf16.gmra.mxu0 %v1326
  %v1346 = vpop.f32.mrf.mxu0
  %v1347 = vadd.f32 0.0, %v1346
  %v1348 = vpop.f32.mrf.mxu0
  %v1349 = vadd.f32 0.0, %v1348
  %1350 = vmatmul.bf16.gmra.mxu0 %v1329
  %v1351 = vpop.f32.mrf.mxu0
  %v1352 = vadd.f32 0.0, %v1351
  %v1353 = vpop.f32.mrf.mxu0
  %v1354 = vadd.f32 0.0, %v1353
  %1355 = vmatmul.bf16.gmra.mxu0 %v1332
  %v1356 = vpop.f32.mrf.mxu0
  %v1357 = vadd.f32 0.0, %v1356
  %v1358 = vpop.f32.mrf.mxu0
  %v1359 = vadd.f32 0.0, %v1358
  %1360 = vmatmul.bf16.gmra.mxu0 %v1335
  %v1361 = vpop.f32.mrf.mxu0
  %v1362 = vadd.f32 0.0, %v1361
  %v1363 = vpop.f32.mrf.mxu0
  %v1364 = vadd.f32 0.0, %v1363
  %1365 = vdwg.mxu0
  %v1366 = vadd.f32 %v1282, %v1347
  %v1367 = vadd.f32 %v1283, %v1349
  %v1368 = vadd.f32 %v1284, %v1352
  %v1369 = vadd.f32 %v1285, %v1354
  %v1370 = vadd.f32 %v1286, %v1357
  %v1371 = vadd.f32 %v1287, %v1359
  %v1372 = vadd.f32 %v1288, %v1362
  %v1373 = vadd.f32 %v1289, %v1364
  %s1374 = scalar_lea.vmem %s5, 224
  %v1375 = vld [vmem:[%s1374] sm:$0xf]
  %v1376 = vld [vmem:[%s1374 + $0x4] sm:$0xf]
  %v1377 = vld [vmem:[%s1374 + $0x8] sm:$0xf]
  %v1378 = vld [vmem:[%s1374 + $0xc] sm:$0xf]
  %v1379 = vld [vmem:[%s1374 + $0x10] sm:$0xf]
  %v1380 = vld [vmem:[%s1374 + $0x14] sm:$0xf]
  %v1381 = vld [vmem:[%s1374 + $0x18] sm:$0xf]
  %v1382 = vld [vmem:[%s1374 + $0x1c] sm:$0xf]
  %v1391 = vunpack.c.l.b16 %v1375
  %v1392 = vunpack.c.l.b16 %v1376
  %v1393 = vunpack.c.l.b16 %v1377
  %v1394 = vunpack.c.l.b16 %v1378
  %v1395 = vunpack.c.l.b16 %v1379
  %v1396 = vunpack.c.l.b16 %v1380
  %v1397 = vunpack.c.l.b16 %v1381
  %v1398 = vunpack.c.l.b16 %v1382
  %v1399 = vpack.c.b16 %v1392, %v1391
  %v1400 = vpack.c.b16 %v1394, %v1393
  %v1401 = vpack.c.b16 %v1396, %v1395
  %v1402 = vpack.c.b16 %v1398, %v1397
  %1403 = vrot.lane.b32.xlu0 %v841, 114
  %v1404 = vpop.permute.xlu0 %1403
  %1405 = vrot.lane.b32.xlu0 %v842, 114
  %v1406 = vpop.permute.xlu0 %1405
  %v1410 = vsel %vm849, %v1399, 0
  %v1413 = vsel %vm849, %v1400, 0
  %v1416 = vsel %vm849, %v1401, 0
  %v1419 = vsel %vm849, %v1402, 0
  %1421 = vmatpush.bf16.msra.mxu0 0
  %1422 = vmatpush.bf16.msra.mxu0 0
  %1423 = vmatpush.bf16.msra.mxu0 0
  %1424 = vmatpush.bf16.msra.mxu0 0
  %1425 = vmatpush.bf16.msra.mxu0 0
  %1426 = vmatpush.bf16.msra.mxu0 0
  %1427 = vmatpush.bf16.msra.mxu0 %v1406
  %1428 = vmatpush.bf16.msra.mxu0 %v1404
  %1429 = vmatmul.bf16.gmra.mxu0 %v1410
  %v1430 = vpop.f32.mrf.mxu0
  %v1431 = vadd.f32 0.0, %v1430
  %v1432 = vpop.f32.mrf.mxu0
  %v1433 = vadd.f32 0.0, %v1432
  %1434 = vmatmul.bf16.gmra.mxu0 %v1413
  %v1435 = vpop.f32.mrf.mxu0
  %v1436 = vadd.f32 0.0, %v1435
  %v1437 = vpop.f32.mrf.mxu0
  %v1438 = vadd.f32 0.0, %v1437
  %1439 = vmatmul.bf16.gmra.mxu0 %v1416
  %v1440 = vpop.f32.mrf.mxu0
  %v1441 = vadd.f32 0.0, %v1440
  %v1442 = vpop.f32.mrf.mxu0
  %v1443 = vadd.f32 0.0, %v1442
  %1444 = vmatmul.bf16.gmra.mxu0 %v1419
  %v1445 = vpop.f32.mrf.mxu0
  %v1446 = vadd.f32 0.0, %v1445
  %v1447 = vpop.f32.mrf.mxu0
  %v1448 = vadd.f32 0.0, %v1447
  %1449 = vdwg.mxu0
  %v1450 = vadd.f32 %v1366, %v1431
  %v1451 = vadd.f32 %v1367, %v1433
  %v1452 = vadd.f32 %v1368, %v1436
  %v1453 = vadd.f32 %v1369, %v1438
  %v1454 = vadd.f32 %v1370, %v1441
  %v1455 = vadd.f32 %v1371, %v1443
  %v1456 = vadd.f32 %v1372, %v1446
  %v1457 = vadd.f32 %v1373, %v1448
  %s1458 = scalar_lea.vmem %s5, 256
  %v1459 = vld [vmem:[%s1458] sm:$0xf]
  %v1460 = vld [vmem:[%s1458 + $0x4] sm:$0xf]
  %v1461 = vld [vmem:[%s1458 + $0x8] sm:$0xf]
  %v1462 = vld [vmem:[%s1458 + $0xc] sm:$0xf]
  %v1463 = vld [vmem:[%s1458 + $0x10] sm:$0xf]
  %v1464 = vld [vmem:[%s1458 + $0x14] sm:$0xf]
  %v1465 = vld [vmem:[%s1458 + $0x18] sm:$0xf]
  %v1466 = vld [vmem:[%s1458 + $0x1c] sm:$0xf]
  %v1475 = vunpack.c.l.b16 %v1459
  %v1476 = vunpack.c.l.b16 %v1460
  %v1477 = vunpack.c.l.b16 %v1461
  %v1478 = vunpack.c.l.b16 %v1462
  %v1479 = vunpack.c.l.b16 %v1463
  %v1480 = vunpack.c.l.b16 %v1464
  %v1481 = vunpack.c.l.b16 %v1465
  %v1482 = vunpack.c.l.b16 %v1466
  %v1483 = vpack.c.b16 %v1476, %v1475
  %v1484 = vpack.c.b16 %v1478, %v1477
  %v1485 = vpack.c.b16 %v1480, %v1479
  %v1486 = vpack.c.b16 %v1482, %v1481
  %1487 = vrot.lane.b32.xlu0 %v841, 112
  %v1488 = vpop.permute.xlu0 %1487
  %1489 = vrot.lane.b32.xlu0 %v842, 112
  %v1490 = vpop.permute.xlu0 %1489
  %v1494 = vsel %vm849, %v1483, 0
  %v1497 = vsel %vm849, %v1484, 0
  %v1500 = vsel %vm849, %v1485, 0
  %v1503 = vsel %vm849, %v1486, 0
  %1505 = vmatpush.bf16.msra.mxu0 0
  %1506 = vmatpush.bf16.msra.mxu0 0
  %1507 = vmatpush.bf16.msra.mxu0 0
  %1508 = vmatpush.bf16.msra.mxu0 0
  %1509 = vmatpush.bf16.msra.mxu0 0
  %1510 = vmatpush.bf16.msra.mxu0 0
  %1511 = vmatpush.bf16.msra.mxu0 %v1490
  %1512 = vmatpush.bf16.msra.mxu0 %v1488
  %1513 = vmatmul.bf16.gmra.mxu0 %v1494
  %v1514 = vpop.f32.mrf.mxu0
  %v1515 = vadd.f32 0.0, %v1514
  %v1516 = vpop.f32.mrf.mxu0
  %v1517 = vadd.f32 0.0, %v1516
  %1518 = vmatmul.bf16.gmra.mxu0 %v1497
  %v1519 = vpop.f32.mrf.mxu0
  %v1520 = vadd.f32 0.0, %v1519
  %v1521 = vpop.f32.mrf.mxu0
  %v1522 = vadd.f32 0.0, %v1521
  %1523 = vmatmul.bf16.gmra.mxu0 %v1500
  %v1524 = vpop.f32.mrf.mxu0
  %v1525 = vadd.f32 0.0, %v1524
  %v1526 = vpop.f32.mrf.mxu0
  %v1527 = vadd.f32 0.0, %v1526
  %1528 = vmatmul.bf16.gmra.mxu0 %v1503
  %v1529 = vpop.f32.mrf.mxu0
  %v1530 = vadd.f32 0.0, %v1529
  %v1531 = vpop.f32.mrf.mxu0
  %v1532 = vadd.f32 0.0, %v1531
  %1533 = vdwg.mxu0
  %v1534 = vadd.f32 %v1450, %v1515
  %v1535 = vadd.f32 %v1451, %v1517
  %v1536 = vadd.f32 %v1452, %v1520
  %v1537 = vadd.f32 %v1453, %v1522
  %v1538 = vadd.f32 %v1454, %v1525
  %v1539 = vadd.f32 %v1455, %v1527
  %v1540 = vadd.f32 %v1456, %v1530
  %v1541 = vadd.f32 %v1457, %v1532
  %v1542 = vld [vmem:[%s6] sm:$0xff]
  %v1543 = vld [vmem:[%s6 + $0x8] sm:$0xff]
  %v1544 = vld [vmem:[%s6 + $0x10] sm:$0xff]
  %v1545 = vld [vmem:[%s6 + $0x18] sm:$0xff]
  %v1546 = vld [vmem:[%s6 + $0x20] sm:$0xff]
  %v1547 = vld [vmem:[%s6 + $0x28] sm:$0xff]
  %v1548 = vld [vmem:[%s6 + $0x30] sm:$0xff]
  %v1549 = vld [vmem:[%s6 + $0x38] sm:$0xff]
  %1551 = vset.pattern.permute.xlu0 0
  %1552 = vperm.xlu0 %1551, %v1542
  %v1553 = vpop.permute.xlu0 %1552
  %1556 = vset.pattern.permute.xlu0 0
  %1557 = vperm.xlu0 %1556, %v1543
  %v1558 = vpop.permute.xlu0 %1557
  %1561 = vset.pattern.permute.xlu0 0
  %1562 = vperm.xlu0 %1561, %v1544
  %v1563 = vpop.permute.xlu0 %1562
  %1566 = vset.pattern.permute.xlu0 0
  %1567 = vperm.xlu0 %1566, %v1545
  %v1568 = vpop.permute.xlu0 %1567
  %1571 = vset.pattern.permute.xlu0 0
  %1572 = vperm.xlu0 %1571, %v1546
  %v1573 = vpop.permute.xlu0 %1572
  %1576 = vset.pattern.permute.xlu0 0
  %1577 = vperm.xlu0 %1576, %v1547
  %v1578 = vpop.permute.xlu0 %1577
  %1581 = vset.pattern.permute.xlu0 0
  %1582 = vperm.xlu0 %1581, %v1548
  %v1583 = vpop.permute.xlu0 %1582
  %1586 = vset.pattern.permute.xlu0 0
  %1587 = vperm.xlu0 %1586, %v1549
  %v1588 = vpop.permute.xlu0 %1587
  %v1590 = vadd.f32 %v1534, %v1553
  %v1591 = vadd.f32 %v1535, %v1558
  %v1592 = vadd.f32 %v1536, %v1563
  %v1593 = vadd.f32 %v1537, %v1568
  %v1594 = vadd.f32 %v1538, %v1573
  %v1595 = vadd.f32 %v1539, %v1578
  %v1596 = vadd.f32 %v1540, %v1583
  %v1597 = vadd.f32 %v1541, %v1588
  %v1598 = vmax.f32 %v1590, 0.0
  %v1599 = vmax.f32 %v1591, 0.0
  %v1600 = vmax.f32 %v1592, 0.0
  %v1601 = vmax.f32 %v1593, 0.0
  %v1602 = vmax.f32 %v1594, 0.0
  %v1603 = vmax.f32 %v1595, 0.0
  %v1604 = vmax.f32 %v1596, 0.0
  %v1605 = vmax.f32 %v1597, 0.0
  %v1606 = vpack.c.bf16 %v1599, %v1598
  %v1607 = vpack.c.bf16 %v1601, %v1600
  %v1608 = vpack.c.bf16 %v1603, %v1602
  %v1609 = vpack.c.bf16 %v1605, %v1604
  %v1610 = vld [vmem:[%s7] sm:$0xf]
  %v1611 = vld [vmem:[%s7 + $0x4] sm:$0xf]
  %v1612 = vld [vmem:[%s7 + $0x8] sm:$0xf]
  %v1613 = vld [vmem:[%s7 + $0xc] sm:$0xf]
  %v1614 = vld [vmem:[%s7 + $0x10] sm:$0xf]
  %v1615 = vld [vmem:[%s7 + $0x14] sm:$0xf]
  %v1616 = vld [vmem:[%s7 + $0x18] sm:$0xf]
  %v1617 = vld [vmem:[%s7 + $0x1c] sm:$0xf]
  %v1618 = vld [vmem:[%s8] sm:$0xff]
  %v1619 = vld [vmem:[%s8 + $0x8] sm:$0xff]
  %v1620 = vld [vmem:[%s8 + $0x10] sm:$0xff]
  %v1621 = vld [vmem:[%s8 + $0x18] sm:$0xff]
  %v1622 = vld [vmem:[%s8 + $0x20] sm:$0xff]
  %v1623 = vld [vmem:[%s8 + $0x28] sm:$0xff]
  %v1624 = vld [vmem:[%s8 + $0x30] sm:$0xff]
  %v1625 = vld [vmem:[%s8 + $0x38] sm:$0xff]
  %1627 = vset.pattern.permute.xlu0 0
  %1628 = vperm.xlu0 %1627, %v1618
  %v1629 = vpop.permute.xlu0 %1628
  %1632 = vset.pattern.permute.xlu0 0
  %1633 = vperm.xlu0 %1632, %v1619
  %v1634 = vpop.permute.xlu0 %1633
  %1637 = vset.pattern.permute.xlu0 0
  %1638 = vperm.xlu0 %1637, %v1620
  %v1639 = vpop.permute.xlu0 %1638
  %1642 = vset.pattern.permute.xlu0 0
  %1643 = vperm.xlu0 %1642, %v1621
  %v1644 = vpop.permute.xlu0 %1643
  %1647 = vset.pattern.permute.xlu0 0
  %1648 = vperm.xlu0 %1647, %v1622
  %v1649 = vpop.permute.xlu0 %1648
  %1652 = vset.pattern.permute.xlu0 0
  %1653 = vperm.xlu0 %1652, %v1623
  %v1654 = vpop.permute.xlu0 %1653
  %1657 = vset.pattern.permute.xlu0 0
  %1658 = vperm.xlu0 %1657, %v1624
  %v1659 = vpop.permute.xlu0 %1658
  %1662 = vset.pattern.permute.xlu0 0
  %1663 = vperm.xlu0 %1662, %v1625
  %v1664 = vpop.permute.xlu0 %1663
  %v1674 = vunpack.c.l.b16 %v1610
  %v1675 = vunpack.c.l.b16 %v1611
  %v1676 = vunpack.c.l.b16 %v1612
  %v1677 = vunpack.c.l.b16 %v1613
  %v1678 = vunpack.c.l.b16 %v1614
  %v1679 = vunpack.c.l.b16 %v1615
  %v1680 = vunpack.c.l.b16 %v1616
  %v1681 = vunpack.c.l.b16 %v1617
  %v1682 = vpack.c.b16 %v1675, %v1674
  %v1683 = vpack.c.b16 %v1677, %v1676
  %v1684 = vpack.c.b16 %v1679, %v1678
  %v1685 = vpack.c.b16 %v1681, %v1680
  %vm1686 = vcmask 523264
  %v1688 = vsel %vm1686, %v1682, 0
  %v1691 = vsel %vm1686, %v1683, 0
  %v1694 = vsel %vm1686, %v1684, 0
  %v1697 = vsel %vm1686, %v1685, 0
  %1699 = vmatpush.bf16.msra.mxu0 0
  %1700 = vmatpush.bf16.msra.mxu0 0
  %1701 = vmatpush.bf16.msra.mxu0 0
  %1702 = vmatpush.bf16.msra.mxu0 0
  %1703 = vmatpush.bf16.msra.mxu0 %v1609
  %1704 = vmatpush.bf16.msra.mxu0 %v1608
  %1705 = vmatpush.bf16.msra.mxu0 %v1607
  %1706 = vmatpush.bf16.msra.mxu0 %v1606
  %1707 = vmatmul.bf16.gmra.mxu0 %v1688
  %v1708 = vpop.f32.mrf.mxu0
  %v1709 = vadd.f32 %v1629, %v1708
  %v1710 = vpop.f32.mrf.mxu0
  %v1711 = vadd.f32 %v1634, %v1710
  %1712 = vmatmul.bf16.gmra.mxu0 %v1691
  %v1713 = vpop.f32.mrf.mxu0
  %v1714 = vadd.f32 %v1639, %v1713
  %v1715 = vpop.f32.mrf.mxu0
  %v1716 = vadd.f32 %v1644, %v1715
  %1717 = vmatmul.bf16.gmra.mxu0 %v1694
  %v1718 = vpop.f32.mrf.mxu0
  %v1719 = vadd.f32 %v1649, %v1718
  %v1720 = vpop.f32.mrf.mxu0
  %v1721 = vadd.f32 %v1654, %v1720
  %1722 = vmatmul.bf16.gmra.mxu0 %v1697
  %v1723 = vpop.f32.mrf.mxu0
  %v1724 = vadd.f32 %v1659, %v1723
  %v1725 = vpop.f32.mrf.mxu0
  %v1726 = vadd.f32 %v1664, %v1725
  %1727 = vdwg.mxu0
  %v1728 = vmax.f32 %v1709, 0.0
  %v1729 = vmax.f32 %v1711, 0.0
  %v1730 = vmax.f32 %v1714, 0.0
  %v1731 = vmax.f32 %v1716, 0.0
  %v1732 = vmax.f32 %v1719, 0.0
  %v1733 = vmax.f32 %v1721, 0.0
  %v1734 = vmax.f32 %v1724, 0.0
  %v1735 = vmax.f32 %v1726, 0.0
  %v1736 = vpack.c.bf16 %v1729, %v1728
  %v1737 = vpack.c.bf16 %v1731, %v1730
  %v1738 = vpack.c.bf16 %v1733, %v1732
  %v1739 = vpack.c.bf16 %v1735, %v1734
  %v1740 = vld [vmem:[%s9] sm:$0x3]
  %v1741 = vld [vmem:[%s10] sm:$0x7]
  %1743 = vset.pattern.permute.xlu0 0
  %1744 = vperm.xlu0 %1743, %v1741
  %v1745 = vpop.permute.xlu0 %1744
  %v1748 = vsel %vm1686, %v1740, 0
  %1750 = vmatpush.bf16.msra.mxu0 0
  %1751 = vmatpush.bf16.msra.mxu0 0
  %1752 = vmatpush.bf16.msra.mxu0 0
  %1753 = vmatpush.bf16.msra.mxu0 0
  %1754 = vmatpush.bf16.msra.mxu0 %v1739
  %1755 = vmatpush.bf16.msra.mxu0 %v1738
  %1756 = vmatpush.bf16.msra.mxu0 %v1737
  %1757 = vmatpush.bf16.msra.mxu0 %v1736
  %1758 = vmatmul.bf16.gmra.mxu0 %v1748
  %v1759 = vpop.f32.mrf.mxu0
  %v1760 = vadd.f32 %v1745, %v1759
  %v1761 = vpop.f32.mrf.mxu0
  %1762 = vdwg.mxu0
  %v1763 = vld [vmem:[%s11] sm:$0x3]
  %v1764 = vld [vmem:[%s12] sm:$0x7]
  %1766 = vset.pattern.permute.xlu0 0
  %1767 = vperm.xlu0 %1766, %v1764
  %v1768 = vpop.permute.xlu0 %1767
  %v1771 = vsel %vm1686, %v1763, 0
  %1773 = vmatpush.bf16.msra.mxu0 0
  %1774 = vmatpush.bf16.msra.mxu0 0
  %1775 = vmatpush.bf16.msra.mxu0 0
  %1776 = vmatpush.bf16.msra.mxu0 0
  %1777 = vmatpush.bf16.msra.mxu0 %v1739
  %1778 = vmatpush.bf16.msra.mxu0 %v1738
  %1779 = vmatpush.bf16.msra.mxu0 %v1737
  %1780 = vmatpush.bf16.msra.mxu0 %v1736
  %1781 = vmatmul.bf16.gmra.mxu0 %v1771
  %v1782 = vpop.f32.mrf.mxu0
  %v1783 = vadd.f32 %v1768, %v1782
  %v1784 = vpop.f32.mrf.mxu0
  %1785 = vdwg.mxu0
  %v1786 = vmax.f32 %v1783, -20.0
  %v1787 = vmin.f32 %v1786, 2.0
  %v1788 = vmul.f32 %v1787, 1.442695
  %v1789 = vpow.pop %v1788
  %v1790 = vld [vmem:[%s13] sm:$0x7]
  %v1791 = vmul.f32 %v1789, %v1790
  %v1792 = vadd.f32 %v1760, %v1791
  %v1793 = vmul.f32 %v1790, -0.5
  %v1794 = vmul.f32 %v1793, %v1790
  %v1795 = vsub.f32 %v1794, %v1787
  %v1796 = vsub.f32 %v1795, 0.9189385
  %v1797 = vmul.f32 %v1792, -2.0
  %v1798 = vmax.f32 %v1797, 0.0
  %v1799 = vand.u32 2147483647, %v1797
  %v1800 = vsub.f32 0.0, %v1799
  %v1801 = vmul.f32 %v1800, 1.442695
  %v1802 = vpow.pop %v1801
  %v1803 = vadd.f32 %v1802, 1.0
  %v1804 = vlog2.pop %v1803
  %v1805 = vmul.f32 %v1804, 0.6931472
  %v1806 = vadd.f32 %v1798, %v1805
  %v1807 = vsub.f32 0.6931472, %v1792
  %v1808 = vsub.f32 %v1807, %v1806
  %v1809 = vmul.f32 %v1808, 2.0
  %v1810 = vsub.f32 %v1796, %v1809
  %vm1811 = vcmask 10240
  %v1812 = vsel %vm1811, %v1810, 0.0
  %v1813 = vrot.slane %v1812, 4
  %v1814 = vadd.f32 %v1812, %v1813
  %v1815 = vrot.slane %v1814, 2
  %v1816 = vadd.f32 %v1814, %v1815
  %v1817 = vrot.slane %v1816, 1
  %v1818 = vadd.f32 %v1816, %v1817
  %v1819 = vld [vmem:[%s14] sm:$0x7]
  %v1820 = vtanh.pop %v1792
  %1822 = vset.pattern.permute.xlu0 0
  %1823 = vperm.xlu0 %1822, %v1819
  %v1824 = vpop.permute.xlu0 %1823
  %v1826 = vmul.f32 %v1824, %v1820
  %v1827 = vld [vmem:[%s15] sm:$0x7]
  %1829 = vset.pattern.permute.xlu0 0
  %1830 = vperm.xlu0 %1829, %v1827
  %v1831 = vpop.permute.xlu0 %1830
  %v1833 = vmul.f32 %v1826, %v1831
  %v1834 = vld [vmem:[%s16] sm:$0x7]
  %1836 = vset.pattern.permute.xlu0 0
  %1837 = vperm.xlu0 %1836, %v1834
  %v1838 = vpop.permute.xlu0 %1837
  %v1840 = vadd.f32 %v1833, %v1838
  %vm1849 = vcmask 1043456
  %v1850 = vrot.slane %v1598, 4
  %v1851 = vrot.slane %v1599, 4
  %v1852 = vsel %vm1849, %v1850, %v1851
  %v1853 = vrot.slane %v1600, 4
  %v1854 = vsel %vm1849, %v1851, %v1853
  %v1855 = vrot.slane %v1601, 4
  %v1856 = vsel %vm1849, %v1853, %v1855
  %v1857 = vrot.slane %v1602, 4
  %v1858 = vsel %vm1849, %v1855, %v1857
  %v1859 = vrot.slane %v1603, 4
  %v1860 = vsel %vm1849, %v1857, %v1859
  %v1861 = vrot.slane %v1604, 4
  %v1862 = vsel %vm1849, %v1859, %v1861
  %v1863 = vrot.slane %v1605, 4
  %v1864 = vsel %vm1849, %v1861, %v1863
  %vm1874 = vcmask 1042432
  %v1875 = vsel %vm1874, %v1840, %v1818
  %v1876 = vsel %vm1849, %v1875, %v1850
  %vm1877 = vcmask 15360
  %1878 = vst.msk [vmem:[%s17] sm:$0xff] %vm1877, %v1876
  %1879 = vst.msk [vmem:[%s17 + $0x8] sm:$0xff] %vm1877, %v1852
  %1880 = vst.msk [vmem:[%s17 + $0x10] sm:$0xff] %vm1877, %v1854
  %1881 = vst.msk [vmem:[%s17 + $0x18] sm:$0xff] %vm1877, %v1856
  %1882 = vst.msk [vmem:[%s17 + $0x20] sm:$0xff] %vm1877, %v1858
  %1883 = vst.msk [vmem:[%s17 + $0x28] sm:$0xff] %vm1877, %v1860
  %1884 = vst.msk [vmem:[%s17 + $0x30] sm:$0xff] %vm1877, %v1862
  %1885 = vst.msk [vmem:[%s17 + $0x38] sm:$0xff] %vm1877, %v1864
  %vm1886 = vcmask 11264
  %1887 = vst.msk [vmem:[%s17 + $0x40] sm:$0xf] %vm1886, %v1863
  // Predicated region
  $region70: #{actor_forward.3} parent=0 // pred_check
    _
  $region71: #{actor_forward.3} parent=0 // pred_check_branch
    %1889 = sbr.rel (0) target = $region73
  $region72: #{actor_forward.3} parent=0 // pred_region
    _
  $region73: #{actor_forward.3} parent=0 // pred_fallthru
    _
  // Predicated region
  $region74: #{actor_forward.3} parent=0 // pred_check
    _
  $region75: #{actor_forward.3} parent=0 // pred_check_branch
    %1891 = sbr.rel (0) target = $region77
  $region76: #{actor_forward.3} parent=0 // pred_region
    _
  $region77: #{actor_forward.3} parent=0 // pred_fallthru
    _

</llo_original>
